<compile_context>
chip_gen: v7x
topology: tpu7x:2x2x1
jax: 0.10.0
libtpu: 0.0.40
codegen_flags: <defaults>
</compile_context>

<pallas_src>
import functools

import jax
import jax.numpy as jnp
from jax.experimental import pallas as pl
from jax.experimental.pallas import tpu as pltpu

EPS = 1e-5
EXPANSION = 2                        # Bottleneck.expansion
CHANNELS = 4
NUM_CLASSES = 1                      # add_top_blocks(num_classes=1)
NUM_BLOCKS = (2, 2, 2, 2, 2, 2)      # layer1..layer4 + top blocks layer5/layer6
LAYER_PLANES = (64, 128, 256, 512, 512, 512)
LAYER_STRIDES = (1, 2, 2, 2, 2, 2)

_VMEM_LIMIT = 32 * 1024 * 1024       # explicit budget; fits v5e/v6e/v7x scoped VMEM
_VMEM = pl.BlockSpec(memory_space=pltpu.MemorySpace.VMEM)


def _layer_strides(li):
    return (LAYER_STRIDES[li],) + (1,) * (NUM_BLOCKS[li] - 1)


def _tile(dim, cap, align):
    """Largest tile <= cap that divides `dim` and is a multiple of `align`,
    falling back to the full dimension (always a legal block shape)."""
    if dim <= cap:
        return dim
    t = (cap // align) * align
    while t >= align:
        if dim % t == 0:
            return t
        t -= align
    return dim


# ----------------------------------------------------------------------------
# Pallas kernels
# ----------------------------------------------------------------------------
def _mm_bn_kernel(x_ref, w_ref, s_ref, b_ref, o_ref, acc_ref, *, relu):
    @pl.when(pl.program_id(2) == 0)
    def _():
        acc_ref[...] = jnp.zeros_like(acc_ref)

    acc_ref[...] += jnp.dot(x_ref[...], w_ref[...],
                            preferred_element_type=jnp.float32)

    @pl.when(pl.program_id(2) == pl.num_programs(2) - 1)
    def _():
        acc = acc_ref[...] * s_ref[...] + b_ref[...]
        if relu:
            acc = jnp.maximum(acc, 0.0)
        o_ref[...] = acc.astype(o_ref.dtype)


def _mm_bn_res_kernel(x_ref, w_ref, s_ref, b_ref, r_ref, o_ref, acc_ref, *, relu):
    @pl.when(pl.program_id(2) == 0)
    def _():
        acc_ref[...] = jnp.zeros_like(acc_ref)

    acc_ref[...] += jnp.dot(x_ref[...], w_ref[...],
                            preferred_element_type=jnp.float32)

    @pl.when(pl.program_id(2) == pl.num_programs(2) - 1)
    def _():
        acc = (acc_ref[...] * s_ref[...] + b_ref[...]
               + r_ref[...].astype(jnp.float32))       # residual add in f32
        if relu:
            acc = jnp.maximum(acc, 0.0)
        o_ref[...] = acc.astype(o_ref.dtype)


def _conv3x3_s1_kernel(x_ref, w_ref, s_ref, b_ref, o_ref, *, ho, wo, relu):
    # x_ref: [1, hp, wp, cin] padded activation block (bf16), loaded once;
    # the 9 taps are formed in VMEM/vregs -> no 9x im2col through HBM.
    cin = x_ref.shape[-1]
    tn = o_ref.shape[-1]
    x = x_ref[0]                                       # [hp, wp, cin]
    acc = jnp.zeros((ho * wo, tn), jnp.float32)
    for kh in range(3):                                # unrolled 9-tap loop
        for kw in range(3):
            xs = x[kh:kh + ho, kw:kw + wo, :]
            acc = acc + jnp.dot(xs.reshape(ho * wo, cin),
                                w_ref[kh * 3 + kw],
                                preferred_element_type=jnp.float32)
    acc = acc * s_ref[...] + b_ref[...]
    if relu:
        acc = jnp.maximum(acc, 0.0)
    o_ref[0] = acc.reshape(ho, wo, tn).astype(o_ref.dtype)


def _pool_fc_kernel(x_ref, w_ref, b_ref, o_ref):
    pooled = jnp.mean(x_ref[...].astype(jnp.float32), axis=1)     # [N, C]
    o_ref[...] = jnp.dot(pooled, w_ref[...],
                         preferred_element_type=jnp.float32) + b_ref[...]


# ----------------------------------------------------------------------------
# Kernel wrappers
# ----------------------------------------------------------------------------
def matmul_bn(x, w, scale, bias, residual=None, relu=True,
              out_dtype=jnp.bfloat16, tm_cap=512, tn_cap=256, tk_cap=512):
    """Fused [M,K]@[K,Cout] + BN affine (+residual) (+ReLU), tiled on the MXU."""
    m, k = x.shape
    cout = w.shape[1]
    tm = _tile(m, tm_cap, 8)
    tn = _tile(cout, tn_cap, 128)
    tk = _tile(k, tk_cap, 128)
    grid = (m // tm, cout // tn, k // tk)

    in_specs = [
        pl.BlockSpec((tm, tk), lambda i, j, kk: (i, kk)),
        pl.BlockSpec((tk, tn), lambda i, j, kk: (kk, j)),
        pl.BlockSpec((1, tn), lambda i, j, kk: (0, j)),
        pl.BlockSpec((1, tn), lambda i, j, kk: (0, j)),
    ]
    args = [x, w, scale, bias]
    if residual is None:
        kernel = functools.partial(_mm_bn_kernel, relu=relu)
    else:
        in_specs.append(pl.BlockSpec((tm, tn), lambda i, j, kk: (i, j)))
        args.append(residual)
        kernel = functools.partial(_mm_bn_res_kernel, relu=relu)

    return pl.pallas_call(
        kernel,
        out_shape=jax.ShapeDtypeStruct((m, cout), out_dtype),
        grid_spec=pltpu.PrefetchScalarGridSpec(
            num_scalar_prefetch=0,
            grid=grid,
            in_specs=in_specs,
            out_specs=pl.BlockSpec((tm, tn), lambda i, j, kk: (i, j)),
            scratch_shapes=[pltpu.VMEM((tm, tn), jnp.float32)]),
        compiler_params=pltpu.CompilerParams(
            dimension_semantics=("parallel", "parallel", "arbitrary"),
            vmem_limit_bytes=_VMEM_LIMIT),
    )(*args)


def _conv3x3_s1(x, p, relu):
    """3x3 / stride-1 / pad-1 conv + BN (+ReLU) with in-kernel patch assembly."""
    n, h, w, cin = x.shape
    wgt = p["w"]
    cout = wgt.shape[-1]
    xp = jnp.pad(x, ((0, 0), (1, 1), (1, 1), (0, 0)))
    hp, wp = h + 2, w + 2
    tn = _tile(cout, 256, 128)
    grid = (cout // tn, n)                 # weight tile resident across the batch
    kernel = functools.partial(_conv3x3_s1_kernel, ho=h, wo=w, relu=relu)
    return pl.pallas_call(
        kernel,
        out_shape=jax.ShapeDtypeStruct((n, h, w, cout), jnp.bfloat16),
        grid_spec=pltpu.PrefetchScalarGridSpec(
            num_scalar_prefetch=0,
            grid=grid,
            in_specs=[
                pl.BlockSpec((1, hp, wp, cin), lambda j, b: (b, 0, 0, 0)),
                pl.BlockSpec((9, cin, tn), lambda j, b: (0, 0, j)),
                pl.BlockSpec((1, tn), lambda j, b: (0, j)),
                pl.BlockSpec((1, tn), lambda j, b: (0, j)),
            ],
            out_specs=pl.BlockSpec((1, h, w, tn), lambda j, b: (b, 0, 0, j)),
        ),
        compiler_params=pltpu.CompilerParams(
            dimension_semantics=("parallel", "parallel"),
            vmem_limit_bytes=_VMEM_LIMIT),
    )(xp, wgt.reshape(9, cin, cout), p["scale"], p["bias"])


def _im2col(x, ksize, stride, padding):
    n, h, w, c = x.shape
    if padding:
        x = jnp.pad(x, ((0, 0), (padding, padding), (padding, padding), (0, 0)))
    hp, wp = h + 2 * padding, w + 2 * padding
    ho = (hp - ksize) // stride + 1
    wo = (wp - ksize) // stride + 1
    cols = []
    for kh in range(ksize):
        for kw in range(ksize):
            cols.append(x[:,
                          kh:kh + stride * (ho - 1) + 1:stride,
                          kw:kw + stride * (wo - 1) + 1:stride,
                          :])
    patches = jnp.concatenate(cols, axis=-1)            # [N, Ho, Wo, K*K*C]
    return patches.reshape(n * ho * wo, ksize * ksize * c), (n, ho, wo)


def _conv3x3_strided(x, p, stride, relu):
    wgt = p["w"]
    cout = wgt.shape[-1]
    patches, (n, ho, wo) = _im2col(x, 3, stride, 1)
    out = matmul_bn(patches, wgt.reshape(-1, cout), p["scale"], p["bias"],
                    relu=relu)
    return out.reshape(n, ho, wo, cout)


def conv3x3_bn(x, p, stride, relu):
    if stride == 1:
        return _conv3x3_s1(x, p, relu)
    # TODO(synk): stride-2 3x3 convs (1/4 the output rows) still use a compact
    # bf16 im2col into the tiled matmul instead of in-kernel patch assembly.
    return _conv3x3_strided(x, p, stride, relu)


def conv1x1_bn(x, p, relu, residual=None):
    n, h, w, cin = x.shape
    wgt = p["w"].reshape(cin, -1)
    cout = wgt.shape[-1]
    res = None if residual is None else residual.reshape(n * h * w, cout)
    out = matmul_bn(x.reshape(n * h * w, cin), wgt, p["scale"], p["bias"],
                    residual=res, relu=relu)
    return out.reshape(n, h, w, cout)


def pool_fc(x_nhwc, w, b):
    # Global average pool over spatial + Linear head, fused in one kernel.
    n, h, wd, c = x_nhwc.shape
    x = x_nhwc.reshape(n, h * wd, c)
    return pl.pallas_call(
        _pool_fc_kernel,
        out_shape=jax.ShapeDtypeStruct((n, w.shape[1]), jnp.float32),
        in_specs=[_VMEM, _VMEM, _VMEM],
        out_specs=_VMEM,
        compiler_params=pltpu.CompilerParams(vmem_limit_bytes=_VMEM_LIMIT),
    )(x, w, b)


# ----------------------------------------------------------------------------
# Model (mirrors AFIMbasemod1.forward with Bottleneck + add_top_blocks)
# ----------------------------------------------------------------------------
def bottleneck_forward(x, p, stride):
    if p["sc"] is None:
        sc = x                                            # identity shortcut
    else:
        xs = x if stride == 1 else x[:, ::stride, ::stride, :]
        sc = conv1x1_bn(xs, p["sc"], relu=False)          # conv + BN (no ReLU)
    out = conv1x1_bn(x, p["conv1"], relu=True)            # relu(bn1(conv1))
    out = conv3x3_bn(out, p["conv2"], stride=stride, relu=True)
    out = conv1x1_bn(out, p["conv3"], relu=True, residual=sc)  # bn3 + add + relu
    return out


def model_forward(params, x):
    out = conv3x3_bn(x, params["conv1"], stride=1, relu=True)   # stem
    for li in range(6):
        for p, s in zip(params["layers"][li], _layer_strides(li)):
            out = bottleneck_forward(out, p, s)
    return pool_fc(out, params["fc_w"], params["fc_b"])         # GAP + Linear


# ----------------------------------------------------------------------------
# Deterministic parameter construction (synthetic weights, BN folded)
# ----------------------------------------------------------------------------
def conv_bn_params(key, ksize, cin, cout):
    kw_, kg, kb, km, kv = jax.random.split(key, 5)
    fan_in = ksize * ksize * cin
    w = jax.random.normal(kw_, (ksize, ksize, cin, cout), jnp.float32)
    w = w * jnp.sqrt(2.0 / fan_in)
    gamma = 1.0 + 0.1 * jax.random.normal(kg, (cout,), jnp.float32)
    beta = 0.1 * jax.random.normal(kb, (cout,), jnp.float32)
    mean = 0.1 * jax.random.normal(km, (cout,), jnp.float32)
    var = jnp.abs(1.0 + 0.1 * jax.random.normal(kv, (cout,), jnp.float32))
    scale = gamma / jnp.sqrt(var + EPS)
    bias = beta - mean * scale
    return {"w": w.astype(jnp.bfloat16),                  # bf16 weights for the MXU
            "scale": scale.reshape(1, cout),              # BN epilogue stays f32
            "bias": bias.reshape(1, cout)}


def make_bottleneck(key, in_planes, planes, stride):
    k1, k2, k3, k4 = jax.random.split(key, 4)
    p = {
        "conv1": conv_bn_params(k1, 1, in_planes, planes),
        "conv2": conv_bn_params(k2, 3, planes, planes),
        "conv3": conv_bn_params(k3, 1, planes, EXPANSION * planes),
        "sc": None,
    }
    if stride != 1 or in_planes != EXPANSION * planes:
        p["sc"] = conv_bn_params(k4, 1, in_planes, EXPANSION * planes)
    return p


def build_params(key):
    keys = iter(jax.random.split(key, 32))
    params = {"conv1": conv_bn_params(next(keys), 3, CHANNELS, 64)}
    in_planes = 64
    layers = []
    for li in range(6):
        planes = LAYER_PLANES[li]
        blocks = []
        for s in _layer_strides(li):
            blocks.append(make_bottleneck(next(keys), in_planes, planes, s))
            in_planes = planes * EXPANSION
        layers.append(blocks)
    params["layers"] = layers
    params["fc_w"] = (jax.random.normal(next(keys), (in_planes, NUM_CLASSES),
                                        jnp.float32) / jnp.sqrt(float(in_planes)))
    params["fc_b"] = jnp.zeros((1, NUM_CLASSES), jnp.float32)
    return params


# ----------------------------------------------------------------------------
if __name__ == "__main__":
    key = jax.random.PRNGKey(0)
    pkey, xkey = jax.random.split(key)
    params = build_params(pkey)

    # PyTorch-style NCHW input: [N, channels=4, H, W]
    N, C, H, W = 2, CHANNELS, 16, 16
    x_nchw = jax.random.normal(xkey, (N, C, H, W), jnp.float32)

    # layout: NCHW -> NHWC at the boundary; activations flow as bf16.
    x = jnp.transpose(x_nchw, (0, 2, 3, 1)).astype(jnp.bfloat16)

    out = model_forward(params, x)
    out = jax.block_until_ready(out)
    assert out.shape == (N, NUM_CLASSES), out.shape
    assert bool(jnp.all(jnp.isfinite(out)))
    print("KERNEL_OK")
</pallas_src>

<mosaic_0001>
module attributes {stable_mosaic.version = 11 : i64} {
  func.func @_conv3x3_s1_kernel(%arg0: i32, %arg1: i32, %arg2: memref<1x18x18x4xbf16, #tpu.memory_space<vmem>>, %arg3: memref<9x4x64xbf16, #tpu.memory_space<vmem>>, %arg4: memref<1x64xf32, #tpu.memory_space<vmem>>, %arg5: memref<1x64xf32, #tpu.memory_space<vmem>>, %arg6: memref<1x16x16x64xbf16, #tpu.memory_space<vmem>>) attributes {dimension_semantics = [#tpu.dimension_semantics<parallel>, #tpu.dimension_semantics<parallel>], iteration_bounds = array<i64: 1, 2>, scalar_prefetch = 0 : i64, scratch_operands = 0 : i64, tpu.core_type = #tpu.core_type<tc>, window_params = [{transform_indices = @transform_0, window_bounds = array<i64: 1, 18, 18, 4>}, {transform_indices = @transform_1, window_bounds = array<i64: 9, 4, 64>}, {transform_indices = @transform_2, window_bounds = array<i64: 1, 64>}, {transform_indices = @transform_3, window_bounds = array<i64: 1, 64>}, {transform_indices = @transform_4, window_bounds = array<i64: 1, 16, 16, 64>}]} {
    %c0 = arith.constant 0 : index
    %c0_0 = arith.constant 0 : index
    %c0_1 = arith.constant 0 : index
    %c0_2 = arith.constant 0 : index
    %0 = vector.load %arg2[%c0, %c0_0, %c0_1, %c0_2] : memref<1x18x18x4xbf16, #tpu.memory_space<vmem>>, vector<1x18x18x4xbf16>
    %1 = vector.shape_cast %0 : vector<1x18x18x4xbf16> to vector<18x18x4xbf16>
    %cst = arith.constant 0.000000e+00 : f32
    %2 = vector.broadcast %cst : f32 to vector<256x64xf32>
    %3 = vector.extract_strided_slice %1 {offsets = [0, 0, 0], sizes = [16, 16, 4], strides = [1, 1, 1]} : vector<18x18x4xbf16> to vector<16x16x4xbf16>
    %4 = vector.shape_cast %3 : vector<16x16x4xbf16> to vector<256x4xbf16>
    %c0_3 = arith.constant 0 : index
    %c0_4 = arith.constant 0 : index
    %c0_5 = arith.constant 0 : index
    %5 = vector.load %arg3[%c0_3, %c0_4, %c0_5] : memref<9x4x64xbf16, #tpu.memory_space<vmem>>, vector<1x4x64xbf16>
    %6 = vector.shape_cast %5 : vector<1x4x64xbf16> to vector<4x64xbf16>
    %cst_6 = arith.constant dense<0.000000e+00> : vector<256x64xf32>
    %7 = tpu.matmul %4, %6, %cst_6 {dimension_numbers = #tpu.dot_dimension_numbers<[1], [0], [0], [1], [0, 0, 1, 1], [], []>} : vector<256x4xbf16>, vector<4x64xbf16>, vector<256x64xf32> -> vector<256x64xf32>
    %8 = arith.addf %2, %7 : vector<256x64xf32>
    %9 = vector.extract_strided_slice %1 {offsets = [0, 1, 0], sizes = [16, 16, 4], strides = [1, 1, 1]} : vector<18x18x4xbf16> to vector<16x16x4xbf16>
    %10 = vector.shape_cast %9 : vector<16x16x4xbf16> to vector<256x4xbf16>
    %c1 = arith.constant 1 : index
    %c0_7 = arith.constant 0 : index
    %c0_8 = arith.constant 0 : index
    %11 = vector.load %arg3[%c1, %c0_7, %c0_8] : memref<9x4x64xbf16, #tpu.memory_space<vmem>>, vector<1x4x64xbf16>
    %12 = vector.shape_cast %11 : vector<1x4x64xbf16> to vector<4x64xbf16>
    %cst_9 = arith.constant dense<0.000000e+00> : vector<256x64xf32>
    %13 = tpu.matmul %10, %12, %cst_9 {dimension_numbers = #tpu.dot_dimension_numbers<[1], [0], [0], [1], [0, 0, 1, 1], [], []>} : vector<256x4xbf16>, vector<4x64xbf16>, vector<256x64xf32> -> vector<256x64xf32>
    %14 = arith.addf %8, %13 : vector<256x64xf32>
    %15 = vector.extract_strided_slice %1 {offsets = [0, 2, 0], sizes = [16, 16, 4], strides = [1, 1, 1]} : vector<18x18x4xbf16> to vector<16x16x4xbf16>
    %16 = vector.shape_cast %15 : vector<16x16x4xbf16> to vector<256x4xbf16>
    %c2 = arith.constant 2 : index
    %c0_10 = arith.constant 0 : index
    %c0_11 = arith.constant 0 : index
    %17 = vector.load %arg3[%c2, %c0_10, %c0_11] : memref<9x4x64xbf16, #tpu.memory_space<vmem>>, vector<1x4x64xbf16>
    %18 = vector.shape_cast %17 : vector<1x4x64xbf16> to vector<4x64xbf16>
    %cst_12 = arith.constant dense<0.000000e+00> : vector<256x64xf32>
    %19 = tpu.matmul %16, %18, %cst_12 {dimension_numbers = #tpu.dot_dimension_numbers<[1], [0], [0], [1], [0, 0, 1, 1], [], []>} : vector<256x4xbf16>, vector<4x64xbf16>, vector<256x64xf32> -> vector<256x64xf32>
    %20 = arith.addf %14, %19 : vector<256x64xf32>
    %21 = vector.extract_strided_slice %1 {offsets = [1, 0, 0], sizes = [16, 16, 4], strides = [1, 1, 1]} : vector<18x18x4xbf16> to vector<16x16x4xbf16>
    %22 = vector.shape_cast %21 : vector<16x16x4xbf16> to vector<256x4xbf16>
    %c3 = arith.constant 3 : index
    %c0_13 = arith.constant 0 : index
    %c0_14 = arith.constant 0 : index
    %23 = vector.load %arg3[%c3, %c0_13, %c0_14] : memref<9x4x64xbf16, #tpu.memory_space<vmem>>, vector<1x4x64xbf16>
    %24 = vector.shape_cast %23 : vector<1x4x64xbf16> to vector<4x64xbf16>
    %cst_15 = arith.constant dense<0.000000e+00> : vector<256x64xf32>
    %25 = tpu.matmul %22, %24, %cst_15 {dimension_numbers = #tpu.dot_dimension_numbers<[1], [0], [0], [1], [0, 0, 1, 1], [], []>} : vector<256x4xbf16>, vector<4x64xbf16>, vector<256x64xf32> -> vector<256x64xf32>
    %26 = arith.addf %20, %25 : vector<256x64xf32>
    %27 = vector.extract_strided_slice %1 {offsets = [1, 1, 0], sizes = [16, 16, 4], strides = [1, 1, 1]} : vector<18x18x4xbf16> to vector<16x16x4xbf16>
    %28 = vector.shape_cast %27 : vector<16x16x4xbf16> to vector<256x4xbf16>
    %c4 = arith.constant 4 : index
    %c0_16 = arith.constant 0 : index
    %c0_17 = arith.constant 0 : index
    %29 = vector.load %arg3[%c4, %c0_16, %c0_17] : memref<9x4x64xbf16, #tpu.memory_space<vmem>>, vector<1x4x64xbf16>
    %30 = vector.shape_cast %29 : vector<1x4x64xbf16> to vector<4x64xbf16>
    %cst_18 = arith.constant dense<0.000000e+00> : vector<256x64xf32>
    %31 = tpu.matmul %28, %30, %cst_18 {dimension_numbers = #tpu.dot_dimension_numbers<[1], [0], [0], [1], [0, 0, 1, 1], [], []>} : vector<256x4xbf16>, vector<4x64xbf16>, vector<256x64xf32> -> vector<256x64xf32>
    %32 = arith.addf %26, %31 : vector<256x64xf32>
    %33 = vector.extract_strided_slice %1 {offsets = [1, 2, 0], sizes = [16, 16, 4], strides = [1, 1, 1]} : vector<18x18x4xbf16> to vector<16x16x4xbf16>
    %34 = vector.shape_cast %33 : vector<16x16x4xbf16> to vector<256x4xbf16>
    %c5 = arith.constant 5 : index
    %c0_19 = arith.constant 0 : index
    %c0_20 = arith.constant 0 : index
    %35 = vector.load %arg3[%c5, %c0_19, %c0_20] : memref<9x4x64xbf16, #tpu.memory_space<vmem>>, vector<1x4x64xbf16>
    %36 = vector.shape_cast %35 : vector<1x4x64xbf16> to vector<4x64xbf16>
    %cst_21 = arith.constant dense<0.000000e+00> : vector<256x64xf32>
    %37 = tpu.matmul %34, %36, %cst_21 {dimension_numbers = #tpu.dot_dimension_numbers<[1], [0], [0], [1], [0, 0, 1, 1], [], []>} : vector<256x4xbf16>, vector<4x64xbf16>, vector<256x64xf32> -> vector<256x64xf32>
    %38 = arith.addf %32, %37 : vector<256x64xf32>
    %39 = vector.extract_strided_slice %1 {offsets = [2, 0, 0], sizes = [16, 16, 4], strides = [1, 1, 1]} : vector<18x18x4xbf16> to vector<16x16x4xbf16>
    %40 = vector.shape_cast %39 : vector<16x16x4xbf16> to vector<256x4xbf16>
    %c6 = arith.constant 6 : index
    %c0_22 = arith.constant 0 : index
    %c0_23 = arith.constant 0 : index
    %41 = vector.load %arg3[%c6, %c0_22, %c0_23] : memref<9x4x64xbf16, #tpu.memory_space<vmem>>, vector<1x4x64xbf16>
    %42 = vector.shape_cast %41 : vector<1x4x64xbf16> to vector<4x64xbf16>
    %cst_24 = arith.constant dense<0.000000e+00> : vector<256x64xf32>
    %43 = tpu.matmul %40, %42, %cst_24 {dimension_numbers = #tpu.dot_dimension_numbers<[1], [0], [0], [1], [0, 0, 1, 1], [], []>} : vector<256x4xbf16>, vector<4x64xbf16>, vector<256x64xf32> -> vector<256x64xf32>
    %44 = arith.addf %38, %43 : vector<256x64xf32>
    %45 = vector.extract_strided_slice %1 {offsets = [2, 1, 0], sizes = [16, 16, 4], strides = [1, 1, 1]} : vector<18x18x4xbf16> to vector<16x16x4xbf16>
    %46 = vector.shape_cast %45 : vector<16x16x4xbf16> to vector<256x4xbf16>
    %c7 = arith.constant 7 : index
    %c0_25 = arith.constant 0 : index
    %c0_26 = arith.constant 0 : index
    %47 = vector.load %arg3[%c7, %c0_25, %c0_26] : memref<9x4x64xbf16, #tpu.memory_space<vmem>>, vector<1x4x64xbf16>
    %48 = vector.shape_cast %47 : vector<1x4x64xbf16> to vector<4x64xbf16>
    %cst_27 = arith.constant dense<0.000000e+00> : vector<256x64xf32>
    %49 = tpu.matmul %46, %48, %cst_27 {dimension_numbers = #tpu.dot_dimension_numbers<[1], [0], [0], [1], [0, 0, 1, 1], [], []>} : vector<256x4xbf16>, vector<4x64xbf16>, vector<256x64xf32> -> vector<256x64xf32>
    %50 = arith.addf %44, %49 : vector<256x64xf32>
    %51 = vector.extract_strided_slice %1 {offsets = [2, 2, 0], sizes = [16, 16, 4], strides = [1, 1, 1]} : vector<18x18x4xbf16> to vector<16x16x4xbf16>
    %52 = vector.shape_cast %51 : vector<16x16x4xbf16> to vector<256x4xbf16>
    %c8 = arith.constant 8 : index
    %c0_28 = arith.constant 0 : index
    %c0_29 = arith.constant 0 : index
    %53 = vector.load %arg3[%c8, %c0_28, %c0_29] : memref<9x4x64xbf16, #tpu.memory_space<vmem>>, vector<1x4x64xbf16>
    %54 = vector.shape_cast %53 : vector<1x4x64xbf16> to vector<4x64xbf16>
    %cst_30 = arith.constant dense<0.000000e+00> : vector<256x64xf32>
    %55 = tpu.matmul %52, %54, %cst_30 {dimension_numbers = #tpu.dot_dimension_numbers<[1], [0], [0], [1], [0, 0, 1, 1], [], []>} : vector<256x4xbf16>, vector<4x64xbf16>, vector<256x64xf32> -> vector<256x64xf32>
    %56 = arith.addf %50, %55 : vector<256x64xf32>
    %c0_31 = arith.constant 0 : index
    %c0_32 = arith.constant 0 : index
    %57 = vector.load %arg4[%c0_31, %c0_32] : memref<1x64xf32, #tpu.memory_space<vmem>>, vector<1x64xf32>
    %58 = vector.broadcast %57 : vector<1x64xf32> to vector<256x64xf32>
    %59 = arith.mulf %56, %58 : vector<256x64xf32>
    %c0_33 = arith.constant 0 : index
    %c0_34 = arith.constant 0 : index
    %60 = vector.load %arg5[%c0_33, %c0_34] : memref<1x64xf32, #tpu.memory_space<vmem>>, vector<1x64xf32>
    %61 = vector.broadcast %60 : vector<1x64xf32> to vector<256x64xf32>
    %62 = arith.addf %59, %61 : vector<256x64xf32>
    %cst_35 = arith.constant 0.000000e+00 : f32
    %63 = vector.broadcast %cst_35 : f32 to vector<256x64xf32>
    %64 = arith.maximumf %62, %63 : vector<256x64xf32>
    %65 = vector.shape_cast %64 : vector<256x64xf32> to vector<16x16x64xf32>
    %66 = arith.truncf %65 : vector<16x16x64xf32> to vector<16x16x64xbf16>
    %c0_36 = arith.constant 0 : index
    %c0_37 = arith.constant 0 : index
    %c0_38 = arith.constant 0 : index
    %c0_39 = arith.constant 0 : index
    %67 = vector.load %arg6[%c0_36, %c0_37, %c0_38, %c0_39] : memref<1x16x16x64xbf16, #tpu.memory_space<vmem>>, vector<1x16x16x64xbf16>
    %68 = vector.shape_cast %67 : vector<1x16x16x64xbf16> to vector<16x16x64xbf16>
    %69 = vector.shape_cast %66 : vector<16x16x64xbf16> to vector<1x16x16x64xbf16>
    tpu.vector_store %arg6[%c0_36, %c0_37, %c0_38, %c0_39], %69 {strides = array<i32>} : memref<1x16x16x64xbf16, #tpu.memory_space<vmem>>, vector<1x16x16x64xbf16>,
    return
  }
  func.func @transform_0(%arg0: i32, %arg1: i32) -> (i32, i32, i32, i32) {
    %c0_i32 = arith.constant 0 : i32
    %c0_i32_0 = arith.constant 0 : i32
    %c0_i32_1 = arith.constant 0 : i32
    %c0_i32_2 = arith.constant 0 : i32
    return %arg1, %c0_i32, %c0_i32_0, %c0_i32_1 : i32, i32, i32, i32
  }
  func.func @transform_1(%arg0: i32, %arg1: i32) -> (i32, i32, i32) {
    %c0_i32 = arith.constant 0 : i32
    %c0_i32_0 = arith.constant 0 : i32
    %c0_i32_1 = arith.constant 0 : i32
    return %c0_i32, %c0_i32_0, %arg0 : i32, i32, i32
  }
  func.func @transform_2(%arg0: i32, %arg1: i32) -> (i32, i32) {
    %c0_i32 = arith.constant 0 : i32
    %c0_i32_0 = arith.constant 0 : i32
    return %c0_i32, %arg0 : i32, i32
  }
  func.func @transform_3(%arg0: i32, %arg1: i32) -> (i32, i32) {
    %c0_i32 = arith.constant 0 : i32
    %c0_i32_0 = arith.constant 0 : i32
    return %c0_i32, %arg0 : i32, i32
  }
  func.func @transform_4(%arg0: i32, %arg1: i32) -> (i32, i32, i32, i32) {
    %c0_i32 = arith.constant 0 : i32
    %c0_i32_0 = arith.constant 0 : i32
    %c0_i32_1 = arith.constant 0 : i32
    return %arg1, %c0_i32, %c0_i32_0, %arg0 : i32, i32, i32, i32
  }
}

</mosaic_0001>

<llo_original>
// kernel: tpu_custom_call.1
$region0: #{tpu_custom_call.1}
  #allocation0 [shape = 'u32[]', space=smem, size = 0x4, offset = 0x4, fixed_abs, tag = 'smem constant byte address 0x4 - core index']
  #allocation1 [shape = 'u32[144,128]{1,0:T(1,128)}', space=vmem, size = 0x12000, scoped, tag = 'internal scratch']
  %s0 = inlined_call_operand.vmem [shape: bf16[2,18,18,4], index: 0, kind: input, shape index: {}]
  %s1 = inlined_call_operand.vmem [shape: bf16[9,4,64], index: 1, kind: input, shape index: {}]
  %s2 = inlined_call_operand.vmem [shape: f32[1,64], index: 2, kind: input, shape index: {}]
  %s3 = inlined_call_operand.vmem [shape: f32[1,64], index: 3, kind: input, shape index: {}]
  %s4 = inlined_call_operand.hbm [shape: bf16[2,16,16,64], index: 4, kind: output, shape index: {}]
  %s5 = sld [smem:[#allocation0]]
  $region49: #{tpu_custom_call.1} parent=0
    _
  %s7 = ssub.s32 1, %s5
  %s8 = scalar_select 0, %s7, %s5
  $region1: #{tpu_custom_call.1} parent=0
    #allocation2 [shape = 'u8[131072]{0}', space=vmem, size = 0x20000, scoped, tag = 'output window, operand 0']
    #allocation3 [shape = 's32[2]{0}', space=sflag, size = 0x8, scoped, tag = 'scoped memory for tpu_custom_call.1']
    %9 = vsyncpa [#allocation3], 0
    %s10 = scalar_lea.sflag [#allocation3], 1
    %11 = vsyncpa %s10, 0
    loop: start=0, step=1, limit=4
    $region2: #{tpu_custom_call.1} parent=1 // loop_pre_header
      _
    $region3: #{tpu_custom_call.1} parent=1 // loop_header
      %s13 = sphi 0, %s17
      %p14 = scmp.ge.s32.totalorder %s13, 4
      %s20 = sphi 0, %s32
      %s21 = sphi 0, %s28
      %s22 = sphi 0, %s20
      %s23 = sphi 0, %s21
      %s24 = sphi 0, %s22
      %s25 = sphi 0, %s23
      %s35 = sphi 0, %s37
      %s38 = sphi 0, %s35
      %s39 = sphi 0, %s38
      %s55 = sphi 0, %s39
      %s61 = sphi 0, %s63
      %s64 = sphi 0, %s61
      %s65 = sphi 0, %s64
      %s81 = sphi 0, %s65
      %s87 = sphi 0, %s89
      %s90 = sphi 0, %s87
      %s91 = sphi 0, %s90
      %s107 = sphi 0, %s91
      %s113 = sphi 0, %s115
      %s116 = sphi 0, %s113
      %s117 = sphi 0, %s116
      %s133 = sphi 0, %s117
      %s141 = sphi 0, %s143
      %s144 = sphi 0, %s141
      %s145 = sphi 0, %s144
      %s161 = sphi 0, %s145
    $region4: #{tpu_custom_call.1} parent=1 // loop_header_branch
      %16 = sbr.rel (%p14) target = $region8
    $region5: #{tpu_custom_call.1} parent=1 // loop_body
      %s18 = ssub.s32 %s13, 1
      %s19 = ssub.s32 %s13, 2
      %s26 = sadd.s32 1, %s21
      %p27 = scmp.ge.s32.totalorder %s26, 2
      %s28 = scalar_select %p27, 0, %s26
      %s29 = sadd.s32 1, %s20
      %s30 = scalar_select %p27, %s29, %s20
      %p31 = scmp.ge.s32.totalorder %s30, 1
      %s32 = scalar_select %p31, 0, %s30
      %s33 = ssub.s32 %s21, %s28
      %p34 = scmp.eq.s32.totalorder %s33, 0
      %s36 = sadd.s32 %s35, 1
      %s37 = scalar_select %p34, %s35, %s36
      %p40 = pneg %p34
      %p41 = scmp.eq.s32.totalorder %s13, 1
      %p42 = por %p40, %p41
      %p43 = scmp.ne.s32.totalorder %s35, %s38
      %p44 = scmp.eq.s32.totalorder %s13, 0
      %p45 = por %p43, %p44
      %p46 = scmp.ne.s32.totalorder %s35, %s38
      %p47 = scmp.eq.s32.totalorder %s18, 1
      %p48 = por %p46, %p47
      %p49 = scmp.ne.s32.totalorder %s38, %s39
      %p50 = scmp.eq.s32.totalorder %s18, 0
      %p51 = por %p49, %p50
      %p52 = scmp.ne.s32.totalorder %s38, %s39
      %p53 = scmp.eq.s32.totalorder %s19, 1
      %p54 = por %p52, %p53
      %p56 = scmp.ne.s32.totalorder %s39, %s55
      %p57 = scmp.eq.s32.totalorder %s19, 0
      %p58 = por %p56, %p57
      %s59 = ssub.s32 %s20, %s32
      %p60 = scmp.eq.s32.totalorder %s59, 0
      %s62 = sadd.s32 %s61, 1
      %s63 = scalar_select %p60, %s61, %s62
      %p66 = pneg %p60
      %p67 = scmp.eq.s32.totalorder %s13, 1
      %p68 = por %p66, %p67
      %p69 = scmp.ne.s32.totalorder %s61, %s64
      %p70 = scmp.eq.s32.totalorder %s13, 0
      %p71 = por %p69, %p70
      %p72 = scmp.ne.s32.totalorder %s61, %s64
      %p73 = scmp.eq.s32.totalorder %s18, 1
      %p74 = por %p72, %p73
      %p75 = scmp.ne.s32.totalorder %s64, %s65
      %p76 = scmp.eq.s32.totalorder %s18, 0
      %p77 = por %p75, %p76
      %p78 = scmp.ne.s32.totalorder %s64, %s65
      %p79 = scmp.eq.s32.totalorder %s19, 1
      %p80 = por %p78, %p79
      %p82 = scmp.ne.s32.totalorder %s65, %s81
      %p83 = scmp.eq.s32.totalorder %s19, 0
      %p84 = por %p82, %p83
      %s85 = ssub.s32 %s20, %s32
      %p86 = scmp.eq.s32.totalorder %s85, 0
      %s88 = sadd.s32 %s87, 1
      %s89 = scalar_select %p86, %s87, %s88
      %p92 = pneg %p86
      %p93 = scmp.eq.s32.totalorder %s13, 1
      %p94 = por %p92, %p93
      %p95 = scmp.ne.s32.totalorder %s87, %s90
      %p96 = scmp.eq.s32.totalorder %s13, 0
      %p97 = por %p95, %p96
      %p98 = scmp.ne.s32.totalorder %s87, %s90
      %p99 = scmp.eq.s32.totalorder %s18, 1
      %p100 = por %p98, %p99
      %p101 = scmp.ne.s32.totalorder %s90, %s91
      %p102 = scmp.eq.s32.totalorder %s18, 0
      %p103 = por %p101, %p102
      %p104 = scmp.ne.s32.totalorder %s90, %s91
      %p105 = scmp.eq.s32.totalorder %s19, 1
      %p106 = por %p104, %p105
      %p108 = scmp.ne.s32.totalorder %s91, %s107
      %p109 = scmp.eq.s32.totalorder %s19, 0
      %p110 = por %p108, %p109
      %s111 = ssub.s32 %s20, %s32
      %p112 = scmp.eq.s32.totalorder %s111, 0
      %s114 = sadd.s32 %s113, 1
      %s115 = scalar_select %p112, %s113, %s114
      %p118 = pneg %p112
      %p119 = scmp.eq.s32.totalorder %s13, 1
      %p120 = por %p118, %p119
      %p121 = scmp.ne.s32.totalorder %s113, %s116
      %p122 = scmp.eq.s32.totalorder %s13, 0
      %p123 = por %p121, %p122
      %p124 = scmp.ne.s32.totalorder %s113, %s116
      %p125 = scmp.eq.s32.totalorder %s18, 1
      %p126 = por %p124, %p125
      %p127 = scmp.ne.s32.totalorder %s116, %s117
      %p128 = scmp.eq.s32.totalorder %s18, 0
      %p129 = por %p127, %p128
      %p130 = scmp.ne.s32.totalorder %s116, %s117
      %p131 = scmp.eq.s32.totalorder %s19, 1
      %p132 = por %p130, %p131
      %p134 = scmp.ne.s32.totalorder %s117, %s133
      %p135 = scmp.eq.s32.totalorder %s19, 0
      %p136 = por %p134, %p135
      %s137 = ssub.s32 %s21, %s28
      %s138 = ssub.s32 %s20, %s32
      %s139 = sor.u32 %s137, %s138
      %p140 = scmp.eq.s32.totalorder %s139, 0
      %s142 = sadd.s32 %s141, 1
      %s143 = scalar_select %p140, %s141, %s142
      %p146 = pneg %p140
      %p147 = scmp.eq.s32.totalorder %s13, 1
      %p148 = por %p146, %p147
      %p149 = scmp.ne.s32.totalorder %s141, %s144
      %p150 = scmp.eq.s32.totalorder %s13, 0
      %p151 = por %p149, %p150
      %p152 = scmp.ne.s32.totalorder %s141, %s144
      %p153 = scmp.eq.s32.totalorder %s18, 1
      %p154 = por %p152, %p153
      %p155 = scmp.ne.s32.totalorder %s144, %s145
      %p156 = scmp.eq.s32.totalorder %s18, 0
      %p157 = por %p155, %p156
      %p158 = scmp.ne.s32.totalorder %s144, %s145
      %p159 = scmp.eq.s32.totalorder %s19, 1
      %p160 = por %p158, %p159
      %p162 = scmp.ne.s32.totalorder %s145, %s161
      %p163 = scmp.eq.s32.totalorder %s19, 0
      %p164 = por %p162, %p163
      %p165 = scmp.le.s32.totalorder 1, %s13
      %p166 = scmp.lt.s32.totalorder %s13, 3
      %p167 = pnand %p165, %p166
      %p168 = pneg %p167
      // Predicated region
      $region9: #{tpu_custom_call.1} parent=5 // pred_check
        _
      $region10: #{tpu_custom_call.1} parent=5 // pred_check_branch
        %170 = sbr.rel (%p167) target = $region12
      $region11: #{tpu_custom_call.1} parent=5 // pred_region
        %s171 = ssub.s32 %s13, 1
        // Predicated region
        $region13: #{tpu_custom_call.1} parent=11 // pred_check
          %p172 = pneg %p77
        $region14: #{tpu_custom_call.1} parent=11 // pred_check_branch
          %174 = sbr.rel (%p172) target = $region16
        $region15: #{tpu_custom_call.1} parent=11 // pred_region
          %p175 = scmp.lt.s32.totalorder %s22, 0
          %s176 = scalar_select %p175, %s22, 0
          %s177 = smul.addr %s176, 2
          %s178 = scalar_lea.vmem %s1, %s177
        $region16: #{tpu_custom_call.1} parent=11 // pred_fallthru
          _
        // Predicated region
        $region17: #{tpu_custom_call.1} parent=11 // pred_check
          %p179 = pneg %p103
        $region18: #{tpu_custom_call.1} parent=11 // pred_check_branch
          %181 = sbr.rel (%p179) target = $region20
        $region19: #{tpu_custom_call.1} parent=11 // pred_region
          %p182 = scmp.lt.s32.totalorder %s22, 0
          %s183 = scalar_select %p182, %s22, 0
          %s184 = scalar_lea.vmem %s2, %s183
        $region20: #{tpu_custom_call.1} parent=11 // pred_fallthru
          _
        // Predicated region
        $region21: #{tpu_custom_call.1} parent=11 // pred_check
          %p185 = pneg %p129
        $region22: #{tpu_custom_call.1} parent=11 // pred_check_branch
          %187 = sbr.rel (%p185) target = $region24
        $region23: #{tpu_custom_call.1} parent=11 // pred_region
          %p188 = scmp.lt.s32.totalorder %s22, 0
          %s189 = scalar_select %p188, %s22, 0
          %s190 = scalar_lea.vmem %s3, %s189
        $region24: #{tpu_custom_call.1} parent=11 // pred_fallthru
          _
      $region12: #{tpu_custom_call.1} parent=5 // pred_fallthru
        _
      %p191 = scmp.lt.s32.totalorder %s13, 2
      // Predicated region
      $region25: #{tpu_custom_call.1} parent=5 // pred_check
        %p192 = pneg %p191
      $region26: #{tpu_custom_call.1} parent=5 // pred_check_branch
        %194 = sbr.rel (%p192) target = $region28
      $region27: #{tpu_custom_call.1} parent=5 // pred_region
        // Predicated region
        $region29: #{tpu_custom_call.1} parent=27 // pred_check
          %p195 = pneg %p45
        $region30: #{tpu_custom_call.1} parent=27 // pred_check_branch
          %197 = sbr.rel (%p195) target = $region32
        $region31: #{tpu_custom_call.1} parent=27 // pred_region
          %p198 = scmp.lt.s32.totalorder %s21, 1
          %s199 = scalar_select %p198, %s21, 1
          %s200 = smul.addr %s199, 54
          %s201 = smul.addr %s200, 4
          %s202 = scalar_lea.vmem %s0, %s201
        $region32: #{tpu_custom_call.1} parent=27 // pred_fallthru
          _
      $region28: #{tpu_custom_call.1} parent=5 // pred_fallthru
        _
      %p203 = scmp.le.s32.totalorder 1, %s13
      %p204 = scmp.lt.s32.totalorder %s13, 3
      %p205 = pnand %p203, %p204
      %p206 = pneg %p205
      // Predicated region
      $region33: #{tpu_custom_call.1} parent=5 // pred_check
        _
      $region34: #{tpu_custom_call.1} parent=5 // pred_check_branch
        %208 = sbr.rel (%p205) target = $region36
      $region35: #{tpu_custom_call.1} parent=5 // pred_region
        %s209 = ssub.s32 %s13, 1
        %p210 = scmp.lt.s32.totalorder %s23, 1
        %s211 = scalar_select %p210, %s23, 1
        %s212 = smul.addr %s211, 54
        %s213 = smul.addr %s212, 4
        %s214 = scalar_lea.vmem %s0, %s213
        %p215 = pneg %p51
        %p216 = pneg %p48
        %p217 = scmp.lt.s32.totalorder %s22, 0
        %s218 = scalar_select %p217, %s22, 0
        %s219 = smul.addr %s218, 2
        %s220 = scalar_lea.vmem %s1, %s219
        %p221 = pneg %p77
        %p222 = pneg %p74
        %p223 = scmp.lt.s32.totalorder %s22, 0
        %s224 = scalar_select %p223, %s22, 0
        %s225 = scalar_lea.vmem %s2, %s224
        %p226 = pneg %p103
        %p227 = pneg %p100
        %p228 = scmp.lt.s32.totalorder %s22, 0
        %s229 = scalar_select %p228, %s22, 0
        %s230 = scalar_lea.vmem %s3, %s229
        %p231 = pneg %p129
        %p232 = pneg %p126
        %p233 = pneg %p157
        %p234 = pneg %p154
        %s235 = sand.u32 %s144, 1
        %s236 = scalar_lea.sflag [#allocation3], %s235
        %s237 = sand.u32 %s144, 1
        %s238 = smul.addr %s237, 128
        %s239 = scalar_lea.vmem [#allocation2], %s238
        %p240 = scmp.lt.s32.totalorder %s23, 1
        %s241 = scalar_select %p240, %s23, 1
        %s242 = smul.addr %s241, 54
        %s243 = smul.addr %s242, 4
        %s244 = scalar_lea.vmem %s0, %s243
        %p245 = scmp.lt.s32.totalorder %s22, 0
        %s246 = scalar_select %p245, %s22, 0
        %s247 = smul.addr %s246, 2
        %s248 = scalar_lea.vmem %s1, %s247
        %p249 = scmp.lt.s32.totalorder %s22, 0
        %s250 = scalar_select %p249, %s22, 0
        %s251 = scalar_lea.vmem %s2, %s250
        %p252 = scmp.lt.s32.totalorder %s22, 0
        %s253 = scalar_select %p252, %s22, 0
        %s254 = scalar_lea.vmem %s3, %s253
        %v256 = vld [vmem:[%s244] sm:$0xf]
        %v257 = vld [vmem:[%s244 + $0x4] sm:$0xf]
        %v258 = vld [vmem:[%s244 + $0x8] sm:$0x1]
        %v259 = vld [vmem:[%s244 + $0xc] sm:$0xf]
        %v260 = vld [vmem:[%s244 + $0x10] sm:$0xf]
        %v261 = vld [vmem:[%s244 + $0x14] sm:$0x1]
        %v262 = vld [vmem:[%s244 + $0x18] sm:$0xf]
        %v263 = vld [vmem:[%s244 + $0x1c] sm:$0xf]
        %v264 = vld [vmem:[%s244 + $0x20] sm:$0x1]
        %v265 = vld [vmem:[%s244 + $0x24] sm:$0xf]
        %v266 = vld [vmem:[%s244 + $0x28] sm:$0xf]
        %v267 = vld [vmem:[%s244 + $0x2c] sm:$0x1]
        %v268 = vld [vmem:[%s244 + $0x30] sm:$0xf]
        %v269 = vld [vmem:[%s244 + $0x34] sm:$0xf]
        %v270 = vld [vmem:[%s244 + $0x38] sm:$0x1]
        %v271 = vld [vmem:[%s244 + $0x3c] sm:$0xf]
        %v272 = vld [vmem:[%s244 + $0x40] sm:$0xf]
        %v273 = vld [vmem:[%s244 + $0x44] sm:$0x1]
        %v274 = vld [vmem:[%s244 + $0x48] sm:$0xf]
        %v275 = vld [vmem:[%s244 + $0x4c] sm:$0xf]
        %v276 = vld [vmem:[%s244 + $0x50] sm:$0x1]
        %v277 = vld [vmem:[%s244 + $0x54] sm:$0xf]
        %v278 = vld [vmem:[%s244 + $0x58] sm:$0xf]
        %v279 = vld [vmem:[%s244 + $0x5c] sm:$0x1]
        %v280 = vld [vmem:[%s244 + $0x60] sm:$0xf]
        %v281 = vld [vmem:[%s244 + $0x64] sm:$0xf]
        %v282 = vld [vmem:[%s244 + $0x68] sm:$0x1]
        %v283 = vld [vmem:[%s244 + $0x6c] sm:$0xf]
        %v284 = vld [vmem:[%s244 + $0x70] sm:$0xf]
        %v285 = vld [vmem:[%s244 + $0x74] sm:$0x1]
        %v286 = vld [vmem:[%s244 + $0x78] sm:$0xf]
        %v287 = vld [vmem:[%s244 + $0x7c] sm:$0xf]
        %v288 = vld [vmem:[%s244 + $0x80] sm:$0x1]
        %v289 = vld [vmem:[%s244 + $0x84] sm:$0xf]
        %v290 = vld [vmem:[%s244 + $0x88] sm:$0xf]
        %v291 = vld [vmem:[%s244 + $0x8c] sm:$0x1]
        %v292 = vld [vmem:[%s244 + $0x90] sm:$0xf]
        %v293 = vld [vmem:[%s244 + $0x94] sm:$0xf]
        %v294 = vld [vmem:[%s244 + $0x98] sm:$0x1]
        %v295 = vld [vmem:[%s244 + $0x9c] sm:$0xf]
        %v296 = vld [vmem:[%s244 + $0xa0] sm:$0xf]
        %v297 = vld [vmem:[%s244 + $0xa4] sm:$0x1]
        %v298 = vld [vmem:[%s244 + $0xa8] sm:$0xf]
        %v299 = vld [vmem:[%s244 + $0xac] sm:$0xf]
        %v300 = vld [vmem:[%s244 + $0xb0] sm:$0x1]
        %v301 = vld [vmem:[%s244 + $0xb4] sm:$0xf]
        %v302 = vld [vmem:[%s244 + $0xb8] sm:$0xf]
        %v303 = vld [vmem:[%s244 + $0xbc] sm:$0x1]
        %v304 = vld [vmem:[%s244 + $0xc0] sm:$0xf]
        %v305 = vld [vmem:[%s244 + $0xc4] sm:$0xf]
        %v306 = vld [vmem:[%s244 + $0xc8] sm:$0x1]
        %v307 = vld [vmem:[%s244 + $0xcc] sm:$0xf]
        %v308 = vld [vmem:[%s244 + $0xd0] sm:$0xf]
        %v309 = vld [vmem:[%s244 + $0xd4] sm:$0x1]
        %v310 = vld [vmem:[%s248] sm:$0x3]
        %vm311 = vsmask.f32 3328
        %vm312 = vsmask.f32 7440
        %vm313 = vmor %vm311, %vm312
        %v315 = vshrl.u32 %v256, 16
        %v317 = vrot.slane %v315, 4
        %v318 = vshll.u32 %v256, 16
        %v320 = vrot.slane %v318, 5
        %v321 = vor.u32 %v317, %v320
        %v322 = vrot.slane %v321, 4
        %v324 = vshll.u32 %v257, 16
        %v326 = vrot.slane %v324, 5
        %v327 = vsel %vm313, %v322, %v326
        %v328 = vshrl.u32 %v257, 16
        %v330 = vrot.slane %v328, 4
        %v331 = vor.u32 %v330, %v326
        %v332 = vrot.slane %v331, 4
        %v334 = vshll.u32 %v258, 16
        %v336 = vrot.slane %v334, 5
        %v337 = vsel %vm313, %v332, %v336
        %v339 = vshrl.u32 %v259, 16
        %v341 = vrot.slane %v339, 4
        %v342 = vshll.u32 %v259, 16
        %v344 = vrot.slane %v342, 5
        %v345 = vor.u32 %v341, %v344
        %v346 = vrot.slane %v345, 4
        %v348 = vshll.u32 %v260, 16
        %v350 = vrot.slane %v348, 5
        %v351 = vsel %vm313, %v346, %v350
        %v352 = vshrl.u32 %v260, 16
        %v354 = vrot.slane %v352, 4
        %v355 = vor.u32 %v354, %v350
        %v356 = vrot.slane %v355, 4
        %v358 = vshll.u32 %v261, 16
        %v360 = vrot.slane %v358, 5
        %v361 = vsel %vm313, %v356, %v360
        %v363 = vshrl.u32 %v262, 16
        %v365 = vrot.slane %v363, 4
        %v366 = vshll.u32 %v262, 16
        %v368 = vrot.slane %v366, 5
        %v369 = vor.u32 %v365, %v368
        %v370 = vrot.slane %v369, 4
        %v372 = vshll.u32 %v263, 16
        %v374 = vrot.slane %v372, 5
        %v375 = vsel %vm313, %v370, %v374
        %v376 = vshrl.u32 %v263, 16
        %v378 = vrot.slane %v376, 4
        %v379 = vor.u32 %v378, %v374
        %v380 = vrot.slane %v379, 4
        %v382 = vshll.u32 %v264, 16
        %v384 = vrot.slane %v382, 5
        %v385 = vsel %vm313, %v380, %v384
        %v387 = vshrl.u32 %v265, 16
        %v389 = vrot.slane %v387, 4
        %v390 = vshll.u32 %v265, 16
        %v392 = vrot.slane %v390, 5
        %v393 = vor.u32 %v389, %v392
        %v394 = vrot.slane %v393, 4
        %v396 = vshll.u32 %v266, 16
        %v398 = vrot.slane %v396, 5
        %v399 = vsel %vm313, %v394, %v398
        %v400 = vshrl.u32 %v266, 16
        %v402 = vrot.slane %v400, 4
        %v403 = vor.u32 %v402, %v398
        %v404 = vrot.slane %v403, 4
        %v406 = vshll.u32 %v267, 16
        %v408 = vrot.slane %v406, 5
        %v409 = vsel %vm313, %v404, %v408
        %v411 = vshrl.u32 %v268, 16
        %v413 = vrot.slane %v411, 4
        %v414 = vshll.u32 %v268, 16
        %v416 = vrot.slane %v414, 5
        %v417 = vor.u32 %v413, %v416
        %v418 = vrot.slane %v417, 4
        %v420 = vshll.u32 %v269, 16
        %v422 = vrot.slane %v420, 5
        %v423 = vsel %vm313, %v418, %v422
        %v424 = vshrl.u32 %v269, 16
        %v426 = vrot.slane %v424, 4
        %v427 = vor.u32 %v426, %v422
        %v428 = vrot.slane %v427, 4
        %v430 = vshll.u32 %v270, 16
        %v432 = vrot.slane %v430, 5
        %v433 = vsel %vm313, %v428, %v432
        %v435 = vshrl.u32 %v271, 16
        %v437 = vrot.slane %v435, 4
        %v438 = vshll.u32 %v271, 16
        %v440 = vrot.slane %v438, 5
        %v441 = vor.u32 %v437, %v440
        %v442 = vrot.slane %v441, 4
        %v444 = vshll.u32 %v272, 16
        %v446 = vrot.slane %v444, 5
        %v447 = vsel %vm313, %v442, %v446
        %v448 = vshrl.u32 %v272, 16
        %v450 = vrot.slane %v448, 4
        %v451 = vor.u32 %v450, %v446
        %v452 = vrot.slane %v451, 4
        %v454 = vshll.u32 %v273, 16
        %v456 = vrot.slane %v454, 5
        %v457 = vsel %vm313, %v452, %v456
        %v459 = vshrl.u32 %v274, 16
        %v461 = vrot.slane %v459, 4
        %v462 = vshll.u32 %v274, 16
        %v464 = vrot.slane %v462, 5
        %v465 = vor.u32 %v461, %v464
        %v466 = vrot.slane %v465, 4
        %v468 = vshll.u32 %v275, 16
        %v470 = vrot.slane %v468, 5
        %v471 = vsel %vm313, %v466, %v470
        %v472 = vshrl.u32 %v275, 16
        %v474 = vrot.slane %v472, 4
        %v475 = vor.u32 %v474, %v470
        %v476 = vrot.slane %v475, 4
        %v478 = vshll.u32 %v276, 16
        %v480 = vrot.slane %v478, 5
        %v481 = vsel %vm313, %v476, %v480
        %v483 = vshrl.u32 %v277, 16
        %v485 = vrot.slane %v483, 4
        %v486 = vshll.u32 %v277, 16
        %v488 = vrot.slane %v486, 5
        %v489 = vor.u32 %v485, %v488
        %v490 = vrot.slane %v489, 4
        %v492 = vshll.u32 %v278, 16
        %v494 = vrot.slane %v492, 5
        %v495 = vsel %vm313, %v490, %v494
        %v496 = vshrl.u32 %v278, 16
        %v498 = vrot.slane %v496, 4
        %v499 = vor.u32 %v498, %v494
        %v500 = vrot.slane %v499, 4
        %v502 = vshll.u32 %v279, 16
        %v504 = vrot.slane %v502, 5
        %v505 = vsel %vm313, %v500, %v504
        %v507 = vshrl.u32 %v280, 16
        %v509 = vrot.slane %v507, 4
        %v510 = vshll.u32 %v280, 16
        %v512 = vrot.slane %v510, 5
        %v513 = vor.u32 %v509, %v512
        %v514 = vrot.slane %v513, 4
        %v516 = vshll.u32 %v281, 16
        %v518 = vrot.slane %v516, 5
        %v519 = vsel %vm313, %v514, %v518
        %v520 = vshrl.u32 %v281, 16
        %v522 = vrot.slane %v520, 4
        %v523 = vor.u32 %v522, %v518
        %v524 = vrot.slane %v523, 4
        %v526 = vshll.u32 %v282, 16
        %v528 = vrot.slane %v526, 5
        %v529 = vsel %vm313, %v524, %v528
        %v531 = vshrl.u32 %v283, 16
        %v533 = vrot.slane %v531, 4
        %v534 = vshll.u32 %v283, 16
        %v536 = vrot.slane %v534, 5
        %v537 = vor.u32 %v533, %v536
        %v538 = vrot.slane %v537, 4
        %v540 = vshll.u32 %v284, 16
        %v542 = vrot.slane %v540, 5
        %v543 = vsel %vm313, %v538, %v542
        %v544 = vshrl.u32 %v284, 16
        %v546 = vrot.slane %v544, 4
        %v547 = vor.u32 %v546, %v542
        %v548 = vrot.slane %v547, 4
        %v550 = vshll.u32 %v285, 16
        %v552 = vrot.slane %v550, 5
        %v553 = vsel %vm313, %v548, %v552
        %v555 = vshrl.u32 %v286, 16
        %v557 = vrot.slane %v555, 4
        %v558 = vshll.u32 %v286, 16
        %v560 = vrot.slane %v558, 5
        %v561 = vor.u32 %v557, %v560
        %v562 = vrot.slane %v561, 4
        %v564 = vshll.u32 %v287, 16
        %v566 = vrot.slane %v564, 5
        %v567 = vsel %vm313, %v562, %v566
        %v568 = vshrl.u32 %v287, 16
        %v570 = vrot.slane %v568, 4
        %v571 = vor.u32 %v570, %v566
        %v572 = vrot.slane %v571, 4
        %v574 = vshll.u32 %v288, 16
        %v576 = vrot.slane %v574, 5
        %v577 = vsel %vm313, %v572, %v576
        %v579 = vshrl.u32 %v289, 16
        %v581 = vrot.slane %v579, 4
        %v582 = vshll.u32 %v289, 16
        %v584 = vrot.slane %v582, 5
        %v585 = vor.u32 %v581, %v584
        %v586 = vrot.slane %v585, 4
        %v588 = vshll.u32 %v290, 16
        %v590 = vrot.slane %v588, 5
        %v591 = vsel %vm313, %v586, %v590
        %v592 = vshrl.u32 %v290, 16
        %v594 = vrot.slane %v592, 4
        %v595 = vor.u32 %v594, %v590
        %v596 = vrot.slane %v595, 4
        %v598 = vshll.u32 %v291, 16
        %v600 = vrot.slane %v598, 5
        %v601 = vsel %vm313, %v596, %v600
        %v603 = vshrl.u32 %v292, 16
        %v605 = vrot.slane %v603, 4
        %v606 = vshll.u32 %v292, 16
        %v608 = vrot.slane %v606, 5
        %v609 = vor.u32 %v605, %v608
        %v610 = vrot.slane %v609, 4
        %v612 = vshll.u32 %v293, 16
        %v614 = vrot.slane %v612, 5
        %v615 = vsel %vm313, %v610, %v614
        %v616 = vshrl.u32 %v293, 16
        %v618 = vrot.slane %v616, 4
        %v619 = vor.u32 %v618, %v614
        %v620 = vrot.slane %v619, 4
        %v622 = vshll.u32 %v294, 16
        %v624 = vrot.slane %v622, 5
        %v625 = vsel %vm313, %v620, %v624
        %v627 = vshrl.u32 %v295, 16
        %v629 = vrot.slane %v627, 4
        %v630 = vshll.u32 %v295, 16
        %v632 = vrot.slane %v630, 5
        %v633 = vor.u32 %v629, %v632
        %v634 = vrot.slane %v633, 4
        %v636 = vshll.u32 %v296, 16
        %v638 = vrot.slane %v636, 5
        %v639 = vsel %vm313, %v634, %v638
        %v640 = vshrl.u32 %v296, 16
        %v642 = vrot.slane %v640, 4
        %v643 = vor.u32 %v642, %v638
        %v644 = vrot.slane %v643, 4
        %v646 = vshll.u32 %v297, 16
        %v648 = vrot.slane %v646, 5
        %v649 = vsel %vm313, %v644, %v648
        %v651 = vshrl.u32 %v298, 16
        %v653 = vrot.slane %v651, 4
        %v654 = vshll.u32 %v298, 16
        %v656 = vrot.slane %v654, 5
        %v657 = vor.u32 %v653, %v656
        %v658 = vrot.slane %v657, 4
        %v660 = vshll.u32 %v299, 16
        %v662 = vrot.slane %v660, 5
        %v663 = vsel %vm313, %v658, %v662
        %v664 = vshrl.u32 %v299, 16
        %v666 = vrot.slane %v664, 4
        %v667 = vor.u32 %v666, %v662
        %v668 = vrot.slane %v667, 4
        %v670 = vshll.u32 %v300, 16
        %v672 = vrot.slane %v670, 5
        %v673 = vsel %vm313, %v668, %v672
        %v675 = vshrl.u32 %v301, 16
        %v677 = vrot.slane %v675, 4
        %v678 = vshll.u32 %v301, 16
        %v680 = vrot.slane %v678, 5
        %v681 = vor.u32 %v677, %v680
        %v682 = vrot.slane %v681, 4
        %v684 = vshll.u32 %v302, 16
        %v686 = vrot.slane %v684, 5
        %v687 = vsel %vm313, %v682, %v686
        %v688 = vshrl.u32 %v302, 16
        %v690 = vrot.slane %v688, 4
        %v691 = vor.u32 %v690, %v686
        %v692 = vrot.slane %v691, 4
        %v694 = vshll.u32 %v303, 16
        %v696 = vrot.slane %v694, 5
        %v697 = vsel %vm313, %v692, %v696
        %s698 = scalar_lea.vmem %s248, 2
        %v699 = vld [vmem:[%s698] sm:$0x3]
        %v700 = vunpack.c.l.b16 %v327
        %v701 = vunpack.c.l.b16 %v337
        %v702 = vunpack.c.l.b16 %v351
        %v703 = vunpack.c.l.b16 %v361
        %v704 = vunpack.c.l.b16 %v375
        %v705 = vunpack.c.l.b16 %v385
        %v706 = vunpack.c.l.b16 %v399
        %v707 = vunpack.c.l.b16 %v409
        %v708 = vunpack.c.l.b16 %v423
        %v709 = vunpack.c.l.b16 %v433
        %v710 = vunpack.c.l.b16 %v447
        %v711 = vunpack.c.l.b16 %v457
        %v712 = vunpack.c.l.b16 %v471
        %v713 = vunpack.c.l.b16 %v481
        %v714 = vunpack.c.l.b16 %v495
        %v715 = vunpack.c.l.b16 %v505
        %v716 = vunpack.c.l.b16 %v519
        %v717 = vunpack.c.l.b16 %v529
        %v718 = vunpack.c.l.b16 %v543
        %v719 = vunpack.c.l.b16 %v553
        %v720 = vunpack.c.l.b16 %v567
        %v721 = vunpack.c.l.b16 %v577
        %v722 = vunpack.c.l.b16 %v591
        %v723 = vunpack.c.l.b16 %v601
        %v724 = vunpack.c.l.b16 %v615
        %v725 = vunpack.c.l.b16 %v625
        %v726 = vunpack.c.l.b16 %v639
        %v727 = vunpack.c.l.b16 %v649
        %v728 = vunpack.c.l.b16 %v663
        %v729 = vunpack.c.l.b16 %v673
        %v730 = vunpack.c.l.b16 %v687
        %v731 = vunpack.c.l.b16 %v697
        %v732 = vpack.c.b16 %v701, %v700
        %v733 = vpack.c.b16 %v703, %v702
        %v734 = vpack.c.b16 %v705, %v704
        %v735 = vpack.c.b16 %v707, %v706
        %v736 = vpack.c.b16 %v709, %v708
        %v737 = vpack.c.b16 %v711, %v710
        %v738 = vpack.c.b16 %v713, %v712
        %v739 = vpack.c.b16 %v715, %v714
        %v740 = vpack.c.b16 %v717, %v716
        %v741 = vpack.c.b16 %v719, %v718
        %v742 = vpack.c.b16 %v721, %v720
        %v743 = vpack.c.b16 %v723, %v722
        %v744 = vpack.c.b16 %v725, %v724
        %v745 = vpack.c.b16 %v727, %v726
        %v746 = vpack.c.b16 %v729, %v728
        %v747 = vpack.c.b16 %v731, %v730
        %vm748 = vcmask 31744
        %v750 = vsel %vm748, %v732, 0
        %v753 = vsel %vm748, %v733, 0
        %v756 = vsel %vm748, %v734, 0
        %v759 = vsel %vm748, %v735, 0
        %v762 = vsel %vm748, %v736, 0
        %v765 = vsel %vm748, %v737, 0
        %v768 = vsel %vm748, %v738, 0
        %v771 = vsel %vm748, %v739, 0
        %v774 = vsel %vm748, %v740, 0
        %v777 = vsel %vm748, %v741, 0
        %v780 = vsel %vm748, %v742, 0
        %v783 = vsel %vm748, %v743, 0
        %v786 = vsel %vm748, %v744, 0
        %v789 = vsel %vm748, %v745, 0
        %v792 = vsel %vm748, %v746, 0
        %v795 = vsel %vm748, %v747, 0
        %vm797 = vcmask 1041408
        %v799 = vsel %vm797, %v699, 0
        %801 = vmatprep.subr.bf16.mxu0 0
        %802 = vmatpush1.bf16.msra.mxu0 %v799
        %803 = vmatprep.subr.bf16.mxu0 0
        %804 = vmatpush1.bf16.msra.mxu0 0
        %805 = vmatprep.subr.bf16.mxu0 0
        %806 = vmatpush1.bf16.msra.mxu0 0
        %807 = vmatprep.subr.bf16.mxu0 0
        %808 = vmatpush1.bf16.msra.mxu0 0
        %809 = vmatprep.subr.bf16.mxu0 0
        %810 = vmatpush1.bf16.msra.mxu0 0
        %811 = vmatprep.subr.bf16.mxu0 0
        %812 = vmatpush1.bf16.msra.mxu0 0
        %813 = vmatprep.subr.bf16.mxu0 0
        %814 = vmatpush1.bf16.msra.mxu0 0
        %815 = vmatprep.subr.bf16.mxu0 0
        %816 = vmatpush1.bf16.msra.mxu0 0
        %817 = vmatprep.subr.bf16.mxu0 0
        %818 = vmatpush1.bf16.msra.mxu0 0
        %819 = vmatprep.subr.bf16.mxu0 0
        %820 = vmatpush1.bf16.msra.mxu0 0
        %821 = vmatprep.subr.bf16.mxu0 0
        %822 = vmatpush1.bf16.msra.mxu0 0
        %823 = vmatprep.subr.bf16.mxu0 0
        %824 = vmatpush1.bf16.msra.mxu0 0
        %825 = vmatprep.subr.bf16.mxu0 0
        %826 = vmatpush1.bf16.msra.mxu0 0
        %827 = vmatprep.subr.bf16.mxu0 0
        %828 = vmatpush1.bf16.msra.mxu0 0
        %829 = vmatprep.subr.bf16.mxu0 0
        %830 = vmatpush1.bf16.msra.mxu0 0
        %831 = vmatprep.subr.bf16.mxu0 0
        %832 = vmatpush1.bf16.msra.mxu0 0
        %833 = vmatprep.mubr.bf16.mxu0 0
        %834 = vmatmul.mubr.bf16.gmra.mrb[0].mxu0 %v750
        %v835 = vpop.f32.mrb[0].mxu0
        %v836 = vadd.f32 0.0, %v835
        %v837 = vpop.f32.mrb[0].mxu0
        %v838 = vpop.f32.mrb[0].mxu0
        %v839 = vadd.f32 0.0, %v838
        %v840 = vpop.f32.mrb[0].mxu0
        %841 = vmatprep.mubr.bf16.mxu0 0
        %842 = vmatmul.mubr.bf16.gmra.mrb[0].mxu0 %v753
        %v843 = vpop.f32.mrb[0].mxu0
        %v844 = vadd.f32 0.0, %v843
        %v845 = vpop.f32.mrb[0].mxu0
        %v846 = vpop.f32.mrb[0].mxu0
        %v847 = vadd.f32 0.0, %v846
        %v848 = vpop.f32.mrb[0].mxu0
        %849 = vmatprep.mubr.bf16.mxu0 0
        %850 = vmatmul.mubr.bf16.gmra.mrb[0].mxu0 %v756
        %v851 = vpop.f32.mrb[0].mxu0
        %v852 = vadd.f32 0.0, %v851
        %v853 = vpop.f32.mrb[0].mxu0
        %v854 = vpop.f32.mrb[0].mxu0
        %v855 = vadd.f32 0.0, %v854
        %v856 = vpop.f32.mrb[0].mxu0
        %857 = vmatprep.mubr.bf16.mxu0 0
        %858 = vmatmul.mubr.bf16.gmra.mrb[0].mxu0 %v759
        %v859 = vpop.f32.mrb[0].mxu0
        %v860 = vadd.f32 0.0, %v859
        %v861 = vpop.f32.mrb[0].mxu0
        %v862 = vpop.f32.mrb[0].mxu0
        %v863 = vadd.f32 0.0, %v862
        %v864 = vpop.f32.mrb[0].mxu0
        %865 = vmatprep.mubr.bf16.mxu0 0
        %866 = vmatmul.mubr.bf16.gmra.mrb[0].mxu0 %v762
        %v867 = vpop.f32.mrb[0].mxu0
        %v868 = vadd.f32 0.0, %v867
        %v869 = vpop.f32.mrb[0].mxu0
        %v870 = vpop.f32.mrb[0].mxu0
        %v871 = vadd.f32 0.0, %v870
        %v872 = vpop.f32.mrb[0].mxu0
        %873 = vmatprep.mubr.bf16.mxu0 0
        %874 = vmatmul.mubr.bf16.gmra.mrb[0].mxu0 %v765
        %v875 = vpop.f32.mrb[0].mxu0
        %v876 = vadd.f32 0.0, %v875
        %v877 = vpop.f32.mrb[0].mxu0
        %v878 = vpop.f32.mrb[0].mxu0
        %v879 = vadd.f32 0.0, %v878
        %v880 = vpop.f32.mrb[0].mxu0
        %881 = vmatprep.mubr.bf16.mxu0 0
        %882 = vmatmul.mubr.bf16.gmra.mrb[0].mxu0 %v768
        %v883 = vpop.f32.mrb[0].mxu0
        %v884 = vadd.f32 0.0, %v883
        %v885 = vpop.f32.mrb[0].mxu0
        %v886 = vpop.f32.mrb[0].mxu0
        %v887 = vadd.f32 0.0, %v886
        %v888 = vpop.f32.mrb[0].mxu0
        %889 = vmatprep.mubr.bf16.mxu0 0
        %890 = vmatmul.mubr.bf16.gmra.mrb[0].mxu0 %v771
        %v891 = vpop.f32.mrb[0].mxu0
        %v892 = vadd.f32 0.0, %v891
        %v893 = vpop.f32.mrb[0].mxu0
        %v894 = vpop.f32.mrb[0].mxu0
        %v895 = vadd.f32 0.0, %v894
        %v896 = vpop.f32.mrb[0].mxu0
        %897 = vmatprep.mubr.bf16.mxu0 0
        %898 = vmatmul.mubr.bf16.gmra.mrb[0].mxu0 %v774
        %v899 = vpop.f32.mrb[0].mxu0
        %v900 = vadd.f32 0.0, %v899
        %v901 = vpop.f32.mrb[0].mxu0
        %v902 = vpop.f32.mrb[0].mxu0
        %v903 = vadd.f32 0.0, %v902
        %v904 = vpop.f32.mrb[0].mxu0
        %905 = vmatprep.mubr.bf16.mxu0 0
        %906 = vmatmul.mubr.bf16.gmra.mrb[0].mxu0 %v777
        %v907 = vpop.f32.mrb[0].mxu0
        %v908 = vadd.f32 0.0, %v907
        %v909 = vpop.f32.mrb[0].mxu0
        %v910 = vpop.f32.mrb[0].mxu0
        %v911 = vadd.f32 0.0, %v910
        %v912 = vpop.f32.mrb[0].mxu0
        %913 = vmatprep.mubr.bf16.mxu0 0
        %914 = vmatmul.mubr.bf16.gmra.mrb[0].mxu0 %v780
        %v915 = vpop.f32.mrb[0].mxu0
        %v916 = vadd.f32 0.0, %v915
        %v917 = vpop.f32.mrb[0].mxu0
        %v918 = vpop.f32.mrb[0].mxu0
        %v919 = vadd.f32 0.0, %v918
        %v920 = vpop.f32.mrb[0].mxu0
        %921 = vmatprep.mubr.bf16.mxu0 0
        %922 = vmatmul.mubr.bf16.gmra.mrb[0].mxu0 %v783
        %v923 = vpop.f32.mrb[0].mxu0
        %v924 = vadd.f32 0.0, %v923
        %v925 = vpop.f32.mrb[0].mxu0
        %v926 = vpop.f32.mrb[0].mxu0
        %v927 = vadd.f32 0.0, %v926
        %v928 = vpop.f32.mrb[0].mxu0
        %929 = vmatprep.mubr.bf16.mxu0 0
        %930 = vmatmul.mubr.bf16.gmra.mrb[0].mxu0 %v786
        %v931 = vpop.f32.mrb[0].mxu0
        %v932 = vadd.f32 0.0, %v931
        %v933 = vpop.f32.mrb[0].mxu0
        %v934 = vpop.f32.mrb[0].mxu0
        %v935 = vadd.f32 0.0, %v934
        %v936 = vpop.f32.mrb[0].mxu0
        %937 = vmatprep.mubr.bf16.mxu0 0
        %938 = vmatmul.mubr.bf16.gmra.mrb[0].mxu0 %v789
        %v939 = vpop.f32.mrb[0].mxu0
        %v940 = vadd.f32 0.0, %v939
        %v941 = vpop.f32.mrb[0].mxu0
        %v942 = vpop.f32.mrb[0].mxu0
        %v943 = vadd.f32 0.0, %v942
        %v944 = vpop.f32.mrb[0].mxu0
        %945 = vmatprep.mubr.bf16.mxu0 0
        %946 = vmatmul.mubr.bf16.gmra.mrb[0].mxu0 %v792
        %v947 = vpop.f32.mrb[0].mxu0
        %v948 = vadd.f32 0.0, %v947
        %v949 = vpop.f32.mrb[0].mxu0
        %v950 = vpop.f32.mrb[0].mxu0
        %v951 = vadd.f32 0.0, %v950
        %v952 = vpop.f32.mrb[0].mxu0
        %953 = vmatprep.mubr.bf16.mxu0 0
        %954 = vmatmul.mubr.bf16.gmra.mrb[0].mxu0 %v795
        %v955 = vpop.f32.mrb[0].mxu0
        %v956 = vadd.f32 0.0, %v955
        %v957 = vpop.f32.mrb[0].mxu0
        %v958 = vpop.f32.mrb[0].mxu0
        %v959 = vadd.f32 0.0, %v958
        %v960 = vpop.f32.mrb[0].mxu0
        %961 = vdwg.mxu0
        %v994 = vunpack.c.l.b16 %v256
        %v995 = vunpack.c.l.b16 %v257
        %v996 = vunpack.c.l.b16 %v259
        %v997 = vunpack.c.l.b16 %v260
        %v998 = vunpack.c.l.b16 %v262
        %v999 = vunpack.c.l.b16 %v263
        %v1000 = vunpack.c.l.b16 %v265
        %v1001 = vunpack.c.l.b16 %v266
        %v1002 = vunpack.c.l.b16 %v268
        %v1003 = vunpack.c.l.b16 %v269
        %v1004 = vunpack.c.l.b16 %v271
        %v1005 = vunpack.c.l.b16 %v272
        %v1006 = vunpack.c.l.b16 %v274
        %v1007 = vunpack.c.l.b16 %v275
        %v1008 = vunpack.c.l.b16 %v277
        %v1009 = vunpack.c.l.b16 %v278
        %v1010 = vunpack.c.l.b16 %v280
        %v1011 = vunpack.c.l.b16 %v281
        %v1012 = vunpack.c.l.b16 %v283
        %v1013 = vunpack.c.l.b16 %v284
        %v1014 = vunpack.c.l.b16 %v286
        %v1015 = vunpack.c.l.b16 %v287
        %v1016 = vunpack.c.l.b16 %v289
        %v1017 = vunpack.c.l.b16 %v290
        %v1018 = vunpack.c.l.b16 %v292
        %v1019 = vunpack.c.l.b16 %v293
        %v1020 = vunpack.c.l.b16 %v295
        %v1021 = vunpack.c.l.b16 %v296
        %v1022 = vunpack.c.l.b16 %v298
        %v1023 = vunpack.c.l.b16 %v299
        %v1024 = vunpack.c.l.b16 %v301
        %v1025 = vunpack.c.l.b16 %v302
        %v1026 = vpack.c.b16 %v995, %v994
        %v1027 = vpack.c.b16 %v997, %v996
        %v1028 = vpack.c.b16 %v999, %v998
        %v1029 = vpack.c.b16 %v1001, %v1000
        %v1030 = vpack.c.b16 %v1003, %v1002
        %v1031 = vpack.c.b16 %v1005, %v1004
        %v1032 = vpack.c.b16 %v1007, %v1006
        %v1033 = vpack.c.b16 %v1009, %v1008
        %v1034 = vpack.c.b16 %v1011, %v1010
        %v1035 = vpack.c.b16 %v1013, %v1012
        %v1036 = vpack.c.b16 %v1015, %v1014
        %v1037 = vpack.c.b16 %v1017, %v1016
        %v1038 = vpack.c.b16 %v1019, %v1018
        %v1039 = vpack.c.b16 %v1021, %v1020
        %v1040 = vpack.c.b16 %v1023, %v1022
        %v1041 = vpack.c.b16 %v1025, %v1024
        %v1043 = vsel %vm748, %v1026, 0
        %v1046 = vsel %vm748, %v1027, 0
        %v1049 = vsel %vm748, %v1028, 0
        %v1052 = vsel %vm748, %v1029, 0
        %v1055 = vsel %vm748, %v1030, 0
        %v1058 = vsel %vm748, %v1031, 0
        %v1061 = vsel %vm748, %v1032, 0
        %v1064 = vsel %vm748, %v1033, 0
        %v1067 = vsel %vm748, %v1034, 0
        %v1070 = vsel %vm748, %v1035, 0
        %v1073 = vsel %vm748, %v1036, 0
        %v1076 = vsel %vm748, %v1037, 0
        %v1079 = vsel %vm748, %v1038, 0
        %v1082 = vsel %vm748, %v1039, 0
        %v1085 = vsel %vm748, %v1040, 0
        %v1088 = vsel %vm748, %v1041, 0
        %v1091 = vsel %vm797, %v310, 0
        %1093 = vmatprep.subr.bf16.mxu0 0
        %1094 = vmatpush1.bf16.msra.mxu0 %v1091
        %1095 = vmatprep.subr.bf16.mxu0 0
        %1096 = vmatpush1.bf16.msra.mxu0 0
        %1097 = vmatprep.subr.bf16.mxu0 0
        %1098 = vmatpush1.bf16.msra.mxu0 0
        %1099 = vmatprep.subr.bf16.mxu0 0
        %1100 = vmatpush1.bf16.msra.mxu0 0
        %1101 = vmatprep.subr.bf16.mxu0 0
        %1102 = vmatpush1.bf16.msra.mxu0 0
        %1103 = vmatprep.subr.bf16.mxu0 0
        %1104 = vmatpush1.bf16.msra.mxu0 0
        %1105 = vmatprep.subr.bf16.mxu0 0
        %1106 = vmatpush1.bf16.msra.mxu0 0
        %1107 = vmatprep.subr.bf16.mxu0 0
        %1108 = vmatpush1.bf16.msra.mxu0 0
        %1109 = vmatprep.subr.bf16.mxu0 0
        %1110 = vmatpush1.bf16.msra.mxu0 0
        %1111 = vmatprep.subr.bf16.mxu0 0
        %1112 = vmatpush1.bf16.msra.mxu0 0
        %1113 = vmatprep.subr.bf16.mxu0 0
        %1114 = vmatpush1.bf16.msra.mxu0 0
        %1115 = vmatprep.subr.bf16.mxu0 0
        %1116 = vmatpush1.bf16.msra.mxu0 0
        %1117 = vmatprep.subr.bf16.mxu0 0
        %1118 = vmatpush1.bf16.msra.mxu0 0
        %1119 = vmatprep.subr.bf16.mxu0 0
        %1120 = vmatpush1.bf16.msra.mxu0 0
        %1121 = vmatprep.subr.bf16.mxu0 0
        %1122 = vmatpush1.bf16.msra.mxu0 0
        %1123 = vmatprep.subr.bf16.mxu0 0
        %1124 = vmatpush1.bf16.msra.mxu0 0
        %1125 = vmatprep.mubr.bf16.mxu0 0
        %1126 = vmatmul.mubr.bf16.gmra.mrb[0].mxu0 %v1043
        %v1127 = vpop.f32.mrb[0].mxu0
        %v1128 = vadd.f32 %v836, %v1127
        %v1129 = vpop.f32.mrb[0].mxu0
        %v1130 = vpop.f32.mrb[0].mxu0
        %v1131 = vadd.f32 %v839, %v1130
        %v1132 = vpop.f32.mrb[0].mxu0
        %1133 = vmatprep.mubr.bf16.mxu0 0
        %1134 = vmatmul.mubr.bf16.gmra.mrb[0].mxu0 %v1046
        %v1135 = vpop.f32.mrb[0].mxu0
        %v1136 = vadd.f32 %v844, %v1135
        %v1137 = vpop.f32.mrb[0].mxu0
        %v1138 = vpop.f32.mrb[0].mxu0
        %v1139 = vadd.f32 %v847, %v1138
        %v1140 = vpop.f32.mrb[0].mxu0
        %1141 = vmatprep.mubr.bf16.mxu0 0
        %1142 = vmatmul.mubr.bf16.gmra.mrb[0].mxu0 %v1049
        %v1143 = vpop.f32.mrb[0].mxu0
        %v1144 = vadd.f32 %v852, %v1143
        %v1145 = vpop.f32.mrb[0].mxu0
        %v1146 = vpop.f32.mrb[0].mxu0
        %v1147 = vadd.f32 %v855, %v1146
        %v1148 = vpop.f32.mrb[0].mxu0
        %1149 = vmatprep.mubr.bf16.mxu0 0
        %1150 = vmatmul.mubr.bf16.gmra.mrb[0].mxu0 %v1052
        %v1151 = vpop.f32.mrb[0].mxu0
        %v1152 = vadd.f32 %v860, %v1151
        %v1153 = vpop.f32.mrb[0].mxu0
        %v1154 = vpop.f32.mrb[0].mxu0
        %v1155 = vadd.f32 %v863, %v1154
        %v1156 = vpop.f32.mrb[0].mxu0
        %1157 = vmatprep.mubr.bf16.mxu0 0
        %1158 = vmatmul.mubr.bf16.gmra.mrb[0].mxu0 %v1055
        %v1159 = vpop.f32.mrb[0].mxu0
        %v1160 = vadd.f32 %v868, %v1159
        %v1161 = vpop.f32.mrb[0].mxu0
        %v1162 = vpop.f32.mrb[0].mxu0
        %v1163 = vadd.f32 %v871, %v1162
        %v1164 = vpop.f32.mrb[0].mxu0
        %1165 = vmatprep.mubr.bf16.mxu0 0
        %1166 = vmatmul.mubr.bf16.gmra.mrb[0].mxu0 %v1058
        %v1167 = vpop.f32.mrb[0].mxu0
        %v1168 = vadd.f32 %v876, %v1167
        %v1169 = vpop.f32.mrb[0].mxu0
        %v1170 = vpop.f32.mrb[0].mxu0
        %v1171 = vadd.f32 %v879, %v1170
        %v1172 = vpop.f32.mrb[0].mxu0
        %1173 = vmatprep.mubr.bf16.mxu0 0
        %1174 = vmatmul.mubr.bf16.gmra.mrb[0].mxu0 %v1061
        %v1175 = vpop.f32.mrb[0].mxu0
        %v1176 = vadd.f32 %v884, %v1175
        %v1177 = vpop.f32.mrb[0].mxu0
        %v1178 = vpop.f32.mrb[0].mxu0
        %v1179 = vadd.f32 %v887, %v1178
        %v1180 = vpop.f32.mrb[0].mxu0
        %1181 = vmatprep.mubr.bf16.mxu0 0
        %1182 = vmatmul.mubr.bf16.gmra.mrb[0].mxu0 %v1064
        %v1183 = vpop.f32.mrb[0].mxu0
        %v1184 = vadd.f32 %v892, %v1183
        %v1185 = vpop.f32.mrb[0].mxu0
        %v1186 = vpop.f32.mrb[0].mxu0
        %v1187 = vadd.f32 %v895, %v1186
        %v1188 = vpop.f32.mrb[0].mxu0
        %1189 = vmatprep.mubr.bf16.mxu0 0
        %1190 = vmatmul.mubr.bf16.gmra.mrb[0].mxu0 %v1067
        %v1191 = vpop.f32.mrb[0].mxu0
        %v1192 = vadd.f32 %v900, %v1191
        %v1193 = vpop.f32.mrb[0].mxu0
        %v1194 = vpop.f32.mrb[0].mxu0
        %v1195 = vadd.f32 %v903, %v1194
        %v1196 = vpop.f32.mrb[0].mxu0
        %1197 = vmatprep.mubr.bf16.mxu0 0
        %1198 = vmatmul.mubr.bf16.gmra.mrb[0].mxu0 %v1070
        %v1199 = vpop.f32.mrb[0].mxu0
        %v1200 = vadd.f32 %v908, %v1199
        %v1201 = vpop.f32.mrb[0].mxu0
        %v1202 = vpop.f32.mrb[0].mxu0
        %v1203 = vadd.f32 %v911, %v1202
        %v1204 = vpop.f32.mrb[0].mxu0
        %1205 = vmatprep.mubr.bf16.mxu0 0
        %1206 = vmatmul.mubr.bf16.gmra.mrb[0].mxu0 %v1073
        %v1207 = vpop.f32.mrb[0].mxu0
        %v1208 = vadd.f32 %v916, %v1207
        %v1209 = vpop.f32.mrb[0].mxu0
        %v1210 = vpop.f32.mrb[0].mxu0
        %v1211 = vadd.f32 %v919, %v1210
        %v1212 = vpop.f32.mrb[0].mxu0
        %1213 = vmatprep.mubr.bf16.mxu0 0
        %1214 = vmatmul.mubr.bf16.gmra.mrb[0].mxu0 %v1076
        %v1215 = vpop.f32.mrb[0].mxu0
        %v1216 = vadd.f32 %v924, %v1215
        %v1217 = vpop.f32.mrb[0].mxu0
        %v1218 = vpop.f32.mrb[0].mxu0
        %v1219 = vadd.f32 %v927, %v1218
        %v1220 = vpop.f32.mrb[0].mxu0
        %1221 = vmatprep.mubr.bf16.mxu0 0
        %1222 = vmatmul.mubr.bf16.gmra.mrb[0].mxu0 %v1079
        %v1223 = vpop.f32.mrb[0].mxu0
        %v1224 = vadd.f32 %v932, %v1223
        %v1225 = vpop.f32.mrb[0].mxu0
        %v1226 = vpop.f32.mrb[0].mxu0
        %v1227 = vadd.f32 %v935, %v1226
        %v1228 = vpop.f32.mrb[0].mxu0
        %1229 = vmatprep.mubr.bf16.mxu0 0
        %1230 = vmatmul.mubr.bf16.gmra.mrb[0].mxu0 %v1082
        %v1231 = vpop.f32.mrb[0].mxu0
        %v1232 = vadd.f32 %v940, %v1231
        %v1233 = vpop.f32.mrb[0].mxu0
        %v1234 = vpop.f32.mrb[0].mxu0
        %v1235 = vadd.f32 %v943, %v1234
        %v1236 = vpop.f32.mrb[0].mxu0
        %1237 = vmatprep.mubr.bf16.mxu0 0
        %1238 = vmatmul.mubr.bf16.gmra.mrb[0].mxu0 %v1085
        %v1239 = vpop.f32.mrb[0].mxu0
        %v1240 = vadd.f32 %v948, %v1239
        %v1241 = vpop.f32.mrb[0].mxu0
        %v1242 = vpop.f32.mrb[0].mxu0
        %v1243 = vadd.f32 %v951, %v1242
        %v1244 = vpop.f32.mrb[0].mxu0
        %1245 = vmatprep.mubr.bf16.mxu0 0
        %1246 = vmatmul.mubr.bf16.gmra.mrb[0].mxu0 %v1088
        %v1247 = vpop.f32.mrb[0].mxu0
        %v1248 = vadd.f32 %v956, %v1247
        %v1249 = vpop.f32.mrb[0].mxu0
        %v1250 = vpop.f32.mrb[0].mxu0
        %v1251 = vadd.f32 %v959, %v1250
        %v1252 = vpop.f32.mrb[0].mxu0
        %1253 = vdwg.mxu0
        %vm1270 = vcmask 1042432
        %vm1271 = vcmask 1046532
        %vm1272 = vmor %vm1270, %vm1271
        %v1273 = vrot.slane %v256, 5
        %v1274 = vrot.slane %v1273, 4
        %v1275 = vrot.slane %v257, 5
        %v1276 = vsel %vm1272, %v1274, %v1275
        %v1277 = vrot.slane %v1275, 4
        %v1278 = vrot.slane %v258, 5
        %v1279 = vsel %vm1272, %v1277, %v1278
        %v1280 = vrot.slane %v259, 5
        %v1281 = vrot.slane %v1280, 4
        %v1282 = vrot.slane %v260, 5
        %v1283 = vsel %vm1272, %v1281, %v1282
        %v1284 = vrot.slane %v1282, 4
        %v1285 = vrot.slane %v261, 5
        %v1286 = vsel %vm1272, %v1284, %v1285
        %v1287 = vrot.slane %v262, 5
        %v1288 = vrot.slane %v1287, 4
        %v1289 = vrot.slane %v263, 5
        %v1290 = vsel %vm1272, %v1288, %v1289
        %v1291 = vrot.slane %v1289, 4
        %v1292 = vrot.slane %v264, 5
        %v1293 = vsel %vm1272, %v1291, %v1292
        %v1294 = vrot.slane %v265, 5
        %v1295 = vrot.slane %v1294, 4
        %v1296 = vrot.slane %v266, 5
        %v1297 = vsel %vm1272, %v1295, %v1296
        %v1298 = vrot.slane %v1296, 4
        %v1299 = vrot.slane %v267, 5
        %v1300 = vsel %vm1272, %v1298, %v1299
        %v1301 = vrot.slane %v268, 5
        %v1302 = vrot.slane %v1301, 4
        %v1303 = vrot.slane %v269, 5
        %v1304 = vsel %vm1272, %v1302, %v1303
        %v1305 = vrot.slane %v1303, 4
        %v1306 = vrot.slane %v270, 5
        %v1307 = vsel %vm1272, %v1305, %v1306
        %v1308 = vrot.slane %v271, 5
        %v1309 = vrot.slane %v1308, 4
        %v1310 = vrot.slane %v272, 5
        %v1311 = vsel %vm1272, %v1309, %v1310
        %v1312 = vrot.slane %v1310, 4
        %v1313 = vrot.slane %v273, 5
        %v1314 = vsel %vm1272, %v1312, %v1313
        %v1315 = vrot.slane %v274, 5
        %v1316 = vrot.slane %v1315, 4
        %v1317 = vrot.slane %v275, 5
        %v1318 = vsel %vm1272, %v1316, %v1317
        %v1319 = vrot.slane %v1317, 4
        %v1320 = vrot.slane %v276, 5
        %v1321 = vsel %vm1272, %v1319, %v1320
        %v1322 = vrot.slane %v277, 5
        %v1323 = vrot.slane %v1322, 4
        %v1324 = vrot.slane %v278, 5
        %v1325 = vsel %vm1272, %v1323, %v1324
        %v1326 = vrot.slane %v1324, 4
        %v1327 = vrot.slane %v279, 5
        %v1328 = vsel %vm1272, %v1326, %v1327
        %v1329 = vrot.slane %v280, 5
        %v1330 = vrot.slane %v1329, 4
        %v1331 = vrot.slane %v281, 5
        %v1332 = vsel %vm1272, %v1330, %v1331
        %v1333 = vrot.slane %v1331, 4
        %v1334 = vrot.slane %v282, 5
        %v1335 = vsel %vm1272, %v1333, %v1334
        %v1336 = vrot.slane %v283, 5
        %v1337 = vrot.slane %v1336, 4
        %v1338 = vrot.slane %v284, 5
        %v1339 = vsel %vm1272, %v1337, %v1338
        %v1340 = vrot.slane %v1338, 4
        %v1341 = vrot.slane %v285, 5
        %v1342 = vsel %vm1272, %v1340, %v1341
        %v1343 = vrot.slane %v286, 5
        %v1344 = vrot.slane %v1343, 4
        %v1345 = vrot.slane %v287, 5
        %v1346 = vsel %vm1272, %v1344, %v1345
        %v1347 = vrot.slane %v1345, 4
        %v1348 = vrot.slane %v288, 5
        %v1349 = vsel %vm1272, %v1347, %v1348
        %v1350 = vrot.slane %v289, 5
        %v1351 = vrot.slane %v1350, 4
        %v1352 = vrot.slane %v290, 5
        %v1353 = vsel %vm1272, %v1351, %v1352
        %v1354 = vrot.slane %v1352, 4
        %v1355 = vrot.slane %v291, 5
        %v1356 = vsel %vm1272, %v1354, %v1355
        %v1357 = vrot.slane %v292, 5
        %v1358 = vrot.slane %v1357, 4
        %v1359 = vrot.slane %v293, 5
        %v1360 = vsel %vm1272, %v1358, %v1359
        %v1361 = vrot.slane %v1359, 4
        %v1362 = vrot.slane %v294, 5
        %v1363 = vsel %vm1272, %v1361, %v1362
        %v1364 = vrot.slane %v295, 5
        %v1365 = vrot.slane %v1364, 4
        %v1366 = vrot.slane %v296, 5
        %v1367 = vsel %vm1272, %v1365, %v1366
        %v1368 = vrot.slane %v1366, 4
        %v1369 = vrot.slane %v297, 5
        %v1370 = vsel %vm1272, %v1368, %v1369
        %v1371 = vrot.slane %v298, 5
        %v1372 = vrot.slane %v1371, 4
        %v1373 = vrot.slane %v299, 5
        %v1374 = vsel %vm1272, %v1372, %v1373
        %v1375 = vrot.slane %v1373, 4
        %v1376 = vrot.slane %v300, 5
        %v1377 = vsel %vm1272, %v1375, %v1376
        %v1378 = vrot.slane %v301, 5
        %v1379 = vrot.slane %v1378, 4
        %v1380 = vrot.slane %v302, 5
        %v1381 = vsel %vm1272, %v1379, %v1380
        %v1382 = vrot.slane %v1380, 4
        %v1383 = vrot.slane %v303, 5
        %v1384 = vsel %vm1272, %v1382, %v1383
        %s1385 = scalar_lea.vmem %s248, 4
        %v1386 = vld [vmem:[%s1385] sm:$0x3]
        %v1387 = vunpack.c.l.b16 %v1276
        %v1388 = vunpack.c.l.b16 %v1279
        %v1389 = vunpack.c.l.b16 %v1283
        %v1390 = vunpack.c.l.b16 %v1286
        %v1391 = vunpack.c.l.b16 %v1290
        %v1392 = vunpack.c.l.b16 %v1293
        %v1393 = vunpack.c.l.b16 %v1297
        %v1394 = vunpack.c.l.b16 %v1300
        %v1395 = vunpack.c.l.b16 %v1304
        %v1396 = vunpack.c.l.b16 %v1307
        %v1397 = vunpack.c.l.b16 %v1311
        %v1398 = vunpack.c.l.b16 %v1314
        %v1399 = vunpack.c.l.b16 %v1318
        %v1400 = vunpack.c.l.b16 %v1321
        %v1401 = vunpack.c.l.b16 %v1325
        %v1402 = vunpack.c.l.b16 %v1328
        %v1403 = vunpack.c.l.b16 %v1332
        %v1404 = vunpack.c.l.b16 %v1335
        %v1405 = vunpack.c.l.b16 %v1339
        %v1406 = vunpack.c.l.b16 %v1342
        %v1407 = vunpack.c.l.b16 %v1346
        %v1408 = vunpack.c.l.b16 %v1349
        %v1409 = vunpack.c.l.b16 %v1353
        %v1410 = vunpack.c.l.b16 %v1356
        %v1411 = vunpack.c.l.b16 %v1360
        %v1412 = vunpack.c.l.b16 %v1363
        %v1413 = vunpack.c.l.b16 %v1367
        %v1414 = vunpack.c.l.b16 %v1370
        %v1415 = vunpack.c.l.b16 %v1374
        %v1416 = vunpack.c.l.b16 %v1377
        %v1417 = vunpack.c.l.b16 %v1381
        %v1418 = vunpack.c.l.b16 %v1384
        %v1419 = vpack.c.b16 %v1388, %v1387
        %v1420 = vpack.c.b16 %v1390, %v1389
        %v1421 = vpack.c.b16 %v1392, %v1391
        %v1422 = vpack.c.b16 %v1394, %v1393
        %v1423 = vpack.c.b16 %v1396, %v1395
        %v1424 = vpack.c.b16 %v1398, %v1397
        %v1425 = vpack.c.b16 %v1400, %v1399
        %v1426 = vpack.c.b16 %v1402, %v1401
        %v1427 = vpack.c.b16 %v1404, %v1403
        %v1428 = vpack.c.b16 %v1406, %v1405
        %v1429 = vpack.c.b16 %v1408, %v1407
        %v1430 = vpack.c.b16 %v1410, %v1409
        %v1431 = vpack.c.b16 %v1412, %v1411
        %v1432 = vpack.c.b16 %v1414, %v1413
        %v1433 = vpack.c.b16 %v1416, %v1415
        %v1434 = vpack.c.b16 %v1418, %v1417
        %v1436 = vsel %vm748, %v1419, 0
        %v1439 = vsel %vm748, %v1420, 0
        %v1442 = vsel %vm748, %v1421, 0
        %v1445 = vsel %vm748, %v1422, 0
        %v1448 = vsel %vm748, %v1423, 0
        %v1451 = vsel %vm748, %v1424, 0
        %v1454 = vsel %vm748, %v1425, 0
        %v1457 = vsel %vm748, %v1426, 0
        %v1460 = vsel %vm748, %v1427, 0
        %v1463 = vsel %vm748, %v1428, 0
        %v1466 = vsel %vm748, %v1429, 0
        %v1469 = vsel %vm748, %v1430, 0
        %v1472 = vsel %vm748, %v1431, 0
        %v1475 = vsel %vm748, %v1432, 0
        %v1478 = vsel %vm748, %v1433, 0
        %v1481 = vsel %vm748, %v1434, 0
        %v1484 = vsel %vm797, %v1386, 0
        %1486 = vmatprep.subr.bf16.mxu0 0
        %1487 = vmatpush1.bf16.msra.mxu0 %v1484
        %1488 = vmatprep.subr.bf16.mxu0 0
        %1489 = vmatpush1.bf16.msra.mxu0 0
        %1490 = vmatprep.subr.bf16.mxu0 0
        %1491 = vmatpush1.bf16.msra.mxu0 0
        %1492 = vmatprep.subr.bf16.mxu0 0
        %1493 = vmatpush1.bf16.msra.mxu0 0
        %1494 = vmatprep.subr.bf16.mxu0 0
        %1495 = vmatpush1.bf16.msra.mxu0 0
        %1496 = vmatprep.subr.bf16.mxu0 0
        %1497 = vmatpush1.bf16.msra.mxu0 0
        %1498 = vmatprep.subr.bf16.mxu0 0
        %1499 = vmatpush1.bf16.msra.mxu0 0
        %1500 = vmatprep.subr.bf16.mxu0 0
        %1501 = vmatpush1.bf16.msra.mxu0 0
        %1502 = vmatprep.subr.bf16.mxu0 0
        %1503 = vmatpush1.bf16.msra.mxu0 0
        %1504 = vmatprep.subr.bf16.mxu0 0
        %1505 = vmatpush1.bf16.msra.mxu0 0
        %1506 = vmatprep.subr.bf16.mxu0 0
        %1507 = vmatpush1.bf16.msra.mxu0 0
        %1508 = vmatprep.subr.bf16.mxu0 0
        %1509 = vmatpush1.bf16.msra.mxu0 0
        %1510 = vmatprep.subr.bf16.mxu0 0
        %1511 = vmatpush1.bf16.msra.mxu0 0
        %1512 = vmatprep.subr.bf16.mxu0 0
        %1513 = vmatpush1.bf16.msra.mxu0 0
        %1514 = vmatprep.subr.bf16.mxu0 0
        %1515 = vmatpush1.bf16.msra.mxu0 0
        %1516 = vmatprep.subr.bf16.mxu0 0
        %1517 = vmatpush1.bf16.msra.mxu0 0
        %1518 = vmatprep.mubr.bf16.mxu0 0
        %1519 = vmatmul.mubr.bf16.gmra.mrb[0].mxu0 %v1436
        %v1520 = vpop.f32.mrb[0].mxu0
        %v1521 = vadd.f32 0.0, %v1520
        %v1522 = vpop.f32.mrb[0].mxu0
        %v1523 = vpop.f32.mrb[0].mxu0
        %v1524 = vadd.f32 0.0, %v1523
        %v1525 = vpop.f32.mrb[0].mxu0
        %1526 = vmatprep.mubr.bf16.mxu0 0
        %1527 = vmatmul.mubr.bf16.gmra.mrb[0].mxu0 %v1439
        %v1528 = vpop.f32.mrb[0].mxu0
        %v1529 = vadd.f32 0.0, %v1528
        %v1530 = vpop.f32.mrb[0].mxu0
        %v1531 = vpop.f32.mrb[0].mxu0
        %v1532 = vadd.f32 0.0, %v1531
        %v1533 = vpop.f32.mrb[0].mxu0
        %1534 = vmatprep.mubr.bf16.mxu0 0
        %1535 = vmatmul.mubr.bf16.gmra.mrb[0].mxu0 %v1442
        %v1536 = vpop.f32.mrb[0].mxu0
        %v1537 = vadd.f32 0.0, %v1536
        %v1538 = vpop.f32.mrb[0].mxu0
        %v1539 = vpop.f32.mrb[0].mxu0
        %v1540 = vadd.f32 0.0, %v1539
        %v1541 = vpop.f32.mrb[0].mxu0
        %1542 = vmatprep.mubr.bf16.mxu0 0
        %1543 = vmatmul.mubr.bf16.gmra.mrb[0].mxu0 %v1445
        %v1544 = vpop.f32.mrb[0].mxu0
        %v1545 = vadd.f32 0.0, %v1544
        %v1546 = vpop.f32.mrb[0].mxu0
        %v1547 = vpop.f32.mrb[0].mxu0
        %v1548 = vadd.f32 0.0, %v1547
        %v1549 = vpop.f32.mrb[0].mxu0
        %1550 = vmatprep.mubr.bf16.mxu0 0
        %1551 = vmatmul.mubr.bf16.gmra.mrb[0].mxu0 %v1448
        %v1552 = vpop.f32.mrb[0].mxu0
        %v1553 = vadd.f32 0.0, %v1552
        %v1554 = vpop.f32.mrb[0].mxu0
        %v1555 = vpop.f32.mrb[0].mxu0
        %v1556 = vadd.f32 0.0, %v1555
        %v1557 = vpop.f32.mrb[0].mxu0
        %1558 = vmatprep.mubr.bf16.mxu0 0
        %1559 = vmatmul.mubr.bf16.gmra.mrb[0].mxu0 %v1451
        %v1560 = vpop.f32.mrb[0].mxu0
        %v1561 = vadd.f32 0.0, %v1560
        %v1562 = vpop.f32.mrb[0].mxu0
        %v1563 = vpop.f32.mrb[0].mxu0
        %v1564 = vadd.f32 0.0, %v1563
        %v1565 = vpop.f32.mrb[0].mxu0
        %1566 = vmatprep.mubr.bf16.mxu0 0
        %1567 = vmatmul.mubr.bf16.gmra.mrb[0].mxu0 %v1454
        %v1568 = vpop.f32.mrb[0].mxu0
        %v1569 = vadd.f32 0.0, %v1568
        %v1570 = vpop.f32.mrb[0].mxu0
        %v1571 = vpop.f32.mrb[0].mxu0
        %v1572 = vadd.f32 0.0, %v1571
        %v1573 = vpop.f32.mrb[0].mxu0
        %1574 = vmatprep.mubr.bf16.mxu0 0
        %1575 = vmatmul.mubr.bf16.gmra.mrb[0].mxu0 %v1457
        %v1576 = vpop.f32.mrb[0].mxu0
        %v1577 = vadd.f32 0.0, %v1576
        %v1578 = vpop.f32.mrb[0].mxu0
        %v1579 = vpop.f32.mrb[0].mxu0
        %v1580 = vadd.f32 0.0, %v1579
        %v1581 = vpop.f32.mrb[0].mxu0
        %1582 = vmatprep.mubr.bf16.mxu0 0
        %1583 = vmatmul.mubr.bf16.gmra.mrb[0].mxu0 %v1460
        %v1584 = vpop.f32.mrb[0].mxu0
        %v1585 = vadd.f32 0.0, %v1584
        %v1586 = vpop.f32.mrb[0].mxu0
        %v1587 = vpop.f32.mrb[0].mxu0
        %v1588 = vadd.f32 0.0, %v1587
        %v1589 = vpop.f32.mrb[0].mxu0
        %1590 = vmatprep.mubr.bf16.mxu0 0
        %1591 = vmatmul.mubr.bf16.gmra.mrb[0].mxu0 %v1463
        %v1592 = vpop.f32.mrb[0].mxu0
        %v1593 = vadd.f32 0.0, %v1592
        %v1594 = vpop.f32.mrb[0].mxu0
        %v1595 = vpop.f32.mrb[0].mxu0
        %v1596 = vadd.f32 0.0, %v1595
        %v1597 = vpop.f32.mrb[0].mxu0
        %1598 = vmatprep.mubr.bf16.mxu0 0
        %1599 = vmatmul.mubr.bf16.gmra.mrb[0].mxu0 %v1466
        %v1600 = vpop.f32.mrb[0].mxu0
        %v1601 = vadd.f32 0.0, %v1600
        %v1602 = vpop.f32.mrb[0].mxu0
        %v1603 = vpop.f32.mrb[0].mxu0
        %v1604 = vadd.f32 0.0, %v1603
        %v1605 = vpop.f32.mrb[0].mxu0
        %1606 = vmatprep.mubr.bf16.mxu0 0
        %1607 = vmatmul.mubr.bf16.gmra.mrb[0].mxu0 %v1469
        %v1608 = vpop.f32.mrb[0].mxu0
        %v1609 = vadd.f32 0.0, %v1608
        %v1610 = vpop.f32.mrb[0].mxu0
        %v1611 = vpop.f32.mrb[0].mxu0
        %v1612 = vadd.f32 0.0, %v1611
        %v1613 = vpop.f32.mrb[0].mxu0
        %1614 = vmatprep.mubr.bf16.mxu0 0
        %1615 = vmatmul.mubr.bf16.gmra.mrb[0].mxu0 %v1472
        %v1616 = vpop.f32.mrb[0].mxu0
        %v1617 = vadd.f32 0.0, %v1616
        %v1618 = vpop.f32.mrb[0].mxu0
        %v1619 = vpop.f32.mrb[0].mxu0
        %v1620 = vadd.f32 0.0, %v1619
        %v1621 = vpop.f32.mrb[0].mxu0
        %1622 = vmatprep.mubr.bf16.mxu0 0
        %1623 = vmatmul.mubr.bf16.gmra.mrb[0].mxu0 %v1475
        %v1624 = vpop.f32.mrb[0].mxu0
        %v1625 = vadd.f32 0.0, %v1624
        %v1626 = vpop.f32.mrb[0].mxu0
        %v1627 = vpop.f32.mrb[0].mxu0
        %v1628 = vadd.f32 0.0, %v1627
        %v1629 = vpop.f32.mrb[0].mxu0
        %1630 = vmatprep.mubr.bf16.mxu0 0
        %1631 = vmatmul.mubr.bf16.gmra.mrb[0].mxu0 %v1478
        %v1632 = vpop.f32.mrb[0].mxu0
        %v1633 = vadd.f32 0.0, %v1632
        %v1634 = vpop.f32.mrb[0].mxu0
        %v1635 = vpop.f32.mrb[0].mxu0
        %v1636 = vadd.f32 0.0, %v1635
        %v1637 = vpop.f32.mrb[0].mxu0
        %1638 = vmatprep.mubr.bf16.mxu0 0
        %1639 = vmatmul.mubr.bf16.gmra.mrb[0].mxu0 %v1481
        %v1640 = vpop.f32.mrb[0].mxu0
        %v1641 = vadd.f32 0.0, %v1640
        %v1642 = vpop.f32.mrb[0].mxu0
        %v1643 = vpop.f32.mrb[0].mxu0
        %v1644 = vadd.f32 0.0, %v1643
        %v1645 = vpop.f32.mrb[0].mxu0
        %1646 = vdwg.mxu0
        %v1647 = vadd.f32 %v1128, %v1521
        %v1648 = vadd.f32 %v1131, %v1524
        %v1649 = vadd.f32 %v1136, %v1529
        %v1650 = vadd.f32 %v1139, %v1532
        %v1651 = vadd.f32 %v1144, %v1537
        %v1652 = vadd.f32 %v1147, %v1540
        %v1653 = vadd.f32 %v1152, %v1545
        %v1654 = vadd.f32 %v1155, %v1548
        %v1655 = vadd.f32 %v1160, %v1553
        %v1656 = vadd.f32 %v1163, %v1556
        %v1657 = vadd.f32 %v1168, %v1561
        %v1658 = vadd.f32 %v1171, %v1564
        %v1659 = vadd.f32 %v1176, %v1569
        %v1660 = vadd.f32 %v1179, %v1572
        %v1661 = vadd.f32 %v1184, %v1577
        %v1662 = vadd.f32 %v1187, %v1580
        %v1663 = vadd.f32 %v1192, %v1585
        %v1664 = vadd.f32 %v1195, %v1588
        %v1665 = vadd.f32 %v1200, %v1593
        %v1666 = vadd.f32 %v1203, %v1596
        %v1667 = vadd.f32 %v1208, %v1601
        %v1668 = vadd.f32 %v1211, %v1604
        %v1669 = vadd.f32 %v1216, %v1609
        %v1670 = vadd.f32 %v1219, %v1612
        %v1671 = vadd.f32 %v1224, %v1617
        %v1672 = vadd.f32 %v1227, %v1620
        %v1673 = vadd.f32 %v1232, %v1625
        %v1674 = vadd.f32 %v1235, %v1628
        %v1675 = vadd.f32 %v1240, %v1633
        %v1676 = vadd.f32 %v1243, %v1636
        %v1677 = vadd.f32 %v1248, %v1641
        %v1678 = vadd.f32 %v1251, %v1644
        %s1679 = scalar_lea.vmem %s248, 6
        %v1680 = vld [vmem:[%s1679] sm:$0x3]
        %v1683 = vunpack.c.l.b16 %v304
        %v1684 = vunpack.c.l.b16 %v305
        %v1685 = vpack.c.b16 %v1684, %v1683
        %v1687 = vsel %vm748, %v1685, 0
        %v1690 = vsel %vm797, %v1680, 0
        %1692 = vmatprep.subr.bf16.mxu0 0
        %1693 = vmatpush1.bf16.msra.mxu0 %v1690
        %1694 = vmatprep.subr.bf16.mxu0 0
        %1695 = vmatpush1.bf16.msra.mxu0 0
        %1696 = vmatprep.subr.bf16.mxu0 0
        %1697 = vmatpush1.bf16.msra.mxu0 0
        %1698 = vmatprep.subr.bf16.mxu0 0
        %1699 = vmatpush1.bf16.msra.mxu0 0
        %1700 = vmatprep.subr.bf16.mxu0 0
        %1701 = vmatpush1.bf16.msra.mxu0 0
        %1702 = vmatprep.subr.bf16.mxu0 0
        %1703 = vmatpush1.bf16.msra.mxu0 0
        %1704 = vmatprep.subr.bf16.mxu0 0
        %1705 = vmatpush1.bf16.msra.mxu0 0
        %1706 = vmatprep.subr.bf16.mxu0 0
        %1707 = vmatpush1.bf16.msra.mxu0 0
        %1708 = vmatprep.subr.bf16.mxu0 0
        %1709 = vmatpush1.bf16.msra.mxu0 0
        %1710 = vmatprep.subr.bf16.mxu0 0
        %1711 = vmatpush1.bf16.msra.mxu0 0
        %1712 = vmatprep.subr.bf16.mxu0 0
        %1713 = vmatpush1.bf16.msra.mxu0 0
        %1714 = vmatprep.subr.bf16.mxu0 0
        %1715 = vmatpush1.bf16.msra.mxu0 0
        %1716 = vmatprep.subr.bf16.mxu0 0
        %1717 = vmatpush1.bf16.msra.mxu0 0
        %1718 = vmatprep.subr.bf16.mxu0 0
        %1719 = vmatpush1.bf16.msra.mxu0 0
        %1720 = vmatprep.subr.bf16.mxu0 0
        %1721 = vmatpush1.bf16.msra.mxu0 0
        %1722 = vmatprep.subr.bf16.mxu0 0
        %1723 = vmatpush1.bf16.msra.mxu0 0
        %1724 = vmatprep.mubr.bf16.mxu0 0
        %1725 = vmatmul.mubr.bf16.gmra.mrb[0].mxu0 %v1046
        %v1726 = vpop.f32.mrb[0].mxu0
        %v1727 = vadd.f32 0.0, %v1726
        %v1728 = vpop.f32.mrb[0].mxu0
        %v1729 = vpop.f32.mrb[0].mxu0
        %v1730 = vadd.f32 0.0, %v1729
        %v1731 = vpop.f32.mrb[0].mxu0
        %1732 = vmatprep.mubr.bf16.mxu0 0
        %1733 = vmatmul.mubr.bf16.gmra.mrb[0].mxu0 %v1049
        %v1734 = vpop.f32.mrb[0].mxu0
        %v1735 = vadd.f32 0.0, %v1734
        %v1736 = vpop.f32.mrb[0].mxu0
        %v1737 = vpop.f32.mrb[0].mxu0
        %v1738 = vadd.f32 0.0, %v1737
        %v1739 = vpop.f32.mrb[0].mxu0
        %1740 = vmatprep.mubr.bf16.mxu0 0
        %1741 = vmatmul.mubr.bf16.gmra.mrb[0].mxu0 %v1052
        %v1742 = vpop.f32.mrb[0].mxu0
        %v1743 = vadd.f32 0.0, %v1742
        %v1744 = vpop.f32.mrb[0].mxu0
        %v1745 = vpop.f32.mrb[0].mxu0
        %v1746 = vadd.f32 0.0, %v1745
        %v1747 = vpop.f32.mrb[0].mxu0
        %1748 = vmatprep.mubr.bf16.mxu0 0
        %1749 = vmatmul.mubr.bf16.gmra.mrb[0].mxu0 %v1055
        %v1750 = vpop.f32.mrb[0].mxu0
        %v1751 = vadd.f32 0.0, %v1750
        %v1752 = vpop.f32.mrb[0].mxu0
        %v1753 = vpop.f32.mrb[0].mxu0
        %v1754 = vadd.f32 0.0, %v1753
        %v1755 = vpop.f32.mrb[0].mxu0
        %1756 = vmatprep.mubr.bf16.mxu0 0
        %1757 = vmatmul.mubr.bf16.gmra.mrb[0].mxu0 %v1058
        %v1758 = vpop.f32.mrb[0].mxu0
        %v1759 = vadd.f32 0.0, %v1758
        %v1760 = vpop.f32.mrb[0].mxu0
        %v1761 = vpop.f32.mrb[0].mxu0
        %v1762 = vadd.f32 0.0, %v1761
        %v1763 = vpop.f32.mrb[0].mxu0
        %1764 = vmatprep.mubr.bf16.mxu0 0
        %1765 = vmatmul.mubr.bf16.gmra.mrb[0].mxu0 %v1061
        %v1766 = vpop.f32.mrb[0].mxu0
        %v1767 = vadd.f32 0.0, %v1766
        %v1768 = vpop.f32.mrb[0].mxu0
        %v1769 = vpop.f32.mrb[0].mxu0
        %v1770 = vadd.f32 0.0, %v1769
        %v1771 = vpop.f32.mrb[0].mxu0
        %1772 = vmatprep.mubr.bf16.mxu0 0
        %1773 = vmatmul.mubr.bf16.gmra.mrb[0].mxu0 %v1064
        %v1774 = vpop.f32.mrb[0].mxu0
        %v1775 = vadd.f32 0.0, %v1774
        %v1776 = vpop.f32.mrb[0].mxu0
        %v1777 = vpop.f32.mrb[0].mxu0
        %v1778 = vadd.f32 0.0, %v1777
        %v1779 = vpop.f32.mrb[0].mxu0
        %1780 = vmatprep.mubr.bf16.mxu0 0
        %1781 = vmatmul.mubr.bf16.gmra.mrb[0].mxu0 %v1067
        %v1782 = vpop.f32.mrb[0].mxu0
        %v1783 = vadd.f32 0.0, %v1782
        %v1784 = vpop.f32.mrb[0].mxu0
        %v1785 = vpop.f32.mrb[0].mxu0
        %v1786 = vadd.f32 0.0, %v1785
        %v1787 = vpop.f32.mrb[0].mxu0
        %1788 = vmatprep.mubr.bf16.mxu0 0
        %1789 = vmatmul.mubr.bf16.gmra.mrb[0].mxu0 %v1070
        %v1790 = vpop.f32.mrb[0].mxu0
        %v1791 = vadd.f32 0.0, %v1790
        %v1792 = vpop.f32.mrb[0].mxu0
        %v1793 = vpop.f32.mrb[0].mxu0
        %v1794 = vadd.f32 0.0, %v1793
        %v1795 = vpop.f32.mrb[0].mxu0
        %1796 = vmatprep.mubr.bf16.mxu0 0
        %1797 = vmatmul.mubr.bf16.gmra.mrb[0].mxu0 %v1073
        %v1798 = vpop.f32.mrb[0].mxu0
        %v1799 = vadd.f32 0.0, %v1798
        %v1800 = vpop.f32.mrb[0].mxu0
        %v1801 = vpop.f32.mrb[0].mxu0
        %v1802 = vadd.f32 0.0, %v1801
        %v1803 = vpop.f32.mrb[0].mxu0
        %1804 = vmatprep.mubr.bf16.mxu0 0
        %1805 = vmatmul.mubr.bf16.gmra.mrb[0].mxu0 %v1076
        %v1806 = vpop.f32.mrb[0].mxu0
        %v1807 = vadd.f32 0.0, %v1806
        %v1808 = vpop.f32.mrb[0].mxu0
        %v1809 = vpop.f32.mrb[0].mxu0
        %v1810 = vadd.f32 0.0, %v1809
        %v1811 = vpop.f32.mrb[0].mxu0
        %1812 = vmatprep.mubr.bf16.mxu0 0
        %1813 = vmatmul.mubr.bf16.gmra.mrb[0].mxu0 %v1079
        %v1814 = vpop.f32.mrb[0].mxu0
        %v1815 = vadd.f32 0.0, %v1814
        %v1816 = vpop.f32.mrb[0].mxu0
        %v1817 = vpop.f32.mrb[0].mxu0
        %v1818 = vadd.f32 0.0, %v1817
        %v1819 = vpop.f32.mrb[0].mxu0
        %1820 = vmatprep.mubr.bf16.mxu0 0
        %1821 = vmatmul.mubr.bf16.gmra.mrb[0].mxu0 %v1082
        %v1822 = vpop.f32.mrb[0].mxu0
        %v1823 = vadd.f32 0.0, %v1822
        %v1824 = vpop.f32.mrb[0].mxu0
        %v1825 = vpop.f32.mrb[0].mxu0
        %v1826 = vadd.f32 0.0, %v1825
        %v1827 = vpop.f32.mrb[0].mxu0
        %1828 = vmatprep.mubr.bf16.mxu0 0
        %1829 = vmatmul.mubr.bf16.gmra.mrb[0].mxu0 %v1085
        %v1830 = vpop.f32.mrb[0].mxu0
        %v1831 = vadd.f32 0.0, %v1830
        %v1832 = vpop.f32.mrb[0].mxu0
        %v1833 = vpop.f32.mrb[0].mxu0
        %v1834 = vadd.f32 0.0, %v1833
        %v1835 = vpop.f32.mrb[0].mxu0
        %1836 = vmatprep.mubr.bf16.mxu0 0
        %1837 = vmatmul.mubr.bf16.gmra.mrb[0].mxu0 %v1088
        %v1838 = vpop.f32.mrb[0].mxu0
        %v1839 = vadd.f32 0.0, %v1838
        %v1840 = vpop.f32.mrb[0].mxu0
        %v1841 = vpop.f32.mrb[0].mxu0
        %v1842 = vadd.f32 0.0, %v1841
        %v1843 = vpop.f32.mrb[0].mxu0
        %1844 = vmatprep.mubr.bf16.mxu0 0
        %1845 = vmatmul.mubr.bf16.gmra.mrb[0].mxu0 %v1687
        %v1846 = vpop.f32.mrb[0].mxu0
        %v1847 = vadd.f32 0.0, %v1846
        %v1848 = vpop.f32.mrb[0].mxu0
        %v1849 = vpop.f32.mrb[0].mxu0
        %v1850 = vadd.f32 0.0, %v1849
        %v1851 = vpop.f32.mrb[0].mxu0
        %1852 = vdwg.mxu0
        %v1853 = vadd.f32 %v1647, %v1727
        %v1854 = vadd.f32 %v1648, %v1730
        %v1855 = vadd.f32 %v1649, %v1735
        %v1856 = vadd.f32 %v1650, %v1738
        %v1857 = vadd.f32 %v1651, %v1743
        %v1858 = vadd.f32 %v1652, %v1746
        %v1859 = vadd.f32 %v1653, %v1751
        %v1860 = vadd.f32 %v1654, %v1754
        %v1861 = vadd.f32 %v1655, %v1759
        %v1862 = vadd.f32 %v1656, %v1762
        %v1863 = vadd.f32 %v1657, %v1767
        %v1864 = vadd.f32 %v1658, %v1770
        %v1865 = vadd.f32 %v1659, %v1775
        %v1866 = vadd.f32 %v1660, %v1778
        %v1867 = vadd.f32 %v1661, %v1783
        %v1868 = vadd.f32 %v1662, %v1786
        %v1869 = vadd.f32 %v1663, %v1791
        %v1870 = vadd.f32 %v1664, %v1794
        %v1871 = vadd.f32 %v1665, %v1799
        %v1872 = vadd.f32 %v1666, %v1802
        %v1873 = vadd.f32 %v1667, %v1807
        %v1874 = vadd.f32 %v1668, %v1810
        %v1875 = vadd.f32 %v1669, %v1815
        %v1876 = vadd.f32 %v1670, %v1818
        %v1877 = vadd.f32 %v1671, %v1823
        %v1878 = vadd.f32 %v1672, %v1826
        %v1879 = vadd.f32 %v1673, %v1831
        %v1880 = vadd.f32 %v1674, %v1834
        %v1881 = vadd.f32 %v1675, %v1839
        %v1882 = vadd.f32 %v1676, %v1842
        %v1883 = vadd.f32 %v1677, %v1847
        %v1884 = vadd.f32 %v1678, %v1850
        %v1886 = vshrl.u32 %v304, 16
        %v1888 = vrot.slane %v1886, 4
        %v1889 = vshll.u32 %v304, 16
        %v1891 = vrot.slane %v1889, 5
        %v1892 = vor.u32 %v1888, %v1891
        %v1893 = vrot.slane %v1892, 4
        %v1895 = vshll.u32 %v305, 16
        %v1897 = vrot.slane %v1895, 5
        %v1898 = vsel %vm313, %v1893, %v1897
        %v1899 = vshrl.u32 %v305, 16
        %v1901 = vrot.slane %v1899, 4
        %v1902 = vor.u32 %v1901, %v1897
        %v1903 = vrot.slane %v1902, 4
        %v1905 = vshll.u32 %v306, 16
        %v1907 = vrot.slane %v1905, 5
        %v1908 = vsel %vm313, %v1903, %v1907
        %s1909 = scalar_lea.vmem %s248, 8
        %v1910 = vld [vmem:[%s1909] sm:$0x3]
        %v1911 = vunpack.c.l.b16 %v1898
        %v1912 = vunpack.c.l.b16 %v1908
        %v1913 = vpack.c.b16 %v1912, %v1911
        %v1915 = vsel %vm748, %v1913, 0
        %v1918 = vsel %vm797, %v1910, 0
        %1920 = vmatprep.subr.bf16.mxu0 0
        %1921 = vmatpush1.bf16.msra.mxu0 %v1918
        %1922 = vmatprep.subr.bf16.mxu0 0
        %1923 = vmatpush1.bf16.msra.mxu0 0
        %1924 = vmatprep.subr.bf16.mxu0 0
        %1925 = vmatpush1.bf16.msra.mxu0 0
        %1926 = vmatprep.subr.bf16.mxu0 0
        %1927 = vmatpush1.bf16.msra.mxu0 0
        %1928 = vmatprep.subr.bf16.mxu0 0
        %1929 = vmatpush1.bf16.msra.mxu0 0
        %1930 = vmatprep.subr.bf16.mxu0 0
        %1931 = vmatpush1.bf16.msra.mxu0 0
        %1932 = vmatprep.subr.bf16.mxu0 0
        %1933 = vmatpush1.bf16.msra.mxu0 0
        %1934 = vmatprep.subr.bf16.mxu0 0
        %1935 = vmatpush1.bf16.msra.mxu0 0
        %1936 = vmatprep.subr.bf16.mxu0 0
        %1937 = vmatpush1.bf16.msra.mxu0 0
        %1938 = vmatprep.subr.bf16.mxu0 0
        %1939 = vmatpush1.bf16.msra.mxu0 0
        %1940 = vmatprep.subr.bf16.mxu0 0
        %1941 = vmatpush1.bf16.msra.mxu0 0
        %1942 = vmatprep.subr.bf16.mxu0 0
        %1943 = vmatpush1.bf16.msra.mxu0 0
        %1944 = vmatprep.subr.bf16.mxu0 0
        %1945 = vmatpush1.bf16.msra.mxu0 0
        %1946 = vmatprep.subr.bf16.mxu0 0
        %1947 = vmatpush1.bf16.msra.mxu0 0
        %1948 = vmatprep.subr.bf16.mxu0 0
        %1949 = vmatpush1.bf16.msra.mxu0 0
        %1950 = vmatprep.subr.bf16.mxu0 0
        %1951 = vmatpush1.bf16.msra.mxu0 0
        %1952 = vmatprep.mubr.bf16.mxu0 0
        %1953 = vmatmul.mubr.bf16.gmra.mrb[0].mxu0 %v753
        %v1954 = vpop.f32.mrb[0].mxu0
        %v1955 = vadd.f32 0.0, %v1954
        %v1956 = vpop.f32.mrb[0].mxu0
        %v1957 = vpop.f32.mrb[0].mxu0
        %v1958 = vadd.f32 0.0, %v1957
        %v1959 = vpop.f32.mrb[0].mxu0
        %1960 = vmatprep.mubr.bf16.mxu0 0
        %1961 = vmatmul.mubr.bf16.gmra.mrb[0].mxu0 %v756
        %v1962 = vpop.f32.mrb[0].mxu0
        %v1963 = vadd.f32 0.0, %v1962
        %v1964 = vpop.f32.mrb[0].mxu0
        %v1965 = vpop.f32.mrb[0].mxu0
        %v1966 = vadd.f32 0.0, %v1965
        %v1967 = vpop.f32.mrb[0].mxu0
        %1968 = vmatprep.mubr.bf16.mxu0 0
        %1969 = vmatmul.mubr.bf16.gmra.mrb[0].mxu0 %v759
        %v1970 = vpop.f32.mrb[0].mxu0
        %v1971 = vadd.f32 0.0, %v1970
        %v1972 = vpop.f32.mrb[0].mxu0
        %v1973 = vpop.f32.mrb[0].mxu0
        %v1974 = vadd.f32 0.0, %v1973
        %v1975 = vpop.f32.mrb[0].mxu0
        %1976 = vmatprep.mubr.bf16.mxu0 0
        %1977 = vmatmul.mubr.bf16.gmra.mrb[0].mxu0 %v762
        %v1978 = vpop.f32.mrb[0].mxu0
        %v1979 = vadd.f32 0.0, %v1978
        %v1980 = vpop.f32.mrb[0].mxu0
        %v1981 = vpop.f32.mrb[0].mxu0
        %v1982 = vadd.f32 0.0, %v1981
        %v1983 = vpop.f32.mrb[0].mxu0
        %1984 = vmatprep.mubr.bf16.mxu0 0
        %1985 = vmatmul.mubr.bf16.gmra.mrb[0].mxu0 %v765
        %v1986 = vpop.f32.mrb[0].mxu0
        %v1987 = vadd.f32 0.0, %v1986
        %v1988 = vpop.f32.mrb[0].mxu0
        %v1989 = vpop.f32.mrb[0].mxu0
        %v1990 = vadd.f32 0.0, %v1989
        %v1991 = vpop.f32.mrb[0].mxu0
        %1992 = vmatprep.mubr.bf16.mxu0 0
        %1993 = vmatmul.mubr.bf16.gmra.mrb[0].mxu0 %v768
        %v1994 = vpop.f32.mrb[0].mxu0
        %v1995 = vadd.f32 0.0, %v1994
        %v1996 = vpop.f32.mrb[0].mxu0
        %v1997 = vpop.f32.mrb[0].mxu0
        %v1998 = vadd.f32 0.0, %v1997
        %v1999 = vpop.f32.mrb[0].mxu0
        %2000 = vmatprep.mubr.bf16.mxu0 0
        %2001 = vmatmul.mubr.bf16.gmra.mrb[0].mxu0 %v771
        %v2002 = vpop.f32.mrb[0].mxu0
        %v2003 = vadd.f32 0.0, %v2002
        %v2004 = vpop.f32.mrb[0].mxu0
        %v2005 = vpop.f32.mrb[0].mxu0
        %v2006 = vadd.f32 0.0, %v2005
        %v2007 = vpop.f32.mrb[0].mxu0
        %2008 = vmatprep.mubr.bf16.mxu0 0
        %2009 = vmatmul.mubr.bf16.gmra.mrb[0].mxu0 %v774
        %v2010 = vpop.f32.mrb[0].mxu0
        %v2011 = vadd.f32 0.0, %v2010
        %v2012 = vpop.f32.mrb[0].mxu0
        %v2013 = vpop.f32.mrb[0].mxu0
        %v2014 = vadd.f32 0.0, %v2013
        %v2015 = vpop.f32.mrb[0].mxu0
        %2016 = vmatprep.mubr.bf16.mxu0 0
        %2017 = vmatmul.mubr.bf16.gmra.mrb[0].mxu0 %v777
        %v2018 = vpop.f32.mrb[0].mxu0
        %v2019 = vadd.f32 0.0, %v2018
        %v2020 = vpop.f32.mrb[0].mxu0
        %v2021 = vpop.f32.mrb[0].mxu0
        %v2022 = vadd.f32 0.0, %v2021
        %v2023 = vpop.f32.mrb[0].mxu0
        %2024 = vmatprep.mubr.bf16.mxu0 0
        %2025 = vmatmul.mubr.bf16.gmra.mrb[0].mxu0 %v780
        %v2026 = vpop.f32.mrb[0].mxu0
        %v2027 = vadd.f32 0.0, %v2026
        %v2028 = vpop.f32.mrb[0].mxu0
        %v2029 = vpop.f32.mrb[0].mxu0
        %v2030 = vadd.f32 0.0, %v2029
        %v2031 = vpop.f32.mrb[0].mxu0
        %2032 = vmatprep.mubr.bf16.mxu0 0
        %2033 = vmatmul.mubr.bf16.gmra.mrb[0].mxu0 %v783
        %v2034 = vpop.f32.mrb[0].mxu0
        %v2035 = vadd.f32 0.0, %v2034
        %v2036 = vpop.f32.mrb[0].mxu0
        %v2037 = vpop.f32.mrb[0].mxu0
        %v2038 = vadd.f32 0.0, %v2037
        %v2039 = vpop.f32.mrb[0].mxu0
        %2040 = vmatprep.mubr.bf16.mxu0 0
        %2041 = vmatmul.mubr.bf16.gmra.mrb[0].mxu0 %v786
        %v2042 = vpop.f32.mrb[0].mxu0
        %v2043 = vadd.f32 0.0, %v2042
        %v2044 = vpop.f32.mrb[0].mxu0
        %v2045 = vpop.f32.mrb[0].mxu0
        %v2046 = vadd.f32 0.0, %v2045
        %v2047 = vpop.f32.mrb[0].mxu0
        %2048 = vmatprep.mubr.bf16.mxu0 0
        %2049 = vmatmul.mubr.bf16.gmra.mrb[0].mxu0 %v789
        %v2050 = vpop.f32.mrb[0].mxu0
        %v2051 = vadd.f32 0.0, %v2050
        %v2052 = vpop.f32.mrb[0].mxu0
        %v2053 = vpop.f32.mrb[0].mxu0
        %v2054 = vadd.f32 0.0, %v2053
        %v2055 = vpop.f32.mrb[0].mxu0
        %2056 = vmatprep.mubr.bf16.mxu0 0
        %2057 = vmatmul.mubr.bf16.gmra.mrb[0].mxu0 %v792
        %v2058 = vpop.f32.mrb[0].mxu0
        %v2059 = vadd.f32 0.0, %v2058
        %v2060 = vpop.f32.mrb[0].mxu0
        %v2061 = vpop.f32.mrb[0].mxu0
        %v2062 = vadd.f32 0.0, %v2061
        %v2063 = vpop.f32.mrb[0].mxu0
        %2064 = vmatprep.mubr.bf16.mxu0 0
        %2065 = vmatmul.mubr.bf16.gmra.mrb[0].mxu0 %v795
        %v2066 = vpop.f32.mrb[0].mxu0
        %v2067 = vadd.f32 0.0, %v2066
        %v2068 = vpop.f32.mrb[0].mxu0
        %v2069 = vpop.f32.mrb[0].mxu0
        %v2070 = vadd.f32 0.0, %v2069
        %v2071 = vpop.f32.mrb[0].mxu0
        %2072 = vmatprep.mubr.bf16.mxu0 0
        %2073 = vmatmul.mubr.bf16.gmra.mrb[0].mxu0 %v1915
        %v2074 = vpop.f32.mrb[0].mxu0
        %v2075 = vadd.f32 0.0, %v2074
        %v2076 = vpop.f32.mrb[0].mxu0
        %v2077 = vpop.f32.mrb[0].mxu0
        %v2078 = vadd.f32 0.0, %v2077
        %v2079 = vpop.f32.mrb[0].mxu0
        %2080 = vdwg.mxu0
        %v2081 = vadd.f32 %v1853, %v1955
        %v2082 = vadd.f32 %v1854, %v1958
        %v2083 = vadd.f32 %v1855, %v1963
        %v2084 = vadd.f32 %v1856, %v1966
        %v2085 = vadd.f32 %v1857, %v1971
        %v2086 = vadd.f32 %v1858, %v1974
        %v2087 = vadd.f32 %v1859, %v1979
        %v2088 = vadd.f32 %v1860, %v1982
        %v2089 = vadd.f32 %v1861, %v1987
        %v2090 = vadd.f32 %v1862, %v1990
        %v2091 = vadd.f32 %v1863, %v1995
        %v2092 = vadd.f32 %v1864, %v1998
        %v2093 = vadd.f32 %v1865, %v2003
        %v2094 = vadd.f32 %v1866, %v2006
        %v2095 = vadd.f32 %v1867, %v2011
        %v2096 = vadd.f32 %v1868, %v2014
        %v2097 = vadd.f32 %v1869, %v2019
        %v2098 = vadd.f32 %v1870, %v2022
        %v2099 = vadd.f32 %v1871, %v2027
        %v2100 = vadd.f32 %v1872, %v2030
        %v2101 = vadd.f32 %v1873, %v2035
        %v2102 = vadd.f32 %v1874, %v2038
        %v2103 = vadd.f32 %v1875, %v2043
        %v2104 = vadd.f32 %v1876, %v2046
        %v2105 = vadd.f32 %v1877, %v2051
        %v2106 = vadd.f32 %v1878, %v2054
        %v2107 = vadd.f32 %v1879, %v2059
        %v2108 = vadd.f32 %v1880, %v2062
        %v2109 = vadd.f32 %v1881, %v2067
        %v2110 = vadd.f32 %v1882, %v2070
        %v2111 = vadd.f32 %v1883, %v2075
        %v2112 = vadd.f32 %v1884, %v2078
        %v2114 = vrot.slane %v304, 5
        %v2115 = vrot.slane %v2114, 4
        %v2116 = vrot.slane %v305, 5
        %v2117 = vsel %vm1272, %v2115, %v2116
        %v2118 = vrot.slane %v2116, 4
        %v2119 = vrot.slane %v306, 5
        %v2120 = vsel %vm1272, %v2118, %v2119
        %s2121 = scalar_lea.vmem %s248, 10
        %v2122 = vld [vmem:[%s2121] sm:$0x3]
        %v2123 = vunpack.c.l.b16 %v2117
        %v2124 = vunpack.c.l.b16 %v2120
        %v2125 = vpack.c.b16 %v2124, %v2123
        %v2127 = vsel %vm748, %v2125, 0
        %v2130 = vsel %vm797, %v2122, 0
        %2132 = vmatprep.subr.bf16.mxu0 0
        %2133 = vmatpush1.bf16.msra.mxu0 %v2130
        %2134 = vmatprep.subr.bf16.mxu0 0
        %2135 = vmatpush1.bf16.msra.mxu0 0
        %2136 = vmatprep.subr.bf16.mxu0 0
        %2137 = vmatpush1.bf16.msra.mxu0 0
        %2138 = vmatprep.subr.bf16.mxu0 0
        %2139 = vmatpush1.bf16.msra.mxu0 0
        %2140 = vmatprep.subr.bf16.mxu0 0
        %2141 = vmatpush1.bf16.msra.mxu0 0
        %2142 = vmatprep.subr.bf16.mxu0 0
        %2143 = vmatpush1.bf16.msra.mxu0 0
        %2144 = vmatprep.subr.bf16.mxu0 0
        %2145 = vmatpush1.bf16.msra.mxu0 0
        %2146 = vmatprep.subr.bf16.mxu0 0
        %2147 = vmatpush1.bf16.msra.mxu0 0
        %2148 = vmatprep.subr.bf16.mxu0 0
        %2149 = vmatpush1.bf16.msra.mxu0 0
        %2150 = vmatprep.subr.bf16.mxu0 0
        %2151 = vmatpush1.bf16.msra.mxu0 0
        %2152 = vmatprep.subr.bf16.mxu0 0
        %2153 = vmatpush1.bf16.msra.mxu0 0
        %2154 = vmatprep.subr.bf16.mxu0 0
        %2155 = vmatpush1.bf16.msra.mxu0 0
        %2156 = vmatprep.subr.bf16.mxu0 0
        %2157 = vmatpush1.bf16.msra.mxu0 0
        %2158 = vmatprep.subr.bf16.mxu0 0
        %2159 = vmatpush1.bf16.msra.mxu0 0
        %2160 = vmatprep.subr.bf16.mxu0 0
        %2161 = vmatpush1.bf16.msra.mxu0 0
        %2162 = vmatprep.subr.bf16.mxu0 0
        %2163 = vmatpush1.bf16.msra.mxu0 0
        %2164 = vmatprep.mubr.bf16.mxu0 0
        %2165 = vmatmul.mubr.bf16.gmra.mrb[0].mxu0 %v1439
        %v2166 = vpop.f32.mrb[0].mxu0
        %v2167 = vadd.f32 0.0, %v2166
        %v2168 = vpop.f32.mrb[0].mxu0
        %v2169 = vpop.f32.mrb[0].mxu0
        %v2170 = vadd.f32 0.0, %v2169
        %v2171 = vpop.f32.mrb[0].mxu0
        %2172 = vmatprep.mubr.bf16.mxu0 0
        %2173 = vmatmul.mubr.bf16.gmra.mrb[0].mxu0 %v1442
        %v2174 = vpop.f32.mrb[0].mxu0
        %v2175 = vadd.f32 0.0, %v2174
        %v2176 = vpop.f32.mrb[0].mxu0
        %v2177 = vpop.f32.mrb[0].mxu0
        %v2178 = vadd.f32 0.0, %v2177
        %v2179 = vpop.f32.mrb[0].mxu0
        %2180 = vmatprep.mubr.bf16.mxu0 0
        %2181 = vmatmul.mubr.bf16.gmra.mrb[0].mxu0 %v1445
        %v2182 = vpop.f32.mrb[0].mxu0
        %v2183 = vadd.f32 0.0, %v2182
        %v2184 = vpop.f32.mrb[0].mxu0
        %v2185 = vpop.f32.mrb[0].mxu0
        %v2186 = vadd.f32 0.0, %v2185
        %v2187 = vpop.f32.mrb[0].mxu0
        %2188 = vmatprep.mubr.bf16.mxu0 0
        %2189 = vmatmul.mubr.bf16.gmra.mrb[0].mxu0 %v1448
        %v2190 = vpop.f32.mrb[0].mxu0
        %v2191 = vadd.f32 0.0, %v2190
        %v2192 = vpop.f32.mrb[0].mxu0
        %v2193 = vpop.f32.mrb[0].mxu0
        %v2194 = vadd.f32 0.0, %v2193
        %v2195 = vpop.f32.mrb[0].mxu0
        %2196 = vmatprep.mubr.bf16.mxu0 0
        %2197 = vmatmul.mubr.bf16.gmra.mrb[0].mxu0 %v1451
        %v2198 = vpop.f32.mrb[0].mxu0
        %v2199 = vadd.f32 0.0, %v2198
        %v2200 = vpop.f32.mrb[0].mxu0
        %v2201 = vpop.f32.mrb[0].mxu0
        %v2202 = vadd.f32 0.0, %v2201
        %v2203 = vpop.f32.mrb[0].mxu0
        %2204 = vmatprep.mubr.bf16.mxu0 0
        %2205 = vmatmul.mubr.bf16.gmra.mrb[0].mxu0 %v1454
        %v2206 = vpop.f32.mrb[0].mxu0
        %v2207 = vadd.f32 0.0, %v2206
        %v2208 = vpop.f32.mrb[0].mxu0
        %v2209 = vpop.f32.mrb[0].mxu0
        %v2210 = vadd.f32 0.0, %v2209
        %v2211 = vpop.f32.mrb[0].mxu0
        %2212 = vmatprep.mubr.bf16.mxu0 0
        %2213 = vmatmul.mubr.bf16.gmra.mrb[0].mxu0 %v1457
        %v2214 = vpop.f32.mrb[0].mxu0
        %v2215 = vadd.f32 0.0, %v2214
        %v2216 = vpop.f32.mrb[0].mxu0
        %v2217 = vpop.f32.mrb[0].mxu0
        %v2218 = vadd.f32 0.0, %v2217
        %v2219 = vpop.f32.mrb[0].mxu0
        %2220 = vmatprep.mubr.bf16.mxu0 0
        %2221 = vmatmul.mubr.bf16.gmra.mrb[0].mxu0 %v1460
        %v2222 = vpop.f32.mrb[0].mxu0
        %v2223 = vadd.f32 0.0, %v2222
        %v2224 = vpop.f32.mrb[0].mxu0
        %v2225 = vpop.f32.mrb[0].mxu0
        %v2226 = vadd.f32 0.0, %v2225
        %v2227 = vpop.f32.mrb[0].mxu0
        %2228 = vmatprep.mubr.bf16.mxu0 0
        %2229 = vmatmul.mubr.bf16.gmra.mrb[0].mxu0 %v1463
        %v2230 = vpop.f32.mrb[0].mxu0
        %v2231 = vadd.f32 0.0, %v2230
        %v2232 = vpop.f32.mrb[0].mxu0
        %v2233 = vpop.f32.mrb[0].mxu0
        %v2234 = vadd.f32 0.0, %v2233
        %v2235 = vpop.f32.mrb[0].mxu0
        %2236 = vmatprep.mubr.bf16.mxu0 0
        %2237 = vmatmul.mubr.bf16.gmra.mrb[0].mxu0 %v1466
        %v2238 = vpop.f32.mrb[0].mxu0
        %v2239 = vadd.f32 0.0, %v2238
        %v2240 = vpop.f32.mrb[0].mxu0
        %v2241 = vpop.f32.mrb[0].mxu0
        %v2242 = vadd.f32 0.0, %v2241
        %v2243 = vpop.f32.mrb[0].mxu0
        %2244 = vmatprep.mubr.bf16.mxu0 0
        %2245 = vmatmul.mubr.bf16.gmra.mrb[0].mxu0 %v1469
        %v2246 = vpop.f32.mrb[0].mxu0
        %v2247 = vadd.f32 0.0, %v2246
        %v2248 = vpop.f32.mrb[0].mxu0
        %v2249 = vpop.f32.mrb[0].mxu0
        %v2250 = vadd.f32 0.0, %v2249
        %v2251 = vpop.f32.mrb[0].mxu0
        %2252 = vmatprep.mubr.bf16.mxu0 0
        %2253 = vmatmul.mubr.bf16.gmra.mrb[0].mxu0 %v1472
        %v2254 = vpop.f32.mrb[0].mxu0
        %v2255 = vadd.f32 0.0, %v2254
        %v2256 = vpop.f32.mrb[0].mxu0
        %v2257 = vpop.f32.mrb[0].mxu0
        %v2258 = vadd.f32 0.0, %v2257
        %v2259 = vpop.f32.mrb[0].mxu0
        %2260 = vmatprep.mubr.bf16.mxu0 0
        %2261 = vmatmul.mubr.bf16.gmra.mrb[0].mxu0 %v1475
        %v2262 = vpop.f32.mrb[0].mxu0
        %v2263 = vadd.f32 0.0, %v2262
        %v2264 = vpop.f32.mrb[0].mxu0
        %v2265 = vpop.f32.mrb[0].mxu0
        %v2266 = vadd.f32 0.0, %v2265
        %v2267 = vpop.f32.mrb[0].mxu0
        %2268 = vmatprep.mubr.bf16.mxu0 0
        %2269 = vmatmul.mubr.bf16.gmra.mrb[0].mxu0 %v1478
        %v2270 = vpop.f32.mrb[0].mxu0
        %v2271 = vadd.f32 0.0, %v2270
        %v2272 = vpop.f32.mrb[0].mxu0
        %v2273 = vpop.f32.mrb[0].mxu0
        %v2274 = vadd.f32 0.0, %v2273
        %v2275 = vpop.f32.mrb[0].mxu0
        %2276 = vmatprep.mubr.bf16.mxu0 0
        %2277 = vmatmul.mubr.bf16.gmra.mrb[0].mxu0 %v1481
        %v2278 = vpop.f32.mrb[0].mxu0
        %v2279 = vadd.f32 0.0, %v2278
        %v2280 = vpop.f32.mrb[0].mxu0
        %v2281 = vpop.f32.mrb[0].mxu0
        %v2282 = vadd.f32 0.0, %v2281
        %v2283 = vpop.f32.mrb[0].mxu0
        %2284 = vmatprep.mubr.bf16.mxu0 0
        %2285 = vmatmul.mubr.bf16.gmra.mrb[0].mxu0 %v2127
        %v2286 = vpop.f32.mrb[0].mxu0
        %v2287 = vadd.f32 0.0, %v2286
        %v2288 = vpop.f32.mrb[0].mxu0
        %v2289 = vpop.f32.mrb[0].mxu0
        %v2290 = vadd.f32 0.0, %v2289
        %v2291 = vpop.f32.mrb[0].mxu0
        %2292 = vdwg.mxu0
        %v2293 = vadd.f32 %v2081, %v2167
        %v2294 = vadd.f32 %v2082, %v2170
        %v2295 = vadd.f32 %v2083, %v2175
        %v2296 = vadd.f32 %v2084, %v2178
        %v2297 = vadd.f32 %v2085, %v2183
        %v2298 = vadd.f32 %v2086, %v2186
        %v2299 = vadd.f32 %v2087, %v2191
        %v2300 = vadd.f32 %v2088, %v2194
        %v2301 = vadd.f32 %v2089, %v2199
        %v2302 = vadd.f32 %v2090, %v2202
        %v2303 = vadd.f32 %v2091, %v2207
        %v2304 = vadd.f32 %v2092, %v2210
        %v2305 = vadd.f32 %v2093, %v2215
        %v2306 = vadd.f32 %v2094, %v2218
        %v2307 = vadd.f32 %v2095, %v2223
        %v2308 = vadd.f32 %v2096, %v2226
        %v2309 = vadd.f32 %v2097, %v2231
        %v2310 = vadd.f32 %v2098, %v2234
        %v2311 = vadd.f32 %v2099, %v2239
        %v2312 = vadd.f32 %v2100, %v2242
        %v2313 = vadd.f32 %v2101, %v2247
        %v2314 = vadd.f32 %v2102, %v2250
        %v2315 = vadd.f32 %v2103, %v2255
        %v2316 = vadd.f32 %v2104, %v2258
        %v2317 = vadd.f32 %v2105, %v2263
        %v2318 = vadd.f32 %v2106, %v2266
        %v2319 = vadd.f32 %v2107, %v2271
        %v2320 = vadd.f32 %v2108, %v2274
        %v2321 = vadd.f32 %v2109, %v2279
        %v2322 = vadd.f32 %v2110, %v2282
        %v2323 = vadd.f32 %v2111, %v2287
        %v2324 = vadd.f32 %v2112, %v2290
        %s2325 = scalar_lea.vmem %s248, 12
        %v2326 = vld [vmem:[%s2325] sm:$0x3]
        %v2329 = vunpack.c.l.b16 %v307
        %v2330 = vunpack.c.l.b16 %v308
        %v2331 = vpack.c.b16 %v2330, %v2329
        %v2333 = vsel %vm748, %v2331, 0
        %v2336 = vsel %vm797, %v2326, 0
        %2338 = vmatprep.subr.bf16.mxu0 0
        %2339 = vmatpush1.bf16.msra.mxu0 %v2336
        %2340 = vmatprep.subr.bf16.mxu0 0
        %2341 = vmatpush1.bf16.msra.mxu0 0
        %2342 = vmatprep.subr.bf16.mxu0 0
        %2343 = vmatpush1.bf16.msra.mxu0 0
        %2344 = vmatprep.subr.bf16.mxu0 0
        %2345 = vmatpush1.bf16.msra.mxu0 0
        %2346 = vmatprep.subr.bf16.mxu0 0
        %2347 = vmatpush1.bf16.msra.mxu0 0
        %2348 = vmatprep.subr.bf16.mxu0 0
        %2349 = vmatpush1.bf16.msra.mxu0 0
        %2350 = vmatprep.subr.bf16.mxu0 0
        %2351 = vmatpush1.bf16.msra.mxu0 0
        %2352 = vmatprep.subr.bf16.mxu0 0
        %2353 = vmatpush1.bf16.msra.mxu0 0
        %2354 = vmatprep.subr.bf16.mxu0 0
        %2355 = vmatpush1.bf16.msra.mxu0 0
        %2356 = vmatprep.subr.bf16.mxu0 0
        %2357 = vmatpush1.bf16.msra.mxu0 0
        %2358 = vmatprep.subr.bf16.mxu0 0
        %2359 = vmatpush1.bf16.msra.mxu0 0
        %2360 = vmatprep.subr.bf16.mxu0 0
        %2361 = vmatpush1.bf16.msra.mxu0 0
        %2362 = vmatprep.subr.bf16.mxu0 0
        %2363 = vmatpush1.bf16.msra.mxu0 0
        %2364 = vmatprep.subr.bf16.mxu0 0
        %2365 = vmatpush1.bf16.msra.mxu0 0
        %2366 = vmatprep.subr.bf16.mxu0 0
        %2367 = vmatpush1.bf16.msra.mxu0 0
        %2368 = vmatprep.subr.bf16.mxu0 0
        %2369 = vmatpush1.bf16.msra.mxu0 0
        %2370 = vmatprep.mubr.bf16.mxu0 0
        %2371 = vmatmul.mubr.bf16.gmra.mrb[0].mxu0 %v1049
        %v2372 = vpop.f32.mrb[0].mxu0
        %v2373 = vadd.f32 0.0, %v2372
        %v2374 = vpop.f32.mrb[0].mxu0
        %v2375 = vpop.f32.mrb[0].mxu0
        %v2376 = vadd.f32 0.0, %v2375
        %v2377 = vpop.f32.mrb[0].mxu0
        %2378 = vmatprep.mubr.bf16.mxu0 0
        %2379 = vmatmul.mubr.bf16.gmra.mrb[0].mxu0 %v1052
        %v2380 = vpop.f32.mrb[0].mxu0
        %v2381 = vadd.f32 0.0, %v2380
        %v2382 = vpop.f32.mrb[0].mxu0
        %v2383 = vpop.f32.mrb[0].mxu0
        %v2384 = vadd.f32 0.0, %v2383
        %v2385 = vpop.f32.mrb[0].mxu0
        %2386 = vmatprep.mubr.bf16.mxu0 0
        %2387 = vmatmul.mubr.bf16.gmra.mrb[0].mxu0 %v1055
        %v2388 = vpop.f32.mrb[0].mxu0
        %v2389 = vadd.f32 0.0, %v2388
        %v2390 = vpop.f32.mrb[0].mxu0
        %v2391 = vpop.f32.mrb[0].mxu0
        %v2392 = vadd.f32 0.0, %v2391
        %v2393 = vpop.f32.mrb[0].mxu0
        %2394 = vmatprep.mubr.bf16.mxu0 0
        %2395 = vmatmul.mubr.bf16.gmra.mrb[0].mxu0 %v1058
        %v2396 = vpop.f32.mrb[0].mxu0
        %v2397 = vadd.f32 0.0, %v2396
        %v2398 = vpop.f32.mrb[0].mxu0
        %v2399 = vpop.f32.mrb[0].mxu0
        %v2400 = vadd.f32 0.0, %v2399
        %v2401 = vpop.f32.mrb[0].mxu0
        %2402 = vmatprep.mubr.bf16.mxu0 0
        %2403 = vmatmul.mubr.bf16.gmra.mrb[0].mxu0 %v1061
        %v2404 = vpop.f32.mrb[0].mxu0
        %v2405 = vadd.f32 0.0, %v2404
        %v2406 = vpop.f32.mrb[0].mxu0
        %v2407 = vpop.f32.mrb[0].mxu0
        %v2408 = vadd.f32 0.0, %v2407
        %v2409 = vpop.f32.mrb[0].mxu0
        %2410 = vmatprep.mubr.bf16.mxu0 0
        %2411 = vmatmul.mubr.bf16.gmra.mrb[0].mxu0 %v1064
        %v2412 = vpop.f32.mrb[0].mxu0
        %v2413 = vadd.f32 0.0, %v2412
        %v2414 = vpop.f32.mrb[0].mxu0
        %v2415 = vpop.f32.mrb[0].mxu0
        %v2416 = vadd.f32 0.0, %v2415
        %v2417 = vpop.f32.mrb[0].mxu0
        %2418 = vmatprep.mubr.bf16.mxu0 0
        %2419 = vmatmul.mubr.bf16.gmra.mrb[0].mxu0 %v1067
        %v2420 = vpop.f32.mrb[0].mxu0
        %v2421 = vadd.f32 0.0, %v2420
        %v2422 = vpop.f32.mrb[0].mxu0
        %v2423 = vpop.f32.mrb[0].mxu0
        %v2424 = vadd.f32 0.0, %v2423
        %v2425 = vpop.f32.mrb[0].mxu0
        %2426 = vmatprep.mubr.bf16.mxu0 0
        %2427 = vmatmul.mubr.bf16.gmra.mrb[0].mxu0 %v1070
        %v2428 = vpop.f32.mrb[0].mxu0
        %v2429 = vadd.f32 0.0, %v2428
        %v2430 = vpop.f32.mrb[0].mxu0
        %v2431 = vpop.f32.mrb[0].mxu0
        %v2432 = vadd.f32 0.0, %v2431
        %v2433 = vpop.f32.mrb[0].mxu0
        %2434 = vmatprep.mubr.bf16.mxu0 0
        %2435 = vmatmul.mubr.bf16.gmra.mrb[0].mxu0 %v1073
        %v2436 = vpop.f32.mrb[0].mxu0
        %v2437 = vadd.f32 0.0, %v2436
        %v2438 = vpop.f32.mrb[0].mxu0
        %v2439 = vpop.f32.mrb[0].mxu0
        %v2440 = vadd.f32 0.0, %v2439
        %v2441 = vpop.f32.mrb[0].mxu0
        %2442 = vmatprep.mubr.bf16.mxu0 0
        %2443 = vmatmul.mubr.bf16.gmra.mrb[0].mxu0 %v1076
        %v2444 = vpop.f32.mrb[0].mxu0
        %v2445 = vadd.f32 0.0, %v2444
        %v2446 = vpop.f32.mrb[0].mxu0
        %v2447 = vpop.f32.mrb[0].mxu0
        %v2448 = vadd.f32 0.0, %v2447
        %v2449 = vpop.f32.mrb[0].mxu0
        %2450 = vmatprep.mubr.bf16.mxu0 0
        %2451 = vmatmul.mubr.bf16.gmra.mrb[0].mxu0 %v1079
        %v2452 = vpop.f32.mrb[0].mxu0
        %v2453 = vadd.f32 0.0, %v2452
        %v2454 = vpop.f32.mrb[0].mxu0
        %v2455 = vpop.f32.mrb[0].mxu0
        %v2456 = vadd.f32 0.0, %v2455
        %v2457 = vpop.f32.mrb[0].mxu0
        %2458 = vmatprep.mubr.bf16.mxu0 0
        %2459 = vmatmul.mubr.bf16.gmra.mrb[0].mxu0 %v1082
        %v2460 = vpop.f32.mrb[0].mxu0
        %v2461 = vadd.f32 0.0, %v2460
        %v2462 = vpop.f32.mrb[0].mxu0
        %v2463 = vpop.f32.mrb[0].mxu0
        %v2464 = vadd.f32 0.0, %v2463
        %v2465 = vpop.f32.mrb[0].mxu0
        %2466 = vmatprep.mubr.bf16.mxu0 0
        %2467 = vmatmul.mubr.bf16.gmra.mrb[0].mxu0 %v1085
        %v2468 = vpop.f32.mrb[0].mxu0
        %v2469 = vadd.f32 0.0, %v2468
        %v2470 = vpop.f32.mrb[0].mxu0
        %v2471 = vpop.f32.mrb[0].mxu0
        %v2472 = vadd.f32 0.0, %v2471
        %v2473 = vpop.f32.mrb[0].mxu0
        %2474 = vmatprep.mubr.bf16.mxu0 0
        %2475 = vmatmul.mubr.bf16.gmra.mrb[0].mxu0 %v1088
        %v2476 = vpop.f32.mrb[0].mxu0
        %v2477 = vadd.f32 0.0, %v2476
        %v2478 = vpop.f32.mrb[0].mxu0
        %v2479 = vpop.f32.mrb[0].mxu0
        %v2480 = vadd.f32 0.0, %v2479
        %v2481 = vpop.f32.mrb[0].mxu0
        %2482 = vmatprep.mubr.bf16.mxu0 0
        %2483 = vmatmul.mubr.bf16.gmra.mrb[0].mxu0 %v1687
        %v2484 = vpop.f32.mrb[0].mxu0
        %v2485 = vadd.f32 0.0, %v2484
        %v2486 = vpop.f32.mrb[0].mxu0
        %v2487 = vpop.f32.mrb[0].mxu0
        %v2488 = vadd.f32 0.0, %v2487
        %v2489 = vpop.f32.mrb[0].mxu0
        %2490 = vmatprep.mubr.bf16.mxu0 0
        %2491 = vmatmul.mubr.bf16.gmra.mrb[0].mxu0 %v2333
        %v2492 = vpop.f32.mrb[0].mxu0
        %v2493 = vadd.f32 0.0, %v2492
        %v2494 = vpop.f32.mrb[0].mxu0
        %v2495 = vpop.f32.mrb[0].mxu0
        %v2496 = vadd.f32 0.0, %v2495
        %v2497 = vpop.f32.mrb[0].mxu0
        %2498 = vdwg.mxu0
        %v2499 = vadd.f32 %v2293, %v2373
        %v2500 = vadd.f32 %v2294, %v2376
        %v2501 = vadd.f32 %v2295, %v2381
        %v2502 = vadd.f32 %v2296, %v2384
        %v2503 = vadd.f32 %v2297, %v2389
        %v2504 = vadd.f32 %v2298, %v2392
        %v2505 = vadd.f32 %v2299, %v2397
        %v2506 = vadd.f32 %v2300, %v2400
        %v2507 = vadd.f32 %v2301, %v2405
        %v2508 = vadd.f32 %v2302, %v2408
        %v2509 = vadd.f32 %v2303, %v2413
        %v2510 = vadd.f32 %v2304, %v2416
        %v2511 = vadd.f32 %v2305, %v2421
        %v2512 = vadd.f32 %v2306, %v2424
        %v2513 = vadd.f32 %v2307, %v2429
        %v2514 = vadd.f32 %v2308, %v2432
        %v2515 = vadd.f32 %v2309, %v2437
        %v2516 = vadd.f32 %v2310, %v2440
        %v2517 = vadd.f32 %v2311, %v2445
        %v2518 = vadd.f32 %v2312, %v2448
        %v2519 = vadd.f32 %v2313, %v2453
        %v2520 = vadd.f32 %v2314, %v2456
        %v2521 = vadd.f32 %v2315, %v2461
        %v2522 = vadd.f32 %v2316, %v2464
        %v2523 = vadd.f32 %v2317, %v2469
        %v2524 = vadd.f32 %v2318, %v2472
        %v2525 = vadd.f32 %v2319, %v2477
        %v2526 = vadd.f32 %v2320, %v2480
        %v2527 = vadd.f32 %v2321, %v2485
        %v2528 = vadd.f32 %v2322, %v2488
        %v2529 = vadd.f32 %v2323, %v2493
        %v2530 = vadd.f32 %v2324, %v2496
        %v2532 = vshrl.u32 %v307, 16
        %v2534 = vrot.slane %v2532, 4
        %v2535 = vshll.u32 %v307, 16
        %v2537 = vrot.slane %v2535, 5
        %v2538 = vor.u32 %v2534, %v2537
        %v2539 = vrot.slane %v2538, 4
        %v2541 = vshll.u32 %v308, 16
        %v2543 = vrot.slane %v2541, 5
        %v2544 = vsel %vm313, %v2539, %v2543
        %v2545 = vshrl.u32 %v308, 16
        %v2547 = vrot.slane %v2545, 4
        %v2548 = vor.u32 %v2547, %v2543
        %v2549 = vrot.slane %v2548, 4
        %v2551 = vshll.u32 %v309, 16
        %v2553 = vrot.slane %v2551, 5
        %v2554 = vsel %vm313, %v2549, %v2553
        %s2555 = scalar_lea.vmem %s248, 14
        %v2556 = vld [vmem:[%s2555] sm:$0x3]
        %v2557 = vunpack.c.l.b16 %v2544
        %v2558 = vunpack.c.l.b16 %v2554
        %v2559 = vpack.c.b16 %v2558, %v2557
        %v2561 = vsel %vm748, %v2559, 0
        %v2564 = vsel %vm797, %v2556, 0
        %2566 = vmatprep.subr.bf16.mxu0 0
        %2567 = vmatpush1.bf16.msra.mxu0 %v2564
        %2568 = vmatprep.subr.bf16.mxu0 0
        %2569 = vmatpush1.bf16.msra.mxu0 0
        %2570 = vmatprep.subr.bf16.mxu0 0
        %2571 = vmatpush1.bf16.msra.mxu0 0
        %2572 = vmatprep.subr.bf16.mxu0 0
        %2573 = vmatpush1.bf16.msra.mxu0 0
        %2574 = vmatprep.subr.bf16.mxu0 0
        %2575 = vmatpush1.bf16.msra.mxu0 0
        %2576 = vmatprep.subr.bf16.mxu0 0
        %2577 = vmatpush1.bf16.msra.mxu0 0
        %2578 = vmatprep.subr.bf16.mxu0 0
        %2579 = vmatpush1.bf16.msra.mxu0 0
        %2580 = vmatprep.subr.bf16.mxu0 0
        %2581 = vmatpush1.bf16.msra.mxu0 0
        %2582 = vmatprep.subr.bf16.mxu0 0
        %2583 = vmatpush1.bf16.msra.mxu0 0
        %2584 = vmatprep.subr.bf16.mxu0 0
        %2585 = vmatpush1.bf16.msra.mxu0 0
        %2586 = vmatprep.subr.bf16.mxu0 0
        %2587 = vmatpush1.bf16.msra.mxu0 0
        %2588 = vmatprep.subr.bf16.mxu0 0
        %2589 = vmatpush1.bf16.msra.mxu0 0
        %2590 = vmatprep.subr.bf16.mxu0 0
        %2591 = vmatpush1.bf16.msra.mxu0 0
        %2592 = vmatprep.subr.bf16.mxu0 0
        %2593 = vmatpush1.bf16.msra.mxu0 0
        %2594 = vmatprep.subr.bf16.mxu0 0
        %2595 = vmatpush1.bf16.msra.mxu0 0
        %2596 = vmatprep.subr.bf16.mxu0 0
        %2597 = vmatpush1.bf16.msra.mxu0 0
        %2598 = vmatprep.mubr.bf16.mxu0 0
        %2599 = vmatmul.mubr.bf16.gmra.mrb[0].mxu0 %v756
        %v2600 = vpop.f32.mrb[0].mxu0
        %v2601 = vadd.f32 0.0, %v2600
        %v2602 = vpop.f32.mrb[0].mxu0
        %v2603 = vpop.f32.mrb[0].mxu0
        %v2604 = vadd.f32 0.0, %v2603
        %v2605 = vpop.f32.mrb[0].mxu0
        %2606 = vmatprep.mubr.bf16.mxu0 0
        %2607 = vmatmul.mubr.bf16.gmra.mrb[0].mxu0 %v759
        %v2608 = vpop.f32.mrb[0].mxu0
        %v2609 = vadd.f32 0.0, %v2608
        %v2610 = vpop.f32.mrb[0].mxu0
        %v2611 = vpop.f32.mrb[0].mxu0
        %v2612 = vadd.f32 0.0, %v2611
        %v2613 = vpop.f32.mrb[0].mxu0
        %2614 = vmatprep.mubr.bf16.mxu0 0
        %2615 = vmatmul.mubr.bf16.gmra.mrb[0].mxu0 %v762
        %v2616 = vpop.f32.mrb[0].mxu0
        %v2617 = vadd.f32 0.0, %v2616
        %v2618 = vpop.f32.mrb[0].mxu0
        %v2619 = vpop.f32.mrb[0].mxu0
        %v2620 = vadd.f32 0.0, %v2619
        %v2621 = vpop.f32.mrb[0].mxu0
        %2622 = vmatprep.mubr.bf16.mxu0 0
        %2623 = vmatmul.mubr.bf16.gmra.mrb[0].mxu0 %v765
        %v2624 = vpop.f32.mrb[0].mxu0
        %v2625 = vadd.f32 0.0, %v2624
        %v2626 = vpop.f32.mrb[0].mxu0
        %v2627 = vpop.f32.mrb[0].mxu0
        %v2628 = vadd.f32 0.0, %v2627
        %v2629 = vpop.f32.mrb[0].mxu0
        %2630 = vmatprep.mubr.bf16.mxu0 0
        %2631 = vmatmul.mubr.bf16.gmra.mrb[0].mxu0 %v768
        %v2632 = vpop.f32.mrb[0].mxu0
        %v2633 = vadd.f32 0.0, %v2632
        %v2634 = vpop.f32.mrb[0].mxu0
        %v2635 = vpop.f32.mrb[0].mxu0
        %v2636 = vadd.f32 0.0, %v2635
        %v2637 = vpop.f32.mrb[0].mxu0
        %2638 = vmatprep.mubr.bf16.mxu0 0
        %2639 = vmatmul.mubr.bf16.gmra.mrb[0].mxu0 %v771
        %v2640 = vpop.f32.mrb[0].mxu0
        %v2641 = vadd.f32 0.0, %v2640
        %v2642 = vpop.f32.mrb[0].mxu0
        %v2643 = vpop.f32.mrb[0].mxu0
        %v2644 = vadd.f32 0.0, %v2643
        %v2645 = vpop.f32.mrb[0].mxu0
        %2646 = vmatprep.mubr.bf16.mxu0 0
        %2647 = vmatmul.mubr.bf16.gmra.mrb[0].mxu0 %v774
        %v2648 = vpop.f32.mrb[0].mxu0
        %v2649 = vadd.f32 0.0, %v2648
        %v2650 = vpop.f32.mrb[0].mxu0
        %v2651 = vpop.f32.mrb[0].mxu0
        %v2652 = vadd.f32 0.0, %v2651
        %v2653 = vpop.f32.mrb[0].mxu0
        %2654 = vmatprep.mubr.bf16.mxu0 0
        %2655 = vmatmul.mubr.bf16.gmra.mrb[0].mxu0 %v777
        %v2656 = vpop.f32.mrb[0].mxu0
        %v2657 = vadd.f32 0.0, %v2656
        %v2658 = vpop.f32.mrb[0].mxu0
        %v2659 = vpop.f32.mrb[0].mxu0
        %v2660 = vadd.f32 0.0, %v2659
        %v2661 = vpop.f32.mrb[0].mxu0
        %2662 = vmatprep.mubr.bf16.mxu0 0
        %2663 = vmatmul.mubr.bf16.gmra.mrb[0].mxu0 %v780
        %v2664 = vpop.f32.mrb[0].mxu0
        %v2665 = vadd.f32 0.0, %v2664
        %v2666 = vpop.f32.mrb[0].mxu0
        %v2667 = vpop.f32.mrb[0].mxu0
        %v2668 = vadd.f32 0.0, %v2667
        %v2669 = vpop.f32.mrb[0].mxu0
        %2670 = vmatprep.mubr.bf16.mxu0 0
        %2671 = vmatmul.mubr.bf16.gmra.mrb[0].mxu0 %v783
        %v2672 = vpop.f32.mrb[0].mxu0
        %v2673 = vadd.f32 0.0, %v2672
        %v2674 = vpop.f32.mrb[0].mxu0
        %v2675 = vpop.f32.mrb[0].mxu0
        %v2676 = vadd.f32 0.0, %v2675
        %v2677 = vpop.f32.mrb[0].mxu0
        %2678 = vmatprep.mubr.bf16.mxu0 0
        %2679 = vmatmul.mubr.bf16.gmra.mrb[0].mxu0 %v786
        %v2680 = vpop.f32.mrb[0].mxu0
        %v2681 = vadd.f32 0.0, %v2680
        %v2682 = vpop.f32.mrb[0].mxu0
        %v2683 = vpop.f32.mrb[0].mxu0
        %v2684 = vadd.f32 0.0, %v2683
        %v2685 = vpop.f32.mrb[0].mxu0
        %2686 = vmatprep.mubr.bf16.mxu0 0
        %2687 = vmatmul.mubr.bf16.gmra.mrb[0].mxu0 %v789
        %v2688 = vpop.f32.mrb[0].mxu0
        %v2689 = vadd.f32 0.0, %v2688
        %v2690 = vpop.f32.mrb[0].mxu0
        %v2691 = vpop.f32.mrb[0].mxu0
        %v2692 = vadd.f32 0.0, %v2691
        %v2693 = vpop.f32.mrb[0].mxu0
        %2694 = vmatprep.mubr.bf16.mxu0 0
        %2695 = vmatmul.mubr.bf16.gmra.mrb[0].mxu0 %v792
        %v2696 = vpop.f32.mrb[0].mxu0
        %v2697 = vadd.f32 0.0, %v2696
        %v2698 = vpop.f32.mrb[0].mxu0
        %v2699 = vpop.f32.mrb[0].mxu0
        %v2700 = vadd.f32 0.0, %v2699
        %v2701 = vpop.f32.mrb[0].mxu0
        %2702 = vmatprep.mubr.bf16.mxu0 0
        %2703 = vmatmul.mubr.bf16.gmra.mrb[0].mxu0 %v795
        %v2704 = vpop.f32.mrb[0].mxu0
        %v2705 = vadd.f32 0.0, %v2704
        %v2706 = vpop.f32.mrb[0].mxu0
        %v2707 = vpop.f32.mrb[0].mxu0
        %v2708 = vadd.f32 0.0, %v2707
        %v2709 = vpop.f32.mrb[0].mxu0
        %2710 = vmatprep.mubr.bf16.mxu0 0
        %2711 = vmatmul.mubr.bf16.gmra.mrb[0].mxu0 %v1915
        %v2712 = vpop.f32.mrb[0].mxu0
        %v2713 = vadd.f32 0.0, %v2712
        %v2714 = vpop.f32.mrb[0].mxu0
        %v2715 = vpop.f32.mrb[0].mxu0
        %v2716 = vadd.f32 0.0, %v2715
        %v2717 = vpop.f32.mrb[0].mxu0
        %2718 = vmatprep.mubr.bf16.mxu0 0
        %2719 = vmatmul.mubr.bf16.gmra.mrb[0].mxu0 %v2561
        %v2720 = vpop.f32.mrb[0].mxu0
        %v2721 = vadd.f32 0.0, %v2720
        %v2722 = vpop.f32.mrb[0].mxu0
        %v2723 = vpop.f32.mrb[0].mxu0
        %v2724 = vadd.f32 0.0, %v2723
        %v2725 = vpop.f32.mrb[0].mxu0
        %2726 = vdwg.mxu0
        %v2727 = vadd.f32 %v2499, %v2601
        %v2728 = vadd.f32 %v2500, %v2604
        %v2729 = vadd.f32 %v2501, %v2609
        %v2730 = vadd.f32 %v2502, %v2612
        %v2731 = vadd.f32 %v2503, %v2617
        %v2732 = vadd.f32 %v2504, %v2620
        %v2733 = vadd.f32 %v2505, %v2625
        %v2734 = vadd.f32 %v2506, %v2628
        %v2735 = vadd.f32 %v2507, %v2633
        %v2736 = vadd.f32 %v2508, %v2636
        %v2737 = vadd.f32 %v2509, %v2641
        %v2738 = vadd.f32 %v2510, %v2644
        %v2739 = vadd.f32 %v2511, %v2649
        %v2740 = vadd.f32 %v2512, %v2652
        %v2741 = vadd.f32 %v2513, %v2657
        %v2742 = vadd.f32 %v2514, %v2660
        %v2743 = vadd.f32 %v2515, %v2665
        %v2744 = vadd.f32 %v2516, %v2668
        %v2745 = vadd.f32 %v2517, %v2673
        %v2746 = vadd.f32 %v2518, %v2676
        %v2747 = vadd.f32 %v2519, %v2681
        %v2748 = vadd.f32 %v2520, %v2684
        %v2749 = vadd.f32 %v2521, %v2689
        %v2750 = vadd.f32 %v2522, %v2692
        %v2751 = vadd.f32 %v2523, %v2697
        %v2752 = vadd.f32 %v2524, %v2700
        %v2753 = vadd.f32 %v2525, %v2705
        %v2754 = vadd.f32 %v2526, %v2708
        %v2755 = vadd.f32 %v2527, %v2713
        %v2756 = vadd.f32 %v2528, %v2716
        %v2757 = vadd.f32 %v2529, %v2721
        %v2758 = vadd.f32 %v2530, %v2724
        %v2760 = vrot.slane %v307, 5
        %v2761 = vrot.slane %v2760, 4
        %v2762 = vrot.slane %v308, 5
        %v2763 = vsel %vm1272, %v2761, %v2762
        %v2764 = vrot.slane %v2762, 4
        %v2765 = vrot.slane %v309, 5
        %v2766 = vsel %vm1272, %v2764, %v2765
        %s2767 = scalar_lea.vmem %s248, 16
        %v2768 = vld [vmem:[%s2767] sm:$0x3]
        %v2769 = vunpack.c.l.b16 %v2763
        %v2770 = vunpack.c.l.b16 %v2766
        %v2771 = vpack.c.b16 %v2770, %v2769
        %v2773 = vsel %vm748, %v2771, 0
        %v2776 = vsel %vm797, %v2768, 0
        %2778 = vmatprep.subr.bf16.mxu0 0
        %2779 = vmatpush1.bf16.msra.mxu0 %v2776
        %2780 = vmatprep.subr.bf16.mxu0 0
        %2781 = vmatpush1.bf16.msra.mxu0 0
        %2782 = vmatprep.subr.bf16.mxu0 0
        %2783 = vmatpush1.bf16.msra.mxu0 0
        %2784 = vmatprep.subr.bf16.mxu0 0
        %2785 = vmatpush1.bf16.msra.mxu0 0
        %2786 = vmatprep.subr.bf16.mxu0 0
        %2787 = vmatpush1.bf16.msra.mxu0 0
        %2788 = vmatprep.subr.bf16.mxu0 0
        %2789 = vmatpush1.bf16.msra.mxu0 0
        %2790 = vmatprep.subr.bf16.mxu0 0
        %2791 = vmatpush1.bf16.msra.mxu0 0
        %2792 = vmatprep.subr.bf16.mxu0 0
        %2793 = vmatpush1.bf16.msra.mxu0 0
        %2794 = vmatprep.subr.bf16.mxu0 0
        %2795 = vmatpush1.bf16.msra.mxu0 0
        %2796 = vmatprep.subr.bf16.mxu0 0
        %2797 = vmatpush1.bf16.msra.mxu0 0
        %2798 = vmatprep.subr.bf16.mxu0 0
        %2799 = vmatpush1.bf16.msra.mxu0 0
        %2800 = vmatprep.subr.bf16.mxu0 0
        %2801 = vmatpush1.bf16.msra.mxu0 0
        %2802 = vmatprep.subr.bf16.mxu0 0
        %2803 = vmatpush1.bf16.msra.mxu0 0
        %2804 = vmatprep.subr.bf16.mxu0 0
        %2805 = vmatpush1.bf16.msra.mxu0 0
        %2806 = vmatprep.subr.bf16.mxu0 0
        %2807 = vmatpush1.bf16.msra.mxu0 0
        %2808 = vmatprep.subr.bf16.mxu0 0
        %2809 = vmatpush1.bf16.msra.mxu0 0
        %2810 = vmatprep.mubr.bf16.mxu0 0
        %2811 = vmatmul.mubr.bf16.gmra.mrb[0].mxu0 %v1442
        %v2812 = vpop.f32.mrb[0].mxu0
        %v2813 = vadd.f32 0.0, %v2812
        %v2814 = vpop.f32.mrb[0].mxu0
        %v2815 = vpop.f32.mrb[0].mxu0
        %v2816 = vadd.f32 0.0, %v2815
        %v2817 = vpop.f32.mrb[0].mxu0
        %2818 = vmatprep.mubr.bf16.mxu0 0
        %2819 = vmatmul.mubr.bf16.gmra.mrb[0].mxu0 %v1445
        %v2820 = vpop.f32.mrb[0].mxu0
        %v2821 = vadd.f32 0.0, %v2820
        %v2822 = vpop.f32.mrb[0].mxu0
        %v2823 = vpop.f32.mrb[0].mxu0
        %v2824 = vadd.f32 0.0, %v2823
        %v2825 = vpop.f32.mrb[0].mxu0
        %2826 = vmatprep.mubr.bf16.mxu0 0
        %2827 = vmatmul.mubr.bf16.gmra.mrb[0].mxu0 %v1448
        %v2828 = vpop.f32.mrb[0].mxu0
        %v2829 = vadd.f32 0.0, %v2828
        %v2830 = vpop.f32.mrb[0].mxu0
        %v2831 = vpop.f32.mrb[0].mxu0
        %v2832 = vadd.f32 0.0, %v2831
        %v2833 = vpop.f32.mrb[0].mxu0
        %2834 = vmatprep.mubr.bf16.mxu0 0
        %2835 = vmatmul.mubr.bf16.gmra.mrb[0].mxu0 %v1451
        %v2836 = vpop.f32.mrb[0].mxu0
        %v2837 = vadd.f32 0.0, %v2836
        %v2838 = vpop.f32.mrb[0].mxu0
        %v2839 = vpop.f32.mrb[0].mxu0
        %v2840 = vadd.f32 0.0, %v2839
        %v2841 = vpop.f32.mrb[0].mxu0
        %2842 = vmatprep.mubr.bf16.mxu0 0
        %2843 = vmatmul.mubr.bf16.gmra.mrb[0].mxu0 %v1454
        %v2844 = vpop.f32.mrb[0].mxu0
        %v2845 = vadd.f32 0.0, %v2844
        %v2846 = vpop.f32.mrb[0].mxu0
        %v2847 = vpop.f32.mrb[0].mxu0
        %v2848 = vadd.f32 0.0, %v2847
        %v2849 = vpop.f32.mrb[0].mxu0
        %2850 = vmatprep.mubr.bf16.mxu0 0
        %2851 = vmatmul.mubr.bf16.gmra.mrb[0].mxu0 %v1457
        %v2852 = vpop.f32.mrb[0].mxu0
        %v2853 = vadd.f32 0.0, %v2852
        %v2854 = vpop.f32.mrb[0].mxu0
        %v2855 = vpop.f32.mrb[0].mxu0
        %v2856 = vadd.f32 0.0, %v2855
        %v2857 = vpop.f32.mrb[0].mxu0
        %2858 = vmatprep.mubr.bf16.mxu0 0
        %2859 = vmatmul.mubr.bf16.gmra.mrb[0].mxu0 %v1460
        %v2860 = vpop.f32.mrb[0].mxu0
        %v2861 = vadd.f32 0.0, %v2860
        %v2862 = vpop.f32.mrb[0].mxu0
        %v2863 = vpop.f32.mrb[0].mxu0
        %v2864 = vadd.f32 0.0, %v2863
        %v2865 = vpop.f32.mrb[0].mxu0
        %2866 = vmatprep.mubr.bf16.mxu0 0
        %2867 = vmatmul.mubr.bf16.gmra.mrb[0].mxu0 %v1463
        %v2868 = vpop.f32.mrb[0].mxu0
        %v2869 = vadd.f32 0.0, %v2868
        %v2870 = vpop.f32.mrb[0].mxu0
        %v2871 = vpop.f32.mrb[0].mxu0
        %v2872 = vadd.f32 0.0, %v2871
        %v2873 = vpop.f32.mrb[0].mxu0
        %2874 = vmatprep.mubr.bf16.mxu0 0
        %2875 = vmatmul.mubr.bf16.gmra.mrb[0].mxu0 %v1466
        %v2876 = vpop.f32.mrb[0].mxu0
        %v2877 = vadd.f32 0.0, %v2876
        %v2878 = vpop.f32.mrb[0].mxu0
        %v2879 = vpop.f32.mrb[0].mxu0
        %v2880 = vadd.f32 0.0, %v2879
        %v2881 = vpop.f32.mrb[0].mxu0
        %2882 = vmatprep.mubr.bf16.mxu0 0
        %2883 = vmatmul.mubr.bf16.gmra.mrb[0].mxu0 %v1469
        %v2884 = vpop.f32.mrb[0].mxu0
        %v2885 = vadd.f32 0.0, %v2884
        %v2886 = vpop.f32.mrb[0].mxu0
        %v2887 = vpop.f32.mrb[0].mxu0
        %v2888 = vadd.f32 0.0, %v2887
        %v2889 = vpop.f32.mrb[0].mxu0
        %2890 = vmatprep.mubr.bf16.mxu0 0
        %2891 = vmatmul.mubr.bf16.gmra.mrb[0].mxu0 %v1472
        %v2892 = vpop.f32.mrb[0].mxu0
        %v2893 = vadd.f32 0.0, %v2892
        %v2894 = vpop.f32.mrb[0].mxu0
        %v2895 = vpop.f32.mrb[0].mxu0
        %v2896 = vadd.f32 0.0, %v2895
        %v2897 = vpop.f32.mrb[0].mxu0
        %2898 = vmatprep.mubr.bf16.mxu0 0
        %2899 = vmatmul.mubr.bf16.gmra.mrb[0].mxu0 %v1475
        %v2900 = vpop.f32.mrb[0].mxu0
        %v2901 = vadd.f32 0.0, %v2900
        %v2902 = vpop.f32.mrb[0].mxu0
        %v2903 = vpop.f32.mrb[0].mxu0
        %v2904 = vadd.f32 0.0, %v2903
        %v2905 = vpop.f32.mrb[0].mxu0
        %2906 = vmatprep.mubr.bf16.mxu0 0
        %2907 = vmatmul.mubr.bf16.gmra.mrb[0].mxu0 %v1478
        %v2908 = vpop.f32.mrb[0].mxu0
        %v2909 = vadd.f32 0.0, %v2908
        %v2910 = vpop.f32.mrb[0].mxu0
        %v2911 = vpop.f32.mrb[0].mxu0
        %v2912 = vadd.f32 0.0, %v2911
        %v2913 = vpop.f32.mrb[0].mxu0
        %2914 = vmatprep.mubr.bf16.mxu0 0
        %2915 = vmatmul.mubr.bf16.gmra.mrb[0].mxu0 %v1481
        %v2916 = vpop.f32.mrb[0].mxu0
        %v2917 = vadd.f32 0.0, %v2916
        %v2918 = vpop.f32.mrb[0].mxu0
        %v2919 = vpop.f32.mrb[0].mxu0
        %v2920 = vadd.f32 0.0, %v2919
        %v2921 = vpop.f32.mrb[0].mxu0
        %2922 = vmatprep.mubr.bf16.mxu0 0
        %2923 = vmatmul.mubr.bf16.gmra.mrb[0].mxu0 %v2127
        %v2924 = vpop.f32.mrb[0].mxu0
        %v2925 = vadd.f32 0.0, %v2924
        %v2926 = vpop.f32.mrb[0].mxu0
        %v2927 = vpop.f32.mrb[0].mxu0
        %v2928 = vadd.f32 0.0, %v2927
        %v2929 = vpop.f32.mrb[0].mxu0
        %2930 = vmatprep.mubr.bf16.mxu0 0
        %2931 = vmatmul.mubr.bf16.gmra.mrb[0].mxu0 %v2773
        %v2932 = vpop.f32.mrb[0].mxu0
        %v2933 = vadd.f32 0.0, %v2932
        %v2934 = vpop.f32.mrb[0].mxu0
        %v2935 = vpop.f32.mrb[0].mxu0
        %v2936 = vadd.f32 0.0, %v2935
        %v2937 = vpop.f32.mrb[0].mxu0
        %2938 = vdwg.mxu0
        %v2939 = vadd.f32 %v2727, %v2813
        %v2940 = vadd.f32 %v2728, %v2816
        %v2941 = vadd.f32 %v2729, %v2821
        %v2942 = vadd.f32 %v2730, %v2824
        %v2943 = vadd.f32 %v2731, %v2829
        %v2944 = vadd.f32 %v2732, %v2832
        %v2945 = vadd.f32 %v2733, %v2837
        %v2946 = vadd.f32 %v2734, %v2840
        %v2947 = vadd.f32 %v2735, %v2845
        %v2948 = vadd.f32 %v2736, %v2848
        %v2949 = vadd.f32 %v2737, %v2853
        %v2950 = vadd.f32 %v2738, %v2856
        %v2951 = vadd.f32 %v2739, %v2861
        %v2952 = vadd.f32 %v2740, %v2864
        %v2953 = vadd.f32 %v2741, %v2869
        %v2954 = vadd.f32 %v2742, %v2872
        %v2955 = vadd.f32 %v2743, %v2877
        %v2956 = vadd.f32 %v2744, %v2880
        %v2957 = vadd.f32 %v2745, %v2885
        %v2958 = vadd.f32 %v2746, %v2888
        %v2959 = vadd.f32 %v2747, %v2893
        %v2960 = vadd.f32 %v2748, %v2896
        %v2961 = vadd.f32 %v2749, %v2901
        %v2962 = vadd.f32 %v2750, %v2904
        %v2963 = vadd.f32 %v2751, %v2909
        %v2964 = vadd.f32 %v2752, %v2912
        %v2965 = vadd.f32 %v2753, %v2917
        %v2966 = vadd.f32 %v2754, %v2920
        %v2967 = vadd.f32 %v2755, %v2925
        %v2968 = vadd.f32 %v2756, %v2928
        %v2969 = vadd.f32 %v2757, %v2933
        %v2970 = vadd.f32 %v2758, %v2936
        %v2971 = vld [vmem:[%s251] sm:$0x1]
        %v2973 = vlaneseq
        %v2974 = vshrl.u32 %v2973, 7
        %v2975 = vsub.s32 0, %v2974
        %v2976 = vrot.slane %v2971, %v2975
        %v2978 = vmul.f32 %v2939, %v2976
        %v2979 = vmul.f32 %v2940, %v2976
        %v2980 = vmul.f32 %v2941, %v2976
        %v2981 = vmul.f32 %v2942, %v2976
        %v2982 = vmul.f32 %v2943, %v2976
        %v2983 = vmul.f32 %v2944, %v2976
        %v2984 = vmul.f32 %v2945, %v2976
        %v2985 = vmul.f32 %v2946, %v2976
        %v2986 = vmul.f32 %v2947, %v2976
        %v2987 = vmul.f32 %v2948, %v2976
        %v2988 = vmul.f32 %v2949, %v2976
        %v2989 = vmul.f32 %v2950, %v2976
        %v2990 = vmul.f32 %v2951, %v2976
        %v2991 = vmul.f32 %v2952, %v2976
        %v2992 = vmul.f32 %v2953, %v2976
        %v2993 = vmul.f32 %v2954, %v2976
        %v2994 = vmul.f32 %v2955, %v2976
        %v2995 = vmul.f32 %v2956, %v2976
        %v2996 = vmul.f32 %v2957, %v2976
        %v2997 = vmul.f32 %v2958, %v2976
        %v2998 = vmul.f32 %v2959, %v2976
        %v2999 = vmul.f32 %v2960, %v2976
        %v3000 = vmul.f32 %v2961, %v2976
        %v3001 = vmul.f32 %v2962, %v2976
        %v3002 = vmul.f32 %v2963, %v2976
        %v3003 = vmul.f32 %v2964, %v2976
        %v3004 = vmul.f32 %v2965, %v2976
        %v3005 = vmul.f32 %v2966, %v2976
        %v3006 = vmul.f32 %v2967, %v2976
        %v3007 = vmul.f32 %v2968, %v2976
        %v3008 = vmul.f32 %v2969, %v2976
        %v3009 = vmul.f32 %v2970, %v2976
        %v3010 = vld [vmem:[%s254] sm:$0x1]
        %v3012 = vlaneseq
        %v3013 = vshrl.u32 %v3012, 7
        %v3014 = vsub.s32 0, %v3013
        %v3015 = vrot.slane %v3010, %v3014
        %v3017 = vadd.f32 %v2978, %v3015
        %v3018 = vadd.f32 %v2979, %v3015
        %v3019 = vadd.f32 %v2980, %v3015
        %v3020 = vadd.f32 %v2981, %v3015
        %v3021 = vadd.f32 %v2982, %v3015
        %v3022 = vadd.f32 %v2983, %v3015
        %v3023 = vadd.f32 %v2984, %v3015
        %v3024 = vadd.f32 %v2985, %v3015
        %v3025 = vadd.f32 %v2986, %v3015
        %v3026 = vadd.f32 %v2987, %v3015
        %v3027 = vadd.f32 %v2988, %v3015
        %v3028 = vadd.f32 %v2989, %v3015
        %v3029 = vadd.f32 %v2990, %v3015
        %v3030 = vadd.f32 %v2991, %v3015
        %v3031 = vadd.f32 %v2992, %v3015
        %v3032 = vadd.f32 %v2993, %v3015
        %v3033 = vadd.f32 %v2994, %v3015
        %v3034 = vadd.f32 %v2995, %v3015
        %v3035 = vadd.f32 %v2996, %v3015
        %v3036 = vadd.f32 %v2997, %v3015
        %v3037 = vadd.f32 %v2998, %v3015
        %v3038 = vadd.f32 %v2999, %v3015
        %v3039 = vadd.f32 %v3000, %v3015
        %v3040 = vadd.f32 %v3001, %v3015
        %v3041 = vadd.f32 %v3002, %v3015
        %v3042 = vadd.f32 %v3003, %v3015
        %v3043 = vadd.f32 %v3004, %v3015
        %v3044 = vadd.f32 %v3005, %v3015
        %v3045 = vadd.f32 %v3006, %v3015
        %v3046 = vadd.f32 %v3007, %v3015
        %v3047 = vadd.f32 %v3008, %v3015
        %v3048 = vadd.f32 %v3009, %v3015
        %v3049 = vmax.f32 %v3017, 0.0
        %v3050 = vmax.f32 %v3018, 0.0
        %v3051 = vmax.f32 %v3019, 0.0
        %v3052 = vmax.f32 %v3020, 0.0
        %v3053 = vmax.f32 %v3021, 0.0
        %v3054 = vmax.f32 %v3022, 0.0
        %v3055 = vmax.f32 %v3023, 0.0
        %v3056 = vmax.f32 %v3024, 0.0
        %v3057 = vmax.f32 %v3025, 0.0
        %v3058 = vmax.f32 %v3026, 0.0
        %v3059 = vmax.f32 %v3027, 0.0
        %v3060 = vmax.f32 %v3028, 0.0
        %v3061 = vmax.f32 %v3029, 0.0
        %v3062 = vmax.f32 %v3030, 0.0
        %v3063 = vmax.f32 %v3031, 0.0
        %v3064 = vmax.f32 %v3032, 0.0
        %v3065 = vmax.f32 %v3033, 0.0
        %v3066 = vmax.f32 %v3034, 0.0
        %v3067 = vmax.f32 %v3035, 0.0
        %v3068 = vmax.f32 %v3036, 0.0
        %v3069 = vmax.f32 %v3037, 0.0
        %v3070 = vmax.f32 %v3038, 0.0
        %v3071 = vmax.f32 %v3039, 0.0
        %v3072 = vmax.f32 %v3040, 0.0
        %v3073 = vmax.f32 %v3041, 0.0
        %v3074 = vmax.f32 %v3042, 0.0
        %v3075 = vmax.f32 %v3043, 0.0
        %v3076 = vmax.f32 %v3044, 0.0
        %v3077 = vmax.f32 %v3045, 0.0
        %v3078 = vmax.f32 %v3046, 0.0
        %v3079 = vmax.f32 %v3047, 0.0
        %v3080 = vmax.f32 %v3048, 0.0
        %v3081 = vpack.c.bf16 %v3050, %v3049
        %v3082 = vpack.c.bf16 %v3052, %v3051
        %v3083 = vpack.c.bf16 %v3054, %v3053
        %v3084 = vpack.c.bf16 %v3056, %v3055
        %v3085 = vpack.c.bf16 %v3058, %v3057
        %v3086 = vpack.c.bf16 %v3060, %v3059
        %v3087 = vpack.c.bf16 %v3062, %v3061
        %v3088 = vpack.c.bf16 %v3064, %v3063
        %v3089 = vpack.c.bf16 %v3066, %v3065
        %v3090 = vpack.c.bf16 %v3068, %v3067
        %v3091 = vpack.c.bf16 %v3070, %v3069
        %v3092 = vpack.c.bf16 %v3072, %v3071
        %v3093 = vpack.c.bf16 %v3074, %v3073
        %v3094 = vpack.c.bf16 %v3076, %v3075
        %v3095 = vpack.c.bf16 %v3078, %v3077
        %v3096 = vpack.c.bf16 %v3080, %v3079
        %v3113 = vunpack.c.l.b16 %v3081
        %v3114 = vunpack.c.h.b16 %v3081
        %v3115 = vunpack.c.l.b16 %v3082
        %v3116 = vunpack.c.h.b16 %v3082
        %v3117 = vunpack.c.l.b16 %v3083
        %v3118 = vunpack.c.h.b16 %v3083
        %v3119 = vunpack.c.l.b16 %v3084
        %v3120 = vunpack.c.h.b16 %v3084
        %v3121 = vunpack.c.l.b16 %v3085
        %v3122 = vunpack.c.h.b16 %v3085
        %v3123 = vunpack.c.l.b16 %v3086
        %v3124 = vunpack.c.h.b16 %v3086
        %v3125 = vunpack.c.l.b16 %v3087
        %v3126 = vunpack.c.h.b16 %v3087
        %v3127 = vunpack.c.l.b16 %v3088
        %v3128 = vunpack.c.h.b16 %v3088
        %v3129 = vunpack.c.l.b16 %v3089
        %v3130 = vunpack.c.h.b16 %v3089
        %v3131 = vunpack.c.l.b16 %v3090
        %v3132 = vunpack.c.h.b16 %v3090
        %v3133 = vunpack.c.l.b16 %v3091
        %v3134 = vunpack.c.h.b16 %v3091
        %v3135 = vunpack.c.l.b16 %v3092
        %v3136 = vunpack.c.h.b16 %v3092
        %v3137 = vunpack.c.l.b16 %v3093
        %v3138 = vunpack.c.h.b16 %v3093
        %v3139 = vunpack.c.l.b16 %v3094
        %v3140 = vunpack.c.h.b16 %v3094
        %v3141 = vunpack.c.l.b16 %v3095
        %v3142 = vunpack.c.h.b16 %v3095
        %v3143 = vunpack.c.l.b16 %v3096
        %v3144 = vunpack.c.h.b16 %v3096
        %v3145 = vpack.c.b16 %v3113, %v3113
        %v3146 = vpack.c.b16 %v3114, %v3114
        %v3147 = vpack.c.b16 %v3115, %v3115
        %v3148 = vpack.c.b16 %v3116, %v3116
        %v3149 = vpack.c.b16 %v3117, %v3117
        %v3150 = vpack.c.b16 %v3118, %v3118
        %v3151 = vpack.c.b16 %v3119, %v3119
        %v3152 = vpack.c.b16 %v3120, %v3120
        %v3153 = vpack.c.b16 %v3121, %v3121
        %v3154 = vpack.c.b16 %v3122, %v3122
        %v3155 = vpack.c.b16 %v3123, %v3123
        %v3156 = vpack.c.b16 %v3124, %v3124
        %v3157 = vpack.c.b16 %v3125, %v3125
        %v3158 = vpack.c.b16 %v3126, %v3126
        %v3159 = vpack.c.b16 %v3127, %v3127
        %v3160 = vpack.c.b16 %v3128, %v3128
        %v3161 = vpack.c.b16 %v3129, %v3129
        %v3162 = vpack.c.b16 %v3130, %v3130
        %v3163 = vpack.c.b16 %v3131, %v3131
        %v3164 = vpack.c.b16 %v3132, %v3132
        %v3165 = vpack.c.b16 %v3133, %v3133
        %v3166 = vpack.c.b16 %v3134, %v3134
        %v3167 = vpack.c.b16 %v3135, %v3135
        %v3168 = vpack.c.b16 %v3136, %v3136
        %v3169 = vpack.c.b16 %v3137, %v3137
        %v3170 = vpack.c.b16 %v3138, %v3138
        %v3171 = vpack.c.b16 %v3139, %v3139
        %v3172 = vpack.c.b16 %v3140, %v3140
        %v3173 = vpack.c.b16 %v3141, %v3141
        %v3174 = vpack.c.b16 %v3142, %v3142
        %v3175 = vpack.c.b16 %v3143, %v3143
        %v3176 = vpack.c.b16 %v3144, %v3144
        %vm3209 = vcmask 519168
        %3210 = vst.msk [vmem:[%s239] sm:$0xf] %vm3209, %v3145
        %3211 = vst.msk [vmem:[%s239 + $0x4] sm:$0xf] %vm3209, %v3146
        %3212 = vst.msk [vmem:[%s239 + $0x8] sm:$0xf] %vm3209, %v3147
        %3213 = vst.msk [vmem:[%s239 + $0xc] sm:$0xf] %vm3209, %v3148
        %3214 = vst.msk [vmem:[%s239 + $0x10] sm:$0xf] %vm3209, %v3149
        %3215 = vst.msk [vmem:[%s239 + $0x14] sm:$0xf] %vm3209, %v3150
        %3216 = vst.msk [vmem:[%s239 + $0x18] sm:$0xf] %vm3209, %v3151
        %3217 = vst.msk [vmem:[%s239 + $0x1c] sm:$0xf] %vm3209, %v3152
        %3218 = vst.msk [vmem:[%s239 + $0x20] sm:$0xf] %vm3209, %v3153
        %3219 = vst.msk [vmem:[%s239 + $0x24] sm:$0xf] %vm3209, %v3154
        %3220 = vst.msk [vmem:[%s239 + $0x28] sm:$0xf] %vm3209, %v3155
        %3221 = vst.msk [vmem:[%s239 + $0x2c] sm:$0xf] %vm3209, %v3156
        %3222 = vst.msk [vmem:[%s239 + $0x30] sm:$0xf] %vm3209, %v3157
        %3223 = vst.msk [vmem:[%s239 + $0x34] sm:$0xf] %vm3209, %v3158
        %3224 = vst.msk [vmem:[%s239 + $0x38] sm:$0xf] %vm3209, %v3159
        %3225 = vst.msk [vmem:[%s239 + $0x3c] sm:$0xf] %vm3209, %v3160
        %3226 = vst.msk [vmem:[%s239 + $0x40] sm:$0xf] %vm3209, %v3161
        %3227 = vst.msk [vmem:[%s239 + $0x44] sm:$0xf] %vm3209, %v3162
        %3228 = vst.msk [vmem:[%s239 + $0x48] sm:$0xf] %vm3209, %v3163
        %3229 = vst.msk [vmem:[%s239 + $0x4c] sm:$0xf] %vm3209, %v3164
        %3230 = vst.msk [vmem:[%s239 + $0x50] sm:$0xf] %vm3209, %v3165
        %3231 = vst.msk [vmem:[%s239 + $0x54] sm:$0xf] %vm3209, %v3166
        %3232 = vst.msk [vmem:[%s239 + $0x58] sm:$0xf] %vm3209, %v3167
        %3233 = vst.msk [vmem:[%s239 + $0x5c] sm:$0xf] %vm3209, %v3168
        %3234 = vst.msk [vmem:[%s239 + $0x60] sm:$0xf] %vm3209, %v3169
        %3235 = vst.msk [vmem:[%s239 + $0x64] sm:$0xf] %vm3209, %v3170
        %3236 = vst.msk [vmem:[%s239 + $0x68] sm:$0xf] %vm3209, %v3171
        %3237 = vst.msk [vmem:[%s239 + $0x6c] sm:$0xf] %vm3209, %v3172
        %3238 = vst.msk [vmem:[%s239 + $0x70] sm:$0xf] %vm3209, %v3173
        %3239 = vst.msk [vmem:[%s239 + $0x74] sm:$0xf] %vm3209, %v3174
        %3240 = vst.msk [vmem:[%s239 + $0x78] sm:$0xf] %vm3209, %v3175
        %3241 = vst.msk [vmem:[%s239 + $0x7c] sm:$0xf] %vm3209, %v3176
        %s3242 = sand.u32 %s144, 1
        %s3243 = scalar_lea.sflag [#allocation3], %s3242
        %s3244 = sand.u32 %s144, 1
        %s3245 = smul.addr %s3244, 128
        %s3246 = scalar_lea.vmem [#allocation2], %s3245
        // Predicated region
        $region37: #{tpu_custom_call.1} parent=35 // pred_check
          %p3247 = pneg %p154
        $region38: #{tpu_custom_call.1} parent=35 // pred_check_branch
          %3249 = sbr.rel (%p3247) target = $region40
        $region39: #{tpu_custom_call.1} parent=35 // pred_region
          %s3251 = ssub.s32 2048, 2048
          %3252 = vsyncadd %s3243, %s3251
          %s3253 = smul.addr %s23, 32
          %s3254 = sadd.s32 %s22, %s3253
          %s3255 = smul.addr %s3254, 64
          %s3256 = scalar_lea.hbm %s4, %s3255
          %s3257 = sshll.u32 %s3246, 4
          %s3258 = int_to_ptr.vmem [resolvable:$true] %s3257
          %3263 = dma.vmem_to_hbm [thread:$0]  %s3258, 2048, %s3256, %s3243, 64, 64, 4
        $region40: #{tpu_custom_call.1} parent=35 // pred_fallthru
          _
      $region36: #{tpu_custom_call.1} parent=5 // pred_fallthru
        _
      %p3264 = scmp.le.s32.totalorder 2, %s13
      // Predicated region
      $region41: #{tpu_custom_call.1} parent=5 // pred_check
        %p3265 = pneg %p3264
      $region42: #{tpu_custom_call.1} parent=5 // pred_check_branch
        %3267 = sbr.rel (%p3265) target = $region44
      $region43: #{tpu_custom_call.1} parent=5 // pred_region
        %s3268 = ssub.s32 %s13, 2
        // Predicated region
        $region45: #{tpu_custom_call.1} parent=43 // pred_check
          %p3269 = pneg %p160
        $region46: #{tpu_custom_call.1} parent=43 // pred_check_branch
          %3271 = sbr.rel (%p3269) target = $region48
        $region47: #{tpu_custom_call.1} parent=43 // pred_region
          %s3272 = sand.u32 %s145, 1
          %s3273 = scalar_lea.sflag [#allocation3], %s3272
          %s3274 = sand.u32 %s145, 1
          %s3275 = smul.addr %s3274, 128
          %s3276 = scalar_lea.vmem [#allocation2], %s3275
          %3277 = dma.done %s3273, 2048
        $region48: #{tpu_custom_call.1} parent=43 // pred_fallthru
          _
      $region44: #{tpu_custom_call.1} parent=5 // pred_fallthru
        _
    $region6: #{tpu_custom_call.1} parent=1 // loop_footer
      %s17 = sadd.s32 1, %s13
    $region7: #{tpu_custom_call.1} parent=1 // loop_footer_branch
      %12 = sbr.rel target = $region3
    $region8: #{tpu_custom_call.1} parent=1 // loop_exit
      _
    %3278 = vsyncpa [#allocation3], 1
    %s3279 = scalar_lea.sflag [#allocation3], 1
    %3280 = vsyncpa %s3279, 1

</llo_original>
